<compile_context>
chip_gen: v7x
topology: tpu7x:2x2x1
jax: 0.10.0
libtpu: 0.0.40
codegen_flags: <defaults>
</compile_context>

<pallas_src>
import functools

import jax
import jax.numpy as jnp
from jax import lax
from jax.experimental import pallas as pl
from jax.experimental.pallas import tpu as pltpu


# --------------------------------------------------------------------------- #
# Edge phase: per-type edge MLP + scatter-sum aggregation into agg_m.
# Grid: (E // edge_block,)  -- "arbitrary" (agg_m is a resident accumulator).
# --------------------------------------------------------------------------- #
def _edge_kernel(edge_block, n_edge_types, de,
                 # inputs
                 nf_ref, ef_ref, src_ref, dstc_ref, dstr_ref, etype_ref,
                 w_ref, b_ref,
                 # outputs
                 out_ef_ref, out_agg_ref):
    f32 = jnp.float32
    n_nodes = nf_ref.shape[0]

    # Initialize the resident aggregation accumulator on the first edge tile.
    @pl.when(pl.program_id(0) == 0)
    def _():
        out_agg_ref[...] = jnp.zeros_like(out_agg_ref)

    nf = nf_ref[...]                                           # [N, Dn]

    # ---- endpoint gather on the MXU: per-tile one-hot built in vregs from
    # int indices (no O(E*N) array ever touches HBM, no serial row loop). ----
    col_iota = lax.broadcasted_iota(jnp.int32, (edge_block, n_nodes), 1)
    oh_src = (col_iota == src_ref[...]).astype(f32)            # [eb, N]
    oh_dst = (col_iota == dstc_ref[...]).astype(f32)           # [eb, N]
    src_nf = jnp.dot(oh_src, nf, preferred_element_type=f32)   # [eb, Dn]
    dst_nf = jnp.dot(oh_dst, nf, preferred_element_type=f32)   # [eb, Dn]

    # ---- fused edge MLP: one K = De + 2*Dn matmul against per-type weights
    # stacked along the output axis, then integer-compare routing. -----------
    x = jnp.concatenate([ef_ref[...], src_nf, dst_nf], axis=-1)  # [eb, De+2Dn]
    y = jnp.dot(x, w_ref[...], preferred_element_type=f32) + b_ref[...]
    y = jnp.maximum(y, 0.0)                                      # [eb, Te*De]

    et = etype_ref[...]                                          # [eb, 1] int32
    upd = y[:, 0:de]                                             # type 0 seed
    for t in range(1, n_edge_types):                             # static, lane-aligned
        upd = jnp.where(et == t, y[:, t * de:(t + 1) * de], upd)
    out_ef_ref[...] = upd

    # ---- message passing: copy_e + sum as an MXU segment-sum (one-hot^T @
    # upd), accumulated into the resident agg_m output.  Order-independent,
    # duplicate destinations handled by the contraction. ---------------------
    row_iota = lax.broadcasted_iota(jnp.int32, (n_nodes, edge_block), 0)
    oh_dst_t = (row_iota == dstr_ref[...]).astype(f32)           # [N, eb]
    out_agg_ref[...] += jnp.dot(oh_dst_t, upd, preferred_element_type=f32)


# --------------------------------------------------------------------------- #
# Node phase: per-type node MLP.  Grid: (N // node_block,) -- "parallel".
# --------------------------------------------------------------------------- #
def _node_kernel(node_block, n_node_types, dn,
                 agg_ref, nf_ref, ntype_ref, w_ref, b_ref,
                 out_nf_ref):
    f32 = jnp.float32
    x = jnp.concatenate([agg_ref[...], nf_ref[...]], axis=-1)    # [nb, De+Dn]
    y = jnp.dot(x, w_ref[...], preferred_element_type=f32) + b_ref[...]
    y = jnp.maximum(y, 0.0)                                      # [nb, Tn*Dn]

    nt = ntype_ref[...]                                          # [nb, 1] int32
    upd = y[:, 0:dn]
    for t in range(1, n_node_types):
        upd = jnp.where(nt == t, y[:, t * dn:(t + 1) * dn], upd)
    out_nf_ref[...] = upd


# --------------------------------------------------------------------------- #
# Wrapper
# --------------------------------------------------------------------------- #
def relational_mpnn_forward(nf, ef, src_idx, dst_idx, etype, ntype, params,
                            *, edge_block=256, node_block=128):
    """Pallas-backed forward. Returns (updated_nf, updated_ef)."""
    N, Dn = nf.shape
    E, De = ef.shape
    Te = params["ew_e"].shape[0]
    Tn = params["nw_a"].shape[0]
    assert E % edge_block == 0 and edge_block % 8 == 0
    assert N % node_block == 0 and node_block % 8 == 0
    assert De % 128 == 0 and Dn % 128 == 0   # lane-dense slices / stores

    # Fuse the concat-input weights (K = De+2*Dn edge, K = De+Dn node) and
    # stack per-type weights along the output axis -> one lane-dense matmul
    # per phase; column block t holds type t's weights.
    w_edge = jnp.concatenate([params["ew_e"], params["ew_s"], params["ew_d"]],
                             axis=1)                               # (Te, De+2Dn, De)
    we = jnp.transpose(w_edge, (1, 0, 2)).reshape(De + 2 * Dn, Te * De)
    be = params["eb"].reshape(1, Te * De)
    w_node = jnp.concatenate([params["nw_a"], params["nw_n"]], axis=1)
    wn = jnp.transpose(w_node, (1, 0, 2)).reshape(De + Dn, Tn * Dn)
    nb = params["nb"].reshape(1, Tn * Dn)

    # Integer index / type tiles (column + row layouts for gather / scatter).
    src_col = src_idx.reshape(E, 1).astype(jnp.int32)
    dst_col = dst_idx.reshape(E, 1).astype(jnp.int32)
    dst_row = dst_idx.reshape(1, E).astype(jnp.int32)
    etype2d = etype.reshape(E, 1).astype(jnp.int32)
    ntype2d = ntype.reshape(N, 1).astype(jnp.int32)

    # ----------------------- edge update + aggregation ----------------------
    upd_ef, agg_m = pl.pallas_call(
        functools.partial(_edge_kernel, edge_block, Te, De),
        grid=(E // edge_block,),
        in_specs=[
            pl.BlockSpec((N, Dn), lambda i: (0, 0)),                  # nf (resident)
            pl.BlockSpec((edge_block, De), lambda i: (i, 0)),         # ef tile
            pl.BlockSpec((edge_block, 1), lambda i: (i, 0)),          # src idx (col)
            pl.BlockSpec((edge_block, 1), lambda i: (i, 0)),          # dst idx (col)
            pl.BlockSpec((1, edge_block), lambda i: (0, i)),          # dst idx (row)
            pl.BlockSpec((edge_block, 1), lambda i: (i, 0)),          # etype tile
            pl.BlockSpec((De + 2 * Dn, Te * De), lambda i: (0, 0)),   # fused W
            pl.BlockSpec((1, Te * De), lambda i: (0, 0)),             # bias
        ],
        out_specs=(
            pl.BlockSpec((edge_block, De), lambda i: (i, 0)),         # upd_ef tile
            pl.BlockSpec((N, De), lambda i: (0, 0)),                  # agg_m (accum)
        ),
        out_shape=(jax.ShapeDtypeStruct((E, De), jnp.float32),
                   jax.ShapeDtypeStruct((N, De), jnp.float32)),
        compiler_params=pltpu.CompilerParams(
            dimension_semantics=("arbitrary",),       # sequential: agg accumulator
            vmem_limit_bytes=64 * 1024 * 1024),
    )(nf, ef, src_col, dst_col, dst_row, etype2d, we, be)

    # ------------------------------ node update ------------------------------
    upd_nf = pl.pallas_call(
        functools.partial(_node_kernel, node_block, Tn, Dn),
        grid=(N // node_block,),
        in_specs=[
            pl.BlockSpec((node_block, De), lambda i: (i, 0)),         # agg_m tile
            pl.BlockSpec((node_block, Dn), lambda i: (i, 0)),         # nf tile
            pl.BlockSpec((node_block, 1), lambda i: (i, 0)),          # ntype tile
            pl.BlockSpec((De + Dn, Tn * Dn), lambda i: (0, 0)),       # fused W
            pl.BlockSpec((1, Tn * Dn), lambda i: (0, 0)),             # bias
        ],
        out_specs=pl.BlockSpec((node_block, Dn), lambda i: (i, 0)),
        out_shape=jax.ShapeDtypeStruct((N, Dn), jnp.float32),
        compiler_params=pltpu.CompilerParams(
            dimension_semantics=("parallel",),        # independent node tiles
            vmem_limit_bytes=64 * 1024 * 1024),
    )(agg_m, nf, ntype2d, wn, nb)

    return upd_nf, upd_ef


# --------------------------------------------------------------------------- #
# Pure-JAX reference mirroring the PyTorch module semantics.
# --------------------------------------------------------------------------- #
def reference_forward(nf, ef, src_idx, dst_idx, etype, ntype, params):
    N, Dn = nf.shape
    E, De = ef.shape
    Te = params["ew_e"].shape[0]
    Tn = params["nw_a"].shape[0]

    src_nf = nf[src_idx]
    dst_nf = nf[dst_idx]
    em_in = jnp.concatenate([ef, src_nf, dst_nf], axis=-1)
    W_e = jnp.concatenate([params["ew_e"], params["ew_s"], params["ew_d"]], axis=1)

    upd_ef = jnp.zeros((E, De), jnp.float32)
    for t in range(Te):
        y = jax.nn.relu(em_in @ W_e[t] + params["eb"][t, 0])
        upd_ef = jnp.where((etype == t)[:, None], y, upd_ef)

    agg_m = jnp.zeros((N, De), jnp.float32).at[dst_idx].add(upd_ef)

    nm_in = jnp.concatenate([agg_m, nf], axis=-1)
    W_n = jnp.concatenate([params["nw_a"], params["nw_n"]], axis=1)
    upd_nf = jnp.zeros((N, Dn), jnp.float32)
    for t in range(Tn):
        y = jax.nn.relu(nm_in @ W_n[t] + params["nb"][t, 0])
        upd_nf = jnp.where((ntype == t)[:, None], y, upd_nf)
    return upd_nf, upd_ef


def init_params(key, De, Dn, Te, Tn):
    ks = jax.random.split(key, 7)
    e_in = De + 2 * Dn
    n_in = De + Dn
    e_scale = 1.0 / jnp.sqrt(e_in)
    n_scale = 1.0 / jnp.sqrt(n_in)
    return {
        # edge-type MLP weights, split along the concat input axis [ef|src|dst]
        "ew_e": jax.random.normal(ks[0], (Te, De, De), jnp.float32) * e_scale,
        "ew_s": jax.random.normal(ks[1], (Te, Dn, De), jnp.float32) * e_scale,
        "ew_d": jax.random.normal(ks[2], (Te, Dn, De), jnp.float32) * e_scale,
        "eb":   jax.random.normal(ks[3], (Te, 1, De), jnp.float32) * 0.1,
        # node-type MLP weights, split along the concat input axis [agg_m|nf]
        "nw_a": jax.random.normal(ks[4], (Tn, De, Dn), jnp.float32) * n_scale,
        "nw_n": jax.random.normal(ks[5], (Tn, Dn, Dn), jnp.float32) * n_scale,
        "nb":   jax.random.normal(ks[6], (Tn, 1, Dn), jnp.float32) * 0.1,
    }


if __name__ == "__main__":
    # Small synthetic relational graph (feature dims chosen lane-dense = 128).
    N, E = 128, 512        # nodes, edges
    Dn, De = 128, 128      # node / edge feature dims
    Te, Tn = 3, 2          # number of edge / node types

    key = jax.random.PRNGKey(0)
    k_nf, k_ef, k_src, k_dst, k_et, k_nt, k_par = jax.random.split(key, 7)

    nf = jax.random.normal(k_nf, (N, Dn), jnp.float32)
    ef = jax.random.normal(k_ef, (E, De), jnp.float32)
    src_idx = jax.random.randint(k_src, (E,), 0, N)
    dst_idx = jax.random.randint(k_dst, (E,), 0, N)
    etype = jax.random.randint(k_et, (E,), 0, Te)
    ntype = jax.random.randint(k_nt, (N,), 0, Tn)

    params = init_params(k_par, De, Dn, Te, Tn)

    out_nf, out_ef = relational_mpnn_forward(nf, ef, src_idx, dst_idx,
                                             etype, ntype, params,
                                             edge_block=256, node_block=128)
    jax.block_until_ready((out_nf, out_ef))

    ref_nf, ref_ef = reference_forward(nf, ef, src_idx, dst_idx,
                                       etype, ntype, params)
    # Slightly relaxed tolerance: the one-hot MXU gather/segment-sum goes
    # through f32 matmul pass decomposition rather than exact XLA
    # gather/scatter-add.
    assert jnp.allclose(out_ef, ref_ef, atol=2e-3, rtol=2e-3)
    assert jnp.allclose(out_nf, ref_nf, atol=2e-3, rtol=2e-3)

    print("KERNEL_OK")
</pallas_src>

<mosaic_0001>
module attributes {stable_mosaic.version = 11 : i64} {
  func.func @_edge_kernel(%arg0: i32, %arg1: memref<128x128xf32, #tpu.memory_space<vmem>>, %arg2: memref<256x128xf32, #tpu.memory_space<vmem>>, %arg3: memref<256x1xi32, #tpu.memory_space<vmem>>, %arg4: memref<256x1xi32, #tpu.memory_space<vmem>>, %arg5: memref<1x256xi32, #tpu.memory_space<vmem>>, %arg6: memref<256x1xi32, #tpu.memory_space<vmem>>, %arg7: memref<384x384xf32, #tpu.memory_space<vmem>>, %arg8: memref<1x384xf32, #tpu.memory_space<vmem>>, %arg9: memref<256x128xf32, #tpu.memory_space<vmem>>, %arg10: memref<128x128xf32, #tpu.memory_space<vmem>>) attributes {dimension_semantics = [#tpu.dimension_semantics<arbitrary>], iteration_bounds = array<i64: 2>, scalar_prefetch = 0 : i64, scratch_operands = 0 : i64, tpu.core_type = #tpu.core_type<tc>, window_params = [{pipeline_mode = #tpu.pipeline_mode<synchronous>, transform_indices = @transform_0, window_bounds = array<i64: 128, 128>}, {transform_indices = @transform_1, window_bounds = array<i64: 256, 128>}, {transform_indices = @transform_2, window_bounds = array<i64: 256, 1>}, {transform_indices = @transform_3, window_bounds = array<i64: 256, 1>}, {transform_indices = @transform_4, window_bounds = array<i64: 1, 256>}, {transform_indices = @transform_5, window_bounds = array<i64: 256, 1>}, {pipeline_mode = #tpu.pipeline_mode<synchronous>, transform_indices = @transform_6, window_bounds = array<i64: 384, 384>}, {pipeline_mode = #tpu.pipeline_mode<synchronous>, transform_indices = @transform_7, window_bounds = array<i64: 1, 384>}, {transform_indices = @transform_8, window_bounds = array<i64: 256, 128>}, {pipeline_mode = #tpu.pipeline_mode<synchronous>, transform_indices = @transform_9, window_bounds = array<i64: 128, 128>}]} {
    %c0_i32 = arith.constant 0 : i32
    %0 = arith.cmpi eq, %arg0, %c0_i32 : i32
    %1 = arith.extui %0 : i1 to i32
    %c0_i32_0 = arith.constant 0 : i32
    %2 = arith.cmpi ne, %1, %c0_i32_0 : i32
    scf.if %2 {
      %cst_26 = arith.constant 0.000000e+00 : f32
      %51 = vector.broadcast %cst_26 : f32 to vector<128x128xf32>
      %c0_27 = arith.constant 0 : index
      %c0_28 = arith.constant 0 : index
      %52 = vector.load %arg10[%c0_27, %c0_28] : memref<128x128xf32, #tpu.memory_space<vmem>>, vector<128x128xf32>
      tpu.vector_store %arg10[%c0_27, %c0_28], %51 {strides = array<i32>} : memref<128x128xf32, #tpu.memory_space<vmem>>, vector<128x128xf32>,
    } else {
    }
    %c0 = arith.constant 0 : index
    %c0_1 = arith.constant 0 : index
    %3 = vector.load %arg1[%c0, %c0_1] : memref<128x128xf32, #tpu.memory_space<vmem>>, vector<128x128xf32>
    %4 = tpu.iota {dimensions = array<i32: 1>} : vector<256x128xi32>
    %c0_2 = arith.constant 0 : index
    %c0_3 = arith.constant 0 : index
    %5 = vector.load %arg3[%c0_2, %c0_3] : memref<256x1xi32, #tpu.memory_space<vmem>>, vector<256x1xi32>
    %6 = vector.broadcast %5 : vector<256x1xi32> to vector<256x128xi32>
    %7 = arith.cmpi eq, %4, %6 : vector<256x128xi32>
    %8 = arith.extui %7 : vector<256x128xi1> to vector<256x128xi32>
    %9 = arith.sitofp %8 : vector<256x128xi32> to vector<256x128xf32>
    %c0_4 = arith.constant 0 : index
    %c0_5 = arith.constant 0 : index
    %10 = vector.load %arg4[%c0_4, %c0_5] : memref<256x1xi32, #tpu.memory_space<vmem>>, vector<256x1xi32>
    %11 = vector.broadcast %10 : vector<256x1xi32> to vector<256x128xi32>
    %12 = arith.cmpi eq, %4, %11 : vector<256x128xi32>
    %13 = arith.extui %12 : vector<256x128xi1> to vector<256x128xi32>
    %14 = arith.sitofp %13 : vector<256x128xi32> to vector<256x128xf32>
    %cst = arith.constant dense<0.000000e+00> : vector<256x128xf32>
    %15 = tpu.matmul %9, %3, %cst {dimension_numbers = #tpu.dot_dimension_numbers<[1], [0], [0], [1], [0, 0, 1, 1], [], []>} : vector<256x128xf32>, vector<128x128xf32>, vector<256x128xf32> -> vector<256x128xf32>
    %cst_6 = arith.constant dense<0.000000e+00> : vector<256x128xf32>
    %16 = tpu.matmul %14, %3, %cst_6 {dimension_numbers = #tpu.dot_dimension_numbers<[1], [0], [0], [1], [0, 0, 1, 1], [], []>} : vector<256x128xf32>, vector<128x128xf32>, vector<256x128xf32> -> vector<256x128xf32>
    %c0_7 = arith.constant 0 : index
    %c0_8 = arith.constant 0 : index
    %17 = vector.load %arg2[%c0_7, %c0_8] : memref<256x128xf32, #tpu.memory_space<vmem>>, vector<256x128xf32>
    %18 = tpu.concatenate %17, %15, %16 in 1 : vector<256x128xf32>, vector<256x128xf32>, vector<256x128xf32> -> vector<256x384xf32>
    %c0_9 = arith.constant 0 : index
    %c0_10 = arith.constant 0 : index
    %19 = vector.load %arg7[%c0_9, %c0_10] : memref<384x384xf32, #tpu.memory_space<vmem>>, vector<384x384xf32>
    %cst_11 = arith.constant dense<0.000000e+00> : vector<256x384xf32>
    %20 = tpu.matmul %18, %19, %cst_11 {dimension_numbers = #tpu.dot_dimension_numbers<[1], [0], [0], [1], [0, 0, 1, 1], [], []>} : vector<256x384xf32>, vector<384x384xf32>, vector<256x384xf32> -> vector<256x384xf32>
    %c0_12 = arith.constant 0 : index
    %c0_13 = arith.constant 0 : index
    %21 = vector.load %arg8[%c0_12, %c0_13] : memref<1x384xf32, #tpu.memory_space<vmem>>, vector<1x384xf32>
    %22 = vector.broadcast %21 : vector<1x384xf32> to vector<256x384xf32>
    %23 = arith.addf %20, %22 : vector<256x384xf32>
    %cst_14 = arith.constant 0.000000e+00 : f32
    %24 = vector.broadcast %cst_14 : f32 to vector<256x384xf32>
    %25 = arith.maximumf %23, %24 : vector<256x384xf32>
    %c0_15 = arith.constant 0 : index
    %c0_16 = arith.constant 0 : index
    %26 = vector.load %arg6[%c0_15, %c0_16] : memref<256x1xi32, #tpu.memory_space<vmem>>, vector<256x1xi32>
    %27 = vector.extract_strided_slice %25 {offsets = [0, 0], sizes = [256, 128], strides = [1, 1]} : vector<256x384xf32> to vector<256x128xf32>
    %c1_i32 = arith.constant 1 : i32
    %28 = vector.broadcast %c1_i32 : i32 to vector<256x1xi32>
    %29 = arith.cmpi eq, %26, %28 : vector<256x1xi32>
    %30 = vector.extract_strided_slice %25 {offsets = [0, 128], sizes = [256, 128], strides = [1, 1]} : vector<256x384xf32> to vector<256x128xf32>
    %31 = vector.shape_cast %29 : vector<256x1xi1> to vector<256x1xi1>
    %32 = vector.broadcast %31 : vector<256x1xi1> to vector<256x128xi1>
    %33 = arith.select %32, %30, %27 : vector<256x128xi1>, vector<256x128xf32>
    %c2_i32 = arith.constant 2 : i32
    %34 = vector.broadcast %c2_i32 : i32 to vector<256x1xi32>
    %35 = arith.cmpi eq, %26, %34 : vector<256x1xi32>
    %36 = vector.extract_strided_slice %25 {offsets = [0, 256], sizes = [256, 128], strides = [1, 1]} : vector<256x384xf32> to vector<256x128xf32>
    %37 = vector.shape_cast %35 : vector<256x1xi1> to vector<256x1xi1>
    %38 = vector.broadcast %37 : vector<256x1xi1> to vector<256x128xi1>
    %39 = arith.select %38, %36, %33 : vector<256x128xi1>, vector<256x128xf32>
    %c0_17 = arith.constant 0 : index
    %c0_18 = arith.constant 0 : index
    %40 = vector.load %arg9[%c0_17, %c0_18] : memref<256x128xf32, #tpu.memory_space<vmem>>, vector<256x128xf32>
    tpu.vector_store %arg9[%c0_17, %c0_18], %39 {strides = array<i32>} : memref<256x128xf32, #tpu.memory_space<vmem>>, vector<256x128xf32>,
    %41 = tpu.iota {dimensions = array<i32: 0>} : vector<128x256xi32>
    %c0_19 = arith.constant 0 : index
    %c0_20 = arith.constant 0 : index
    %42 = vector.load %arg5[%c0_19, %c0_20] : memref<1x256xi32, #tpu.memory_space<vmem>>, vector<1x256xi32>
    %43 = vector.broadcast %42 : vector<1x256xi32> to vector<128x256xi32>
    %44 = arith.cmpi eq, %41, %43 : vector<128x256xi32>
    %45 = arith.extui %44 : vector<128x256xi1> to vector<128x256xi32>
    %46 = arith.sitofp %45 : vector<128x256xi32> to vector<128x256xf32>
    %c0_21 = arith.constant 0 : index
    %c0_22 = arith.constant 0 : index
    %47 = vector.load %arg10[%c0_21, %c0_22] : memref<128x128xf32, #tpu.memory_space<vmem>>, vector<128x128xf32>
    %cst_23 = arith.constant dense<0.000000e+00> : vector<128x128xf32>
    %48 = tpu.matmul %46, %39, %cst_23 {dimension_numbers = #tpu.dot_dimension_numbers<[1], [0], [0], [1], [0, 0, 1, 1], [], []>} : vector<128x256xf32>, vector<256x128xf32>, vector<128x128xf32> -> vector<128x128xf32>
    %49 = arith.addf %47, %48 : vector<128x128xf32>
    %c0_24 = arith.constant 0 : index
    %c0_25 = arith.constant 0 : index
    %50 = vector.load %arg10[%c0_24, %c0_25] : memref<128x128xf32, #tpu.memory_space<vmem>>, vector<128x128xf32>
    tpu.vector_store %arg10[%c0_24, %c0_25], %49 {strides = array<i32>} : memref<128x128xf32, #tpu.memory_space<vmem>>, vector<128x128xf32>,
    return
  }
  func.func @transform_0(%arg0: i32) -> (i32, i32) {
    %c0_i32 = arith.constant 0 : i32
    %c0_i32_0 = arith.constant 0 : i32
    %c0_i32_1 = arith.constant 0 : i32
    return %c0_i32, %c0_i32_0 : i32, i32
  }
  func.func @transform_1(%arg0: i32) -> (i32, i32) {
    %c0_i32 = arith.constant 0 : i32
    %c0_i32_0 = arith.constant 0 : i32
    return %arg0, %c0_i32 : i32, i32
  }
  func.func @transform_2(%arg0: i32) -> (i32, i32) {
    %c0_i32 = arith.constant 0 : i32
    %c0_i32_0 = arith.constant 0 : i32
    return %arg0, %c0_i32 : i32, i32
  }
  func.func @transform_3(%arg0: i32) -> (i32, i32) {
    %c0_i32 = arith.constant 0 : i32
    %c0_i32_0 = arith.constant 0 : i32
    return %arg0, %c0_i32 : i32, i32
  }
  func.func @transform_4(%arg0: i32) -> (i32, i32) {
    %c0_i32 = arith.constant 0 : i32
    %c0_i32_0 = arith.constant 0 : i32
    return %c0_i32, %arg0 : i32, i32
  }
  func.func @transform_5(%arg0: i32) -> (i32, i32) {
    %c0_i32 = arith.constant 0 : i32
    %c0_i32_0 = arith.constant 0 : i32
    return %arg0, %c0_i32 : i32, i32
  }
  func.func @transform_6(%arg0: i32) -> (i32, i32) {
    %c0_i32 = arith.constant 0 : i32
    %c0_i32_0 = arith.constant 0 : i32
    %c0_i32_1 = arith.constant 0 : i32
    return %c0_i32, %c0_i32_0 : i32, i32
  }
  func.func @transform_7(%arg0: i32) -> (i32, i32) {
    %c0_i32 = arith.constant 0 : i32
    %c0_i32_0 = arith.constant 0 : i32
    %c0_i32_1 = arith.constant 0 : i32
    return %c0_i32, %c0_i32_0 : i32, i32
  }
  func.func @transform_8(%arg0: i32) -> (i32, i32) {
    %c0_i32 = arith.constant 0 : i32
    %c0_i32_0 = arith.constant 0 : i32
    return %arg0, %c0_i32 : i32, i32
  }
  func.func @transform_9(%arg0: i32) -> (i32, i32) {
    %c0_i32 = arith.constant 0 : i32
    %c0_i32_0 = arith.constant 0 : i32
    %c0_i32_1 = arith.constant 0 : i32
    return %c0_i32, %c0_i32_0 : i32, i32
  }
}

</mosaic_0001>

<llo_original>
// kernel: tpu_custom_call.1
$region0: #{tpu_custom_call.1}
  #allocation0 [shape = 'u32[]', space=smem, size = 0x4, offset = 0x4, fixed_abs, tag = 'smem constant byte address 0x4 - core index']
  #allocation1 [shape = 'u32[144,128]{1,0:T(1,128)}', space=vmem, size = 0x12000, scoped, tag = 'internal scratch']
  %s0 = inlined_call_operand.hbm [shape: f32[128,128], index: 0, kind: input, shape index: {}]
  %s1 = inlined_call_operand.hbm [shape: f32[512,128], index: 1, kind: input, shape index: {}]
  %s2 = inlined_call_operand.hbm [shape: s32[512,1], index: 2, kind: input, shape index: {}]
  %s3 = inlined_call_operand.hbm [shape: s32[512,1], index: 3, kind: input, shape index: {}]
  %s4 = inlined_call_operand.hbm [shape: s32[1,512], index: 4, kind: input, shape index: {}]
  %s5 = inlined_call_operand.hbm [shape: s32[512,1], index: 5, kind: input, shape index: {}]
  %s6 = inlined_call_operand.hbm [shape: f32[384,384], index: 6, kind: input, shape index: {}]
  %s7 = inlined_call_operand.hbm [shape: f32[1,384], index: 7, kind: input, shape index: {}]
  %s8 = inlined_call_operand.hbm [shape: f32[512,128], index: 8, kind: output, shape index: {0}]
  %s9 = inlined_call_operand.hbm [shape: f32[128,128], index: 9, kind: output, shape index: {1}]
  %10 = xla_tuple %s8, %s9
  %s11 = sld [smem:[#allocation0]]
  $region109: #{tpu_custom_call.1} parent=0
    _
  %s13 = ssub.s32 1, %s11
  %s14 = scalar_select 0, %s13, %s11
  $region1: #{tpu_custom_call.1} parent=0
    #allocation2 [shape = 'u8[65536]{0}', space=vmem, size = 0x10000, scoped, tag = 'input window, operand 0, single buffered']
    #allocation3 [shape = 's32[2]{0}', space=sflag, size = 0x8, scoped, tag = 'scoped memory for tpu_custom_call.1']
    #allocation4 [shape = 's32[2]{0}', space=sflag, size = 0x8, scoped, tag = 'scoped memory for tpu_custom_call.1']
    #allocation5 [shape = 'u8[262144]{0}', space=vmem, size = 0x40000, scoped, tag = 'input window, operand 1']
    #allocation6 [shape = 's32[2]{0}', space=sflag, size = 0x8, scoped, tag = 'scoped memory for tpu_custom_call.1']
    #allocation7 [shape = 'u8[262144]{0}', space=vmem, size = 0x40000, scoped, tag = 'input window, operand 2']
    #allocation8 [shape = 'u8[262144]{0}', space=vmem, size = 0x40000, scoped, tag = 'input window, operand 3']
    #allocation9 [shape = 's32[2]{0}', space=sflag, size = 0x8, scoped, tag = 'scoped memory for tpu_custom_call.1']
    #allocation10 [shape = 'u8[2048]{0}', space=vmem, size = 0x800, scoped, tag = 'input window, operand 4']
    #allocation11 [shape = 'u8[262144]{0}', space=vmem, size = 0x40000, scoped, tag = 'input window, operand 5']
    #allocation12 [shape = 's32[2]{0}', space=sflag, size = 0x8, scoped, tag = 'scoped memory for tpu_custom_call.1']
    #allocation13 [shape = 'u8[589824]{0}', space=vmem, size = 0x90000, scoped, tag = 'input window, operand 6, single buffered']
    #allocation14 [shape = 'u8[1536]{0}', space=vmem, size = 0x800, scoped, tag = 'input window, operand 7, single buffered']
    #allocation15 [shape = 's32[1]{0}', space=sflag, size = 0x4, scoped, tag = 'scoped memory for tpu_custom_call.1']
    #allocation16 [shape = 'u8[262144]{0}', space=vmem, size = 0x40000, scoped, tag = 'output window, operand 0']
    #allocation17 [shape = 'u8[65536]{0}', space=vmem, size = 0x10000, scoped, tag = 'output window, operand 1, single buffered']
    #allocation18 [shape = 's32[1]{0}', space=sflag, size = 0x4, scoped, tag = 'scoped memory for tpu_custom_call.1']
    %15 = vsyncpa [#allocation3], 0
    %16 = vsyncpa [#allocation6], 0
    %s17 = scalar_lea.sflag [#allocation6], 1
    %18 = vsyncpa %s17, 0
    %19 = vsyncpa [#allocation9], 0
    %s20 = scalar_lea.sflag [#allocation9], 1
    %21 = vsyncpa %s20, 0
    %22 = vsyncpa [#allocation12], 0
    %s23 = scalar_lea.sflag [#allocation12], 1
    %24 = vsyncpa %s23, 0
    %25 = vsyncpa [#allocation15], 0
    %26 = vsyncpa [#allocation4], 0
    %s27 = scalar_lea.sflag [#allocation4], 1
    %28 = vsyncpa %s27, 0
    %29 = vsyncpa [#allocation18], 0
    loop: start=0, step=1, limit=4
    $region2: #{tpu_custom_call.1} parent=1 // loop_pre_header
      _
    $region3: #{tpu_custom_call.1} parent=1 // loop_header
      %s31 = sphi 0, %s35
      %p32 = scmp.ge.s32.totalorder %s31, 4
      %s39 = sphi 0, %s39
      %s41 = sphi 0, %s39
      %s42 = sphi 0, %s41
      %s56 = sphi 0, %s42
      %s62 = sphi 0, %s64
      %s65 = sphi 0, %s62
      %s66 = sphi 0, %s65
      %s82 = sphi 0, %s66
      %s88 = sphi 0, %s90
      %s91 = sphi 0, %s88
      %s92 = sphi 0, %s91
      %s108 = sphi 0, %s92
      %s114 = sphi 0, %s116
      %s117 = sphi 0, %s114
      %s118 = sphi 0, %s117
      %s134 = sphi 0, %s118
      %s140 = sphi 0, %s142
      %s143 = sphi 0, %s140
      %s144 = sphi 0, %s143
      %s160 = sphi 0, %s144
      %s166 = sphi 0, %s168
      %s169 = sphi 0, %s166
      %s170 = sphi 0, %s169
      %s186 = sphi 0, %s170
      %s190 = sphi 0, %s190
      %s192 = sphi 0, %s190
      %s193 = sphi 0, %s192
      %s207 = sphi 0, %s193
      %s211 = sphi 0, %s211
      %s213 = sphi 0, %s211
      %s214 = sphi 0, %s213
      %s228 = sphi 0, %s214
      %s234 = sphi 0, %s236
      %s237 = sphi 0, %s234
      %s238 = sphi 0, %s237
      %s254 = sphi 0, %s238
      %s258 = sphi 0, %s258
      %s260 = sphi 0, %s258
      %s261 = sphi 0, %s260
      %s275 = sphi 0, %s261
    $region4: #{tpu_custom_call.1} parent=1 // loop_header_branch
      %34 = sbr.rel (%p32) target = $region8
    $region5: #{tpu_custom_call.1} parent=1 // loop_body
      %s36 = ssub.s32 %s31, 1
      %s37 = ssub.s32 %s31, 2
      %s38 = sadd.s32 %s31, 1
      %s40 = sadd.s32 %s39, 1
      %p43 = scmp.eq.s32.totalorder %s31, 1
      %p44 = scmp.ne.s32.totalorder %s39, %s41
      %p45 = scmp.eq.s32.totalorder %s31, 0
      %p46 = por %p44, %p45
      %p47 = scmp.ne.s32.totalorder %s39, %s41
      %p48 = scmp.eq.s32.totalorder %s36, 1
      %p49 = por %p47, %p48
      %p50 = scmp.ne.s32.totalorder %s41, %s42
      %p51 = scmp.eq.s32.totalorder %s36, 0
      %p52 = por %p50, %p51
      %p53 = scmp.ne.s32.totalorder %s41, %s42
      %p54 = scmp.eq.s32.totalorder %s37, 1
      %p55 = por %p53, %p54
      %p57 = scmp.ne.s32.totalorder %s42, %s56
      %p58 = scmp.eq.s32.totalorder %s37, 0
      %p59 = por %p57, %p58
      %s60 = ssub.s32 %s31, %s38
      %p61 = scmp.eq.s32.totalorder %s60, 0
      %s63 = sadd.s32 %s62, 1
      %s64 = scalar_select %p61, %s62, %s63
      %p67 = pneg %p61
      %p68 = scmp.eq.s32.totalorder %s31, 1
      %p69 = por %p67, %p68
      %p70 = scmp.ne.s32.totalorder %s62, %s65
      %p71 = scmp.eq.s32.totalorder %s31, 0
      %p72 = por %p70, %p71
      %p73 = scmp.ne.s32.totalorder %s62, %s65
      %p74 = scmp.eq.s32.totalorder %s36, 1
      %p75 = por %p73, %p74
      %p76 = scmp.ne.s32.totalorder %s65, %s66
      %p77 = scmp.eq.s32.totalorder %s36, 0
      %p78 = por %p76, %p77
      %p79 = scmp.ne.s32.totalorder %s65, %s66
      %p80 = scmp.eq.s32.totalorder %s37, 1
      %p81 = por %p79, %p80
      %p83 = scmp.ne.s32.totalorder %s66, %s82
      %p84 = scmp.eq.s32.totalorder %s37, 0
      %p85 = por %p83, %p84
      %s86 = ssub.s32 %s31, %s38
      %p87 = scmp.eq.s32.totalorder %s86, 0
      %s89 = sadd.s32 %s88, 1
      %s90 = scalar_select %p87, %s88, %s89
      %p93 = pneg %p87
      %p94 = scmp.eq.s32.totalorder %s31, 1
      %p95 = por %p93, %p94
      %p96 = scmp.ne.s32.totalorder %s88, %s91
      %p97 = scmp.eq.s32.totalorder %s31, 0
      %p98 = por %p96, %p97
      %p99 = scmp.ne.s32.totalorder %s88, %s91
      %p100 = scmp.eq.s32.totalorder %s36, 1
      %p101 = por %p99, %p100
      %p102 = scmp.ne.s32.totalorder %s91, %s92
      %p103 = scmp.eq.s32.totalorder %s36, 0
      %p104 = por %p102, %p103
      %p105 = scmp.ne.s32.totalorder %s91, %s92
      %p106 = scmp.eq.s32.totalorder %s37, 1
      %p107 = por %p105, %p106
      %p109 = scmp.ne.s32.totalorder %s92, %s108
      %p110 = scmp.eq.s32.totalorder %s37, 0
      %p111 = por %p109, %p110
      %s112 = ssub.s32 %s31, %s38
      %p113 = scmp.eq.s32.totalorder %s112, 0
      %s115 = sadd.s32 %s114, 1
      %s116 = scalar_select %p113, %s114, %s115
      %p119 = pneg %p113
      %p120 = scmp.eq.s32.totalorder %s31, 1
      %p121 = por %p119, %p120
      %p122 = scmp.ne.s32.totalorder %s114, %s117
      %p123 = scmp.eq.s32.totalorder %s31, 0
      %p124 = por %p122, %p123
      %p125 = scmp.ne.s32.totalorder %s114, %s117
      %p126 = scmp.eq.s32.totalorder %s36, 1
      %p127 = por %p125, %p126
      %p128 = scmp.ne.s32.totalorder %s117, %s118
      %p129 = scmp.eq.s32.totalorder %s36, 0
      %p130 = por %p128, %p129
      %p131 = scmp.ne.s32.totalorder %s117, %s118
      %p132 = scmp.eq.s32.totalorder %s37, 1
      %p133 = por %p131, %p132
      %p135 = scmp.ne.s32.totalorder %s118, %s134
      %p136 = scmp.eq.s32.totalorder %s37, 0
      %p137 = por %p135, %p136
      %s138 = ssub.s32 %s31, %s38
      %p139 = scmp.eq.s32.totalorder %s138, 0
      %s141 = sadd.s32 %s140, 1
      %s142 = scalar_select %p139, %s140, %s141
      %p145 = pneg %p139
      %p146 = scmp.eq.s32.totalorder %s31, 1
      %p147 = por %p145, %p146
      %p148 = scmp.ne.s32.totalorder %s140, %s143
      %p149 = scmp.eq.s32.totalorder %s31, 0
      %p150 = por %p148, %p149
      %p151 = scmp.ne.s32.totalorder %s140, %s143
      %p152 = scmp.eq.s32.totalorder %s36, 1
      %p153 = por %p151, %p152
      %p154 = scmp.ne.s32.totalorder %s143, %s144
      %p155 = scmp.eq.s32.totalorder %s36, 0
      %p156 = por %p154, %p155
      %p157 = scmp.ne.s32.totalorder %s143, %s144
      %p158 = scmp.eq.s32.totalorder %s37, 1
      %p159 = por %p157, %p158
      %p161 = scmp.ne.s32.totalorder %s144, %s160
      %p162 = scmp.eq.s32.totalorder %s37, 0
      %p163 = por %p161, %p162
      %s164 = ssub.s32 %s31, %s38
      %p165 = scmp.eq.s32.totalorder %s164, 0
      %s167 = sadd.s32 %s166, 1
      %s168 = scalar_select %p165, %s166, %s167
      %p171 = pneg %p165
      %p172 = scmp.eq.s32.totalorder %s31, 1
      %p173 = por %p171, %p172
      %p174 = scmp.ne.s32.totalorder %s166, %s169
      %p175 = scmp.eq.s32.totalorder %s31, 0
      %p176 = por %p174, %p175
      %p177 = scmp.ne.s32.totalorder %s166, %s169
      %p178 = scmp.eq.s32.totalorder %s36, 1
      %p179 = por %p177, %p178
      %p180 = scmp.ne.s32.totalorder %s169, %s170
      %p181 = scmp.eq.s32.totalorder %s36, 0
      %p182 = por %p180, %p181
      %p183 = scmp.ne.s32.totalorder %s169, %s170
      %p184 = scmp.eq.s32.totalorder %s37, 1
      %p185 = por %p183, %p184
      %p187 = scmp.ne.s32.totalorder %s170, %s186
      %p188 = scmp.eq.s32.totalorder %s37, 0
      %p189 = por %p187, %p188
      %s191 = sadd.s32 %s190, 1
      %p194 = scmp.eq.s32.totalorder %s31, 1
      %p195 = scmp.ne.s32.totalorder %s190, %s192
      %p196 = scmp.eq.s32.totalorder %s31, 0
      %p197 = por %p195, %p196
      %p198 = scmp.ne.s32.totalorder %s190, %s192
      %p199 = scmp.eq.s32.totalorder %s36, 1
      %p200 = por %p198, %p199
      %p201 = scmp.ne.s32.totalorder %s192, %s193
      %p202 = scmp.eq.s32.totalorder %s36, 0
      %p203 = por %p201, %p202
      %p204 = scmp.ne.s32.totalorder %s192, %s193
      %p205 = scmp.eq.s32.totalorder %s37, 1
      %p206 = por %p204, %p205
      %p208 = scmp.ne.s32.totalorder %s193, %s207
      %p209 = scmp.eq.s32.totalorder %s37, 0
      %p210 = por %p208, %p209
      %s212 = sadd.s32 %s211, 1
      %p215 = scmp.eq.s32.totalorder %s31, 1
      %p216 = scmp.ne.s32.totalorder %s211, %s213
      %p217 = scmp.eq.s32.totalorder %s31, 0
      %p218 = por %p216, %p217
      %p219 = scmp.ne.s32.totalorder %s211, %s213
      %p220 = scmp.eq.s32.totalorder %s36, 1
      %p221 = por %p219, %p220
      %p222 = scmp.ne.s32.totalorder %s213, %s214
      %p223 = scmp.eq.s32.totalorder %s36, 0
      %p224 = por %p222, %p223
      %p225 = scmp.ne.s32.totalorder %s213, %s214
      %p226 = scmp.eq.s32.totalorder %s37, 1
      %p227 = por %p225, %p226
      %p229 = scmp.ne.s32.totalorder %s214, %s228
      %p230 = scmp.eq.s32.totalorder %s37, 0
      %p231 = por %p229, %p230
      %s232 = ssub.s32 %s31, %s38
      %p233 = scmp.eq.s32.totalorder %s232, 0
      %s235 = sadd.s32 %s234, 1
      %s236 = scalar_select %p233, %s234, %s235
      %p239 = pneg %p233
      %p240 = scmp.eq.s32.totalorder %s31, 1
      %p241 = por %p239, %p240
      %p242 = scmp.ne.s32.totalorder %s234, %s237
      %p243 = scmp.eq.s32.totalorder %s31, 0
      %p244 = por %p242, %p243
      %p245 = scmp.ne.s32.totalorder %s234, %s237
      %p246 = scmp.eq.s32.totalorder %s36, 1
      %p247 = por %p245, %p246
      %p248 = scmp.ne.s32.totalorder %s237, %s238
      %p249 = scmp.eq.s32.totalorder %s36, 0
      %p250 = por %p248, %p249
      %p251 = scmp.ne.s32.totalorder %s237, %s238
      %p252 = scmp.eq.s32.totalorder %s37, 1
      %p253 = por %p251, %p252
      %p255 = scmp.ne.s32.totalorder %s238, %s254
      %p256 = scmp.eq.s32.totalorder %s37, 0
      %p257 = por %p255, %p256
      %s259 = sadd.s32 %s258, 1
      %p262 = scmp.eq.s32.totalorder %s31, 1
      %p263 = scmp.ne.s32.totalorder %s258, %s260
      %p264 = scmp.eq.s32.totalorder %s31, 0
      %p265 = por %p263, %p264
      %p266 = scmp.ne.s32.totalorder %s258, %s260
      %p267 = scmp.eq.s32.totalorder %s36, 1
      %p268 = por %p266, %p267
      %p269 = scmp.ne.s32.totalorder %s260, %s261
      %p270 = scmp.eq.s32.totalorder %s36, 0
      %p271 = por %p269, %p270
      %p272 = scmp.ne.s32.totalorder %s260, %s261
      %p273 = scmp.eq.s32.totalorder %s37, 1
      %p274 = por %p272, %p273
      %p276 = scmp.ne.s32.totalorder %s261, %s275
      %p277 = scmp.eq.s32.totalorder %s37, 0
      %p278 = por %p276, %p277
      %p279 = scmp.le.s32.totalorder 1, %s31
      %p280 = scmp.lt.s32.totalorder %s31, 3
      %p281 = pnand %p279, %p280
      %p282 = pneg %p281
      // Predicated region
      $region9: #{tpu_custom_call.1} parent=5 // pred_check
        _
      $region10: #{tpu_custom_call.1} parent=5 // pred_check_branch
        %284 = sbr.rel (%p281) target = $region12
      $region11: #{tpu_custom_call.1} parent=5 // pred_region
        %s285 = ssub.s32 %s31, 1
        // Predicated region
        $region13: #{tpu_custom_call.1} parent=11 // pred_check
          %p286 = pneg %p52
        $region14: #{tpu_custom_call.1} parent=11 // pred_check_branch
          %288 = sbr.rel (%p286) target = $region16
        $region15: #{tpu_custom_call.1} parent=11 // pred_region
          %s290 = ssub.s32 2048, 2048
          %291 = vsyncadd [#allocation3], %s290
          %s292 = sshll.u32 [#allocation2], 4
          %s293 = int_to_ptr.vmem [resolvable:$true] %s292
          %298 = dma.hbm_to_vmem [thread:$0]  %s0, 2048, %s293, [#allocation3], 128, 128, 8
        $region16: #{tpu_custom_call.1} parent=11 // pred_fallthru
          _
        // Predicated region
        $region17: #{tpu_custom_call.1} parent=11 // pred_check
          %p299 = pneg %p203
        $region18: #{tpu_custom_call.1} parent=11 // pred_check_branch
          %301 = sbr.rel (%p299) target = $region20
        $region19: #{tpu_custom_call.1} parent=11 // pred_region
          %s303 = ssub.s32 18432, 18432
          %304 = vsyncadd [#allocation12], %s303
          %s305 = sshll.u32 [#allocation13], 4
          %s306 = int_to_ptr.vmem [resolvable:$true] %s305
          %311 = dma.hbm_to_vmem [thread:$0]  %s6, 18432, %s306, [#allocation12], 384, 384, 24
        $region20: #{tpu_custom_call.1} parent=11 // pred_fallthru
          _
        // Predicated region
        $region21: #{tpu_custom_call.1} parent=11 // pred_check
          %p312 = pneg %p224
        $region22: #{tpu_custom_call.1} parent=11 // pred_check_branch
          %314 = sbr.rel (%p312) target = $region24
        $region23: #{tpu_custom_call.1} parent=11 // pred_region
          %s316 = ssub.s32 48, 48
          %317 = vsyncadd [#allocation15], %s316
          %s319 = sshll.u32 [#allocation14], 4
          %s320 = int_to_ptr.vmem [resolvable:$true] %s319
          %322 = dma.hbm_to_vmem [thread:$0]  %s7, 48, %s320, [#allocation15]
        $region24: #{tpu_custom_call.1} parent=11 // pred_fallthru
          _
      $region12: #{tpu_custom_call.1} parent=5 // pred_fallthru
        _
      %p323 = scmp.lt.s32.totalorder %s31, 2
      // Predicated region
      $region25: #{tpu_custom_call.1} parent=5 // pred_check
        %p324 = pneg %p323
      $region26: #{tpu_custom_call.1} parent=5 // pred_check_branch
        %326 = sbr.rel (%p324) target = $region28
      $region27: #{tpu_custom_call.1} parent=5 // pred_region
        // Predicated region
        $region29: #{tpu_custom_call.1} parent=27 // pred_check
          %p327 = pneg %p72
        $region30: #{tpu_custom_call.1} parent=27 // pred_check_branch
          %329 = sbr.rel (%p327) target = $region32
        $region31: #{tpu_custom_call.1} parent=27 // pred_region
          %s330 = sand.u32 %s31, 1
          %s331 = scalar_lea.sflag [#allocation6], %s330
          %s332 = sand.u32 %s62, 1
          %s333 = smul.addr %s332, 256
          %s334 = scalar_lea.vmem [#allocation5], %s333
          %s335 = smul.u32 32, %s31
          %s337 = ssub.s32 4096, 4096
          %338 = vsyncadd %s331, %s337
          %s339 = smul.addr %s335, 128
          %s340 = scalar_lea.hbm %s1, %s339
          %s341 = sshll.u32 %s334, 4
          %s342 = int_to_ptr.vmem [resolvable:$true] %s341
          %347 = dma.hbm_to_vmem [thread:$0]  %s340, 4096, %s342, %s331, 128, 128, 8
        $region32: #{tpu_custom_call.1} parent=27 // pred_fallthru
          _
        // Predicated region
        $region33: #{tpu_custom_call.1} parent=27 // pred_check
          %p348 = pneg %p98
        $region34: #{tpu_custom_call.1} parent=27 // pred_check_branch
          %350 = sbr.rel (%p348) target = $region36
        $region35: #{tpu_custom_call.1} parent=27 // pred_region
          %s351 = sand.u32 %s31, 1
          %s352 = scalar_lea.sflag [#allocation6], %s351
          %s353 = sand.u32 %s88, 1
          %s354 = smul.addr %s353, 256
          %s355 = scalar_lea.vmem [#allocation7], %s354
          %s356 = smul.u32 32, %s31
          %s358 = ssub.s32 4096, 4096
          %359 = vsyncadd %s352, %s358
          %s360 = smul.addr %s356, 128
          %s361 = scalar_lea.hbm %s2, %s360
          %s362 = sshll.u32 %s355, 4
          %s363 = int_to_ptr.vmem [resolvable:$true] %s362
          %368 = dma.hbm_to_vmem [thread:$0]  %s361, 4096, %s363, %s352, 128, 128, 8
        $region36: #{tpu_custom_call.1} parent=27 // pred_fallthru
          _
        // Predicated region
        $region37: #{tpu_custom_call.1} parent=27 // pred_check
          %p369 = pneg %p124
        $region38: #{tpu_custom_call.1} parent=27 // pred_check_branch
          %371 = sbr.rel (%p369) target = $region40
        $region39: #{tpu_custom_call.1} parent=27 // pred_region
          %s372 = sand.u32 %s31, 1
          %s373 = scalar_lea.sflag [#allocation9], %s372
          %s374 = sand.u32 %s114, 1
          %s375 = smul.addr %s374, 256
          %s376 = scalar_lea.vmem [#allocation8], %s375
          %s377 = smul.u32 32, %s31
          %s379 = ssub.s32 4096, 4096
          %380 = vsyncadd %s373, %s379
          %s381 = smul.addr %s377, 128
          %s382 = scalar_lea.hbm %s3, %s381
          %s383 = sshll.u32 %s376, 4
          %s384 = int_to_ptr.vmem [resolvable:$true] %s383
          %389 = dma.hbm_to_vmem [thread:$0]  %s382, 4096, %s384, %s373, 128, 128, 8
        $region40: #{tpu_custom_call.1} parent=27 // pred_fallthru
          _
        // Predicated region
        $region41: #{tpu_custom_call.1} parent=27 // pred_check
          %p390 = pneg %p150
        $region42: #{tpu_custom_call.1} parent=27 // pred_check_branch
          %392 = sbr.rel (%p390) target = $region44
        $region43: #{tpu_custom_call.1} parent=27 // pred_region
          %s393 = sand.u32 %s31, 1
          %s394 = scalar_lea.sflag [#allocation9], %s393
          %s395 = sand.u32 %s140, 1
          %s396 = smul.addr %s395, 2
          %s397 = scalar_lea.vmem [#allocation10], %s396
          %s398 = smul.u32 2, %s31
          %s400 = ssub.s32 32, 32
          %401 = vsyncadd %s394, %s400
          %s402 = smul.addr %s398, 16
          %s403 = scalar_lea.hbm %s4, %s402
          %s405 = sshll.u32 %s397, 4
          %s406 = int_to_ptr.vmem [resolvable:$true] %s405
          %408 = dma.hbm_to_vmem [thread:$0]  %s403, 32, %s406, %s394
        $region44: #{tpu_custom_call.1} parent=27 // pred_fallthru
          _
        // Predicated region
        $region45: #{tpu_custom_call.1} parent=27 // pred_check
          %p409 = pneg %p176
        $region46: #{tpu_custom_call.1} parent=27 // pred_check_branch
          %411 = sbr.rel (%p409) target = $region48
        $region47: #{tpu_custom_call.1} parent=27 // pred_region
          %s412 = sand.u32 %s31, 1
          %s413 = scalar_lea.sflag [#allocation12], %s412
          %s414 = sand.u32 %s166, 1
          %s415 = smul.addr %s414, 256
          %s416 = scalar_lea.vmem [#allocation11], %s415
          %s417 = smul.u32 32, %s31
          %s419 = ssub.s32 4096, 4096
          %420 = vsyncadd %s413, %s419
          %s421 = smul.addr %s417, 128
          %s422 = scalar_lea.hbm %s5, %s421
          %s423 = sshll.u32 %s416, 4
          %s424 = int_to_ptr.vmem [resolvable:$true] %s423
          %429 = dma.hbm_to_vmem [thread:$0]  %s422, 4096, %s424, %s413, 128, 128, 8
        $region48: #{tpu_custom_call.1} parent=27 // pred_fallthru
          _
      $region28: #{tpu_custom_call.1} parent=5 // pred_fallthru
        _
      %p430 = scmp.le.s32.totalorder 1, %s31
      %p431 = scmp.lt.s32.totalorder %s31, 3
      %p432 = pnand %p430, %p431
      %p433 = pneg %p432
      // Predicated region
      $region49: #{tpu_custom_call.1} parent=5 // pred_check
        _
      $region50: #{tpu_custom_call.1} parent=5 // pred_check_branch
        %435 = sbr.rel (%p432) target = $region52
      $region51: #{tpu_custom_call.1} parent=5 // pred_region
        %s436 = ssub.s32 %s31, 1
        // Predicated region
        $region53: #{tpu_custom_call.1} parent=51 // pred_check
          %p437 = pneg %p52
        $region54: #{tpu_custom_call.1} parent=51 // pred_check_branch
          %439 = sbr.rel (%p437) target = $region56
        $region55: #{tpu_custom_call.1} parent=51 // pred_region
          %440 = dma.done [#allocation3], 2048
        $region56: #{tpu_custom_call.1} parent=51 // pred_fallthru
          _
        %s441 = sand.u32 %s36, 1
        %s442 = scalar_lea.sflag [#allocation6], %s441
        %s443 = sand.u32 %s65, 1
        %s444 = smul.addr %s443, 256
        %s445 = scalar_lea.vmem [#allocation5], %s444
        // Predicated region
        $region57: #{tpu_custom_call.1} parent=51 // pred_check
          %p446 = pneg %p78
        $region58: #{tpu_custom_call.1} parent=51 // pred_check_branch
          %448 = sbr.rel (%p446) target = $region60
        $region59: #{tpu_custom_call.1} parent=51 // pred_region
          %449 = dma.done %s442, 4096
        $region60: #{tpu_custom_call.1} parent=51 // pred_fallthru
          _
        %s450 = sand.u32 %s36, 1
        %s451 = scalar_lea.sflag [#allocation6], %s450
        %s452 = sand.u32 %s91, 1
        %s453 = smul.addr %s452, 256
        %s454 = scalar_lea.vmem [#allocation7], %s453
        // Predicated region
        $region61: #{tpu_custom_call.1} parent=51 // pred_check
          %p455 = pneg %p104
        $region62: #{tpu_custom_call.1} parent=51 // pred_check_branch
          %457 = sbr.rel (%p455) target = $region64
        $region63: #{tpu_custom_call.1} parent=51 // pred_region
          %458 = dma.done %s451, 4096
        $region64: #{tpu_custom_call.1} parent=51 // pred_fallthru
          _
        %s459 = sand.u32 %s36, 1
        %s460 = scalar_lea.sflag [#allocation9], %s459
        %s461 = sand.u32 %s117, 1
        %s462 = smul.addr %s461, 256
        %s463 = scalar_lea.vmem [#allocation8], %s462
        // Predicated region
        $region65: #{tpu_custom_call.1} parent=51 // pred_check
          %p464 = pneg %p130
        $region66: #{tpu_custom_call.1} parent=51 // pred_check_branch
          %466 = sbr.rel (%p464) target = $region68
        $region67: #{tpu_custom_call.1} parent=51 // pred_region
          %467 = dma.done %s460, 4096
        $region68: #{tpu_custom_call.1} parent=51 // pred_fallthru
          _
        %s468 = sand.u32 %s36, 1
        %s469 = scalar_lea.sflag [#allocation9], %s468
        %s470 = sand.u32 %s143, 1
        %s471 = smul.addr %s470, 2
        %s472 = scalar_lea.vmem [#allocation10], %s471
        // Predicated region
        $region69: #{tpu_custom_call.1} parent=51 // pred_check
          %p473 = pneg %p156
        $region70: #{tpu_custom_call.1} parent=51 // pred_check_branch
          %475 = sbr.rel (%p473) target = $region72
        $region71: #{tpu_custom_call.1} parent=51 // pred_region
          %476 = dma.done %s469, 32
        $region72: #{tpu_custom_call.1} parent=51 // pred_fallthru
          _
        %s477 = sand.u32 %s36, 1
        %s478 = scalar_lea.sflag [#allocation12], %s477
        %s479 = sand.u32 %s169, 1
        %s480 = smul.addr %s479, 256
        %s481 = scalar_lea.vmem [#allocation11], %s480
        // Predicated region
        $region73: #{tpu_custom_call.1} parent=51 // pred_check
          %p482 = pneg %p182
        $region74: #{tpu_custom_call.1} parent=51 // pred_check_branch
          %484 = sbr.rel (%p482) target = $region76
        $region75: #{tpu_custom_call.1} parent=51 // pred_region
          %485 = dma.done %s478, 4096
        $region76: #{tpu_custom_call.1} parent=51 // pred_fallthru
          _
        // Predicated region
        $region77: #{tpu_custom_call.1} parent=51 // pred_check
          %p486 = pneg %p203
        $region78: #{tpu_custom_call.1} parent=51 // pred_check_branch
          %488 = sbr.rel (%p486) target = $region80
        $region79: #{tpu_custom_call.1} parent=51 // pred_region
          %489 = dma.done [#allocation12], 18432
        $region80: #{tpu_custom_call.1} parent=51 // pred_fallthru
          _
        // Predicated region
        $region81: #{tpu_custom_call.1} parent=51 // pred_check
          %p490 = pneg %p224
        $region82: #{tpu_custom_call.1} parent=51 // pred_check_branch
          %492 = sbr.rel (%p490) target = $region84
        $region83: #{tpu_custom_call.1} parent=51 // pred_region
          %493 = dma.done [#allocation15], 48
        $region84: #{tpu_custom_call.1} parent=51 // pred_fallthru
          _
        %p494 = pneg %p52
        %p495 = pneg %p49
        %s496 = sand.u32 %s36, 1
        %s497 = scalar_lea.sflag [#allocation6], %s496
        %s498 = sand.u32 %s65, 1
        %s499 = smul.addr %s498, 256
        %s500 = scalar_lea.vmem [#allocation5], %s499
        %p501 = pneg %p78
        %p502 = pneg %p75
        %s503 = sand.u32 %s36, 1
        %s504 = scalar_lea.sflag [#allocation6], %s503
        %s505 = sand.u32 %s91, 1
        %s506 = smul.addr %s505, 256
        %s507 = scalar_lea.vmem [#allocation7], %s506
        %p508 = pneg %p104
        %p509 = pneg %p101
        %s510 = sand.u32 %s36, 1
        %s511 = scalar_lea.sflag [#allocation9], %s510
        %s512 = sand.u32 %s117, 1
        %s513 = smul.addr %s512, 256
        %s514 = scalar_lea.vmem [#allocation8], %s513
        %p515 = pneg %p130
        %p516 = pneg %p127
        %s517 = sand.u32 %s36, 1
        %s518 = scalar_lea.sflag [#allocation9], %s517
        %s519 = sand.u32 %s143, 1
        %s520 = smul.addr %s519, 2
        %s521 = scalar_lea.vmem [#allocation10], %s520
        %p522 = pneg %p156
        %p523 = pneg %p153
        %s524 = sand.u32 %s36, 1
        %s525 = scalar_lea.sflag [#allocation12], %s524
        %s526 = sand.u32 %s169, 1
        %s527 = smul.addr %s526, 256
        %s528 = scalar_lea.vmem [#allocation11], %s527
        %p529 = pneg %p182
        %p530 = pneg %p179
        %p531 = pneg %p203
        %p532 = pneg %p200
        %p533 = pneg %p224
        %p534 = pneg %p221
        %p535 = pneg %p250
        %p536 = pneg %p247
        %s537 = sand.u32 %s237, 1
        %s538 = scalar_lea.sflag [#allocation4], %s537
        %s539 = sand.u32 %s237, 1
        %s540 = smul.addr %s539, 256
        %s541 = scalar_lea.vmem [#allocation16], %s540
        %p542 = pneg %p271
        %p543 = pneg %p268
        %s544 = smul.u32 32, %s36
        %s545 = smul.u32 32, %s36
        %s546 = smul.u32 32, %s36
        %s547 = smul.u32 2, %s36
        %s548 = smul.u32 32, %s36
        %s549 = smul.u32 32, %s36
        %p550 = scmp.eq.s32.totalorder %s36, 0
        // Predicated region
        $region85: #{tpu_custom_call.1} parent=51 // pred_check
          %p551 = pneg %p550
        $region86: #{tpu_custom_call.1} parent=51 // pred_check_branch
          %553 = sbr.rel (%p551) target = $region88
        $region87: #{tpu_custom_call.1} parent=51 // pred_region
          %554 = vst [vmem:[#allocation17] sm:$0xff] 0.0
          %555 = vst [vmem:[#allocation17 + $0x8] sm:$0xff] 0.0
          %556 = vst [vmem:[#allocation17 + $0x10] sm:$0xff] 0.0
          %557 = vst [vmem:[#allocation17 + $0x18] sm:$0xff] 0.0
          %558 = vst [vmem:[#allocation17 + $0x20] sm:$0xff] 0.0
          %559 = vst [vmem:[#allocation17 + $0x28] sm:$0xff] 0.0
          %560 = vst [vmem:[#allocation17 + $0x30] sm:$0xff] 0.0
          %561 = vst [vmem:[#allocation17 + $0x38] sm:$0xff] 0.0
          %562 = vst [vmem:[#allocation17 + $0x40] sm:$0xff] 0.0
          %563 = vst [vmem:[#allocation17 + $0x48] sm:$0xff] 0.0
          %564 = vst [vmem:[#allocation17 + $0x50] sm:$0xff] 0.0
          %565 = vst [vmem:[#allocation17 + $0x58] sm:$0xff] 0.0
          %566 = vst [vmem:[#allocation17 + $0x60] sm:$0xff] 0.0
          %567 = vst [vmem:[#allocation17 + $0x68] sm:$0xff] 0.0
          %568 = vst [vmem:[#allocation17 + $0x70] sm:$0xff] 0.0
          %569 = vst [vmem:[#allocation17 + $0x78] sm:$0xff] 0.0
        $region88: #{tpu_custom_call.1} parent=51 // pred_fallthru
          _
        %v570 = vld [vmem:[#allocation2] sm:$0xff]
        %v571 = vld [vmem:[#allocation2 + $0x8] sm:$0xff]
        %v572 = vld [vmem:[#allocation2 + $0x10] sm:$0xff]
        %v573 = vld [vmem:[#allocation2 + $0x18] sm:$0xff]
        %v574 = vld [vmem:[#allocation2 + $0x20] sm:$0xff]
        %v575 = vld [vmem:[#allocation2 + $0x28] sm:$0xff]
        %v576 = vld [vmem:[#allocation2 + $0x30] sm:$0xff]
        %v577 = vld [vmem:[#allocation2 + $0x38] sm:$0xff]
        %v578 = vld [vmem:[#allocation2 + $0x40] sm:$0xff]
        %v579 = vld [vmem:[#allocation2 + $0x48] sm:$0xff]
        %v580 = vld [vmem:[#allocation2 + $0x50] sm:$0xff]
        %v581 = vld [vmem:[#allocation2 + $0x58] sm:$0xff]
        %v582 = vld [vmem:[#allocation2 + $0x60] sm:$0xff]
        %v583 = vld [vmem:[#allocation2 + $0x68] sm:$0xff]
        %v584 = vld [vmem:[#allocation2 + $0x70] sm:$0xff]
        %v585 = vld [vmem:[#allocation2 + $0x78] sm:$0xff]
        %v586 = vlaneseq
        %v587 = vand.u32 %v586, 127
        %v588 = vld [vmem:[%s454] sm:$0xff]
        %v589 = vld [vmem:[%s454 + $0x8] sm:$0xff]
        %v590 = vld [vmem:[%s454 + $0x10] sm:$0xff]
        %v591 = vld [vmem:[%s454 + $0x18] sm:$0xff]
        %v592 = vld [vmem:[%s454 + $0x20] sm:$0xff]
        %v593 = vld [vmem:[%s454 + $0x28] sm:$0xff]
        %v594 = vld [vmem:[%s454 + $0x30] sm:$0xff]
        %v595 = vld [vmem:[%s454 + $0x38] sm:$0xff]
        %v596 = vld [vmem:[%s454 + $0x40] sm:$0xff]
        %v597 = vld [vmem:[%s454 + $0x48] sm:$0xff]
        %v598 = vld [vmem:[%s454 + $0x50] sm:$0xff]
        %v599 = vld [vmem:[%s454 + $0x58] sm:$0xff]
        %v600 = vld [vmem:[%s454 + $0x60] sm:$0xff]
        %v601 = vld [vmem:[%s454 + $0x68] sm:$0xff]
        %v602 = vld [vmem:[%s454 + $0x70] sm:$0xff]
        %v603 = vld [vmem:[%s454 + $0x78] sm:$0xff]
        %v604 = vld [vmem:[%s454 + $0x80] sm:$0xff]
        %v605 = vld [vmem:[%s454 + $0x88] sm:$0xff]
        %v606 = vld [vmem:[%s454 + $0x90] sm:$0xff]
        %v607 = vld [vmem:[%s454 + $0x98] sm:$0xff]
        %v608 = vld [vmem:[%s454 + $0xa0] sm:$0xff]
        %v609 = vld [vmem:[%s454 + $0xa8] sm:$0xff]
        %v610 = vld [vmem:[%s454 + $0xb0] sm:$0xff]
        %v611 = vld [vmem:[%s454 + $0xb8] sm:$0xff]
        %v612 = vld [vmem:[%s454 + $0xc0] sm:$0xff]
        %v613 = vld [vmem:[%s454 + $0xc8] sm:$0xff]
        %v614 = vld [vmem:[%s454 + $0xd0] sm:$0xff]
        %v615 = vld [vmem:[%s454 + $0xd8] sm:$0xff]
        %v616 = vld [vmem:[%s454 + $0xe0] sm:$0xff]
        %v617 = vld [vmem:[%s454 + $0xe8] sm:$0xff]
        %v618 = vld [vmem:[%s454 + $0xf0] sm:$0xff]
        %v619 = vld [vmem:[%s454 + $0xf8] sm:$0xff]
        %620 = vset.pattern.permute.xlu0 0
        %621 = vperm.xlu0 %620, %v588
        %v622 = vpop.permute.xlu0 %621
        %623 = vset.pattern.permute.xlu0 0
        %624 = vperm.xlu0 %623, %v589
        %v625 = vpop.permute.xlu0 %624
        %626 = vset.pattern.permute.xlu0 0
        %627 = vperm.xlu0 %626, %v590
        %v628 = vpop.permute.xlu0 %627
        %629 = vset.pattern.permute.xlu0 0
        %630 = vperm.xlu0 %629, %v591
        %v631 = vpop.permute.xlu0 %630
        %632 = vset.pattern.permute.xlu0 0
        %633 = vperm.xlu0 %632, %v592
        %v634 = vpop.permute.xlu0 %633
        %635 = vset.pattern.permute.xlu0 0
        %636 = vperm.xlu0 %635, %v593
        %v637 = vpop.permute.xlu0 %636
        %638 = vset.pattern.permute.xlu0 0
        %639 = vperm.xlu0 %638, %v594
        %v640 = vpop.permute.xlu0 %639
        %641 = vset.pattern.permute.xlu0 0
        %642 = vperm.xlu0 %641, %v595
        %v643 = vpop.permute.xlu0 %642
        %644 = vset.pattern.permute.xlu0 0
        %645 = vperm.xlu0 %644, %v596
        %v646 = vpop.permute.xlu0 %645
        %647 = vset.pattern.permute.xlu0 0
        %648 = vperm.xlu0 %647, %v597
        %v649 = vpop.permute.xlu0 %648
        %650 = vset.pattern.permute.xlu0 0
        %651 = vperm.xlu0 %650, %v598
        %v652 = vpop.permute.xlu0 %651
        %653 = vset.pattern.permute.xlu0 0
        %654 = vperm.xlu0 %653, %v599
        %v655 = vpop.permute.xlu0 %654
        %656 = vset.pattern.permute.xlu0 0
        %657 = vperm.xlu0 %656, %v600
        %v658 = vpop.permute.xlu0 %657
        %659 = vset.pattern.permute.xlu0 0
        %660 = vperm.xlu0 %659, %v601
        %v661 = vpop.permute.xlu0 %660
        %662 = vset.pattern.permute.xlu0 0
        %663 = vperm.xlu0 %662, %v602
        %v664 = vpop.permute.xlu0 %663
        %665 = vset.pattern.permute.xlu0 0
        %666 = vperm.xlu0 %665, %v603
        %v667 = vpop.permute.xlu0 %666
        %668 = vset.pattern.permute.xlu0 0
        %669 = vperm.xlu0 %668, %v604
        %v670 = vpop.permute.xlu0 %669
        %671 = vset.pattern.permute.xlu0 0
        %672 = vperm.xlu0 %671, %v605
        %v673 = vpop.permute.xlu0 %672
        %674 = vset.pattern.permute.xlu0 0
        %675 = vperm.xlu0 %674, %v606
        %v676 = vpop.permute.xlu0 %675
        %677 = vset.pattern.permute.xlu0 0
        %678 = vperm.xlu0 %677, %v607
        %v679 = vpop.permute.xlu0 %678
        %680 = vset.pattern.permute.xlu0 0
        %681 = vperm.xlu0 %680, %v608
        %v682 = vpop.permute.xlu0 %681
        %683 = vset.pattern.permute.xlu0 0
        %684 = vperm.xlu0 %683, %v609
        %v685 = vpop.permute.xlu0 %684
        %686 = vset.pattern.permute.xlu0 0
        %687 = vperm.xlu0 %686, %v610
        %v688 = vpop.permute.xlu0 %687
        %689 = vset.pattern.permute.xlu0 0
        %690 = vperm.xlu0 %689, %v611
        %v691 = vpop.permute.xlu0 %690
        %692 = vset.pattern.permute.xlu0 0
        %693 = vperm.xlu0 %692, %v612
        %v694 = vpop.permute.xlu0 %693
        %695 = vset.pattern.permute.xlu0 0
        %696 = vperm.xlu0 %695, %v613
        %v697 = vpop.permute.xlu0 %696
        %698 = vset.pattern.permute.xlu0 0
        %699 = vperm.xlu0 %698, %v614
        %v700 = vpop.permute.xlu0 %699
        %701 = vset.pattern.permute.xlu0 0
        %702 = vperm.xlu0 %701, %v615
        %v703 = vpop.permute.xlu0 %702
        %704 = vset.pattern.permute.xlu0 0
        %705 = vperm.xlu0 %704, %v616
        %v706 = vpop.permute.xlu0 %705
        %707 = vset.pattern.permute.xlu0 0
        %708 = vperm.xlu0 %707, %v617
        %v709 = vpop.permute.xlu0 %708
        %710 = vset.pattern.permute.xlu0 0
        %711 = vperm.xlu0 %710, %v618
        %v712 = vpop.permute.xlu0 %711
        %713 = vset.pattern.permute.xlu0 0
        %714 = vperm.xlu0 %713, %v619
        %v715 = vpop.permute.xlu0 %714
        %vm716 = vcmp.eq.s32.totalorder %v587, %v622
        %vm717 = vcmp.eq.s32.totalorder %v587, %v625
        %vm718 = vcmp.eq.s32.totalorder %v587, %v628
        %vm719 = vcmp.eq.s32.totalorder %v587, %v631
        %vm720 = vcmp.eq.s32.totalorder %v587, %v634
        %vm721 = vcmp.eq.s32.totalorder %v587, %v637
        %vm722 = vcmp.eq.s32.totalorder %v587, %v640
        %vm723 = vcmp.eq.s32.totalorder %v587, %v643
        %vm724 = vcmp.eq.s32.totalorder %v587, %v646
        %vm725 = vcmp.eq.s32.totalorder %v587, %v649
        %vm726 = vcmp.eq.s32.totalorder %v587, %v652
        %vm727 = vcmp.eq.s32.totalorder %v587, %v655
        %vm728 = vcmp.eq.s32.totalorder %v587, %v658
        %vm729 = vcmp.eq.s32.totalorder %v587, %v661
        %vm730 = vcmp.eq.s32.totalorder %v587, %v664
        %vm731 = vcmp.eq.s32.totalorder %v587, %v667
        %vm732 = vcmp.eq.s32.totalorder %v587, %v670
        %vm733 = vcmp.eq.s32.totalorder %v587, %v673
        %vm734 = vcmp.eq.s32.totalorder %v587, %v676
        %vm735 = vcmp.eq.s32.totalorder %v587, %v679
        %vm736 = vcmp.eq.s32.totalorder %v587, %v682
        %vm737 = vcmp.eq.s32.totalorder %v587, %v685
        %vm738 = vcmp.eq.s32.totalorder %v587, %v688
        %vm739 = vcmp.eq.s32.totalorder %v587, %v691
        %vm740 = vcmp.eq.s32.totalorder %v587, %v694
        %vm741 = vcmp.eq.s32.totalorder %v587, %v697
        %vm742 = vcmp.eq.s32.totalorder %v587, %v700
        %vm743 = vcmp.eq.s32.totalorder %v587, %v703
        %vm744 = vcmp.eq.s32.totalorder %v587, %v706
        %vm745 = vcmp.eq.s32.totalorder %v587, %v709
        %vm746 = vcmp.eq.s32.totalorder %v587, %v712
        %vm747 = vcmp.eq.s32.totalorder %v587, %v715
        %v748 = vsel %vm716, 1, 0
        %v749 = vsel %vm717, 1, 0
        %v750 = vsel %vm718, 1, 0
        %v751 = vsel %vm719, 1, 0
        %v752 = vsel %vm720, 1, 0
        %v753 = vsel %vm721, 1, 0
        %v754 = vsel %vm722, 1, 0
        %v755 = vsel %vm723, 1, 0
        %v756 = vsel %vm724, 1, 0
        %v757 = vsel %vm725, 1, 0
        %v758 = vsel %vm726, 1, 0
        %v759 = vsel %vm727, 1, 0
        %v760 = vsel %vm728, 1, 0
        %v761 = vsel %vm729, 1, 0
        %v762 = vsel %vm730, 1, 0
        %v763 = vsel %vm731, 1, 0
        %v764 = vsel %vm732, 1, 0
        %v765 = vsel %vm733, 1, 0
        %v766 = vsel %vm734, 1, 0
        %v767 = vsel %vm735, 1, 0
        %v768 = vsel %vm736, 1, 0
        %v769 = vsel %vm737, 1, 0
        %v770 = vsel %vm738, 1, 0
        %v771 = vsel %vm739, 1, 0
        %v772 = vsel %vm740, 1, 0
        %v773 = vsel %vm741, 1, 0
        %v774 = vsel %vm742, 1, 0
        %v775 = vsel %vm743, 1, 0
        %v776 = vsel %vm744, 1, 0
        %v777 = vsel %vm745, 1, 0
        %v778 = vsel %vm746, 1, 0
        %v779 = vsel %vm747, 1, 0
        %v780 = vcvt.s32.f32 %v748
        %v781 = vcvt.s32.f32 %v749
        %v782 = vcvt.s32.f32 %v750
        %v783 = vcvt.s32.f32 %v751
        %v784 = vcvt.s32.f32 %v752
        %v785 = vcvt.s32.f32 %v753
        %v786 = vcvt.s32.f32 %v754
        %v787 = vcvt.s32.f32 %v755
        %v788 = vcvt.s32.f32 %v756
        %v789 = vcvt.s32.f32 %v757
        %v790 = vcvt.s32.f32 %v758
        %v791 = vcvt.s32.f32 %v759
        %v792 = vcvt.s32.f32 %v760
        %v793 = vcvt.s32.f32 %v761
        %v794 = vcvt.s32.f32 %v762
        %v795 = vcvt.s32.f32 %v763
        %v796 = vcvt.s32.f32 %v764
        %v797 = vcvt.s32.f32 %v765
        %v798 = vcvt.s32.f32 %v766
        %v799 = vcvt.s32.f32 %v767
        %v800 = vcvt.s32.f32 %v768
        %v801 = vcvt.s32.f32 %v769
        %v802 = vcvt.s32.f32 %v770
        %v803 = vcvt.s32.f32 %v771
        %v804 = vcvt.s32.f32 %v772
        %v805 = vcvt.s32.f32 %v773
        %v806 = vcvt.s32.f32 %v774
        %v807 = vcvt.s32.f32 %v775
        %v808 = vcvt.s32.f32 %v776
        %v809 = vcvt.s32.f32 %v777
        %v810 = vcvt.s32.f32 %v778
        %v811 = vcvt.s32.f32 %v779
        %v812 = vld [vmem:[%s463] sm:$0xff]
        %v813 = vld [vmem:[%s463 + $0x8] sm:$0xff]
        %v814 = vld [vmem:[%s463 + $0x10] sm:$0xff]
        %v815 = vld [vmem:[%s463 + $0x18] sm:$0xff]
        %v816 = vld [vmem:[%s463 + $0x20] sm:$0xff]
        %v817 = vld [vmem:[%s463 + $0x28] sm:$0xff]
        %v818 = vld [vmem:[%s463 + $0x30] sm:$0xff]
        %v819 = vld [vmem:[%s463 + $0x38] sm:$0xff]
        %v820 = vld [vmem:[%s463 + $0x40] sm:$0xff]
        %v821 = vld [vmem:[%s463 + $0x48] sm:$0xff]
        %v822 = vld [vmem:[%s463 + $0x50] sm:$0xff]
        %v823 = vld [vmem:[%s463 + $0x58] sm:$0xff]
        %v824 = vld [vmem:[%s463 + $0x60] sm:$0xff]
        %v825 = vld [vmem:[%s463 + $0x68] sm:$0xff]
        %v826 = vld [vmem:[%s463 + $0x70] sm:$0xff]
        %v827 = vld [vmem:[%s463 + $0x78] sm:$0xff]
        %v828 = vld [vmem:[%s463 + $0x80] sm:$0xff]
        %v829 = vld [vmem:[%s463 + $0x88] sm:$0xff]
        %v830 = vld [vmem:[%s463 + $0x90] sm:$0xff]
        %v831 = vld [vmem:[%s463 + $0x98] sm:$0xff]
        %v832 = vld [vmem:[%s463 + $0xa0] sm:$0xff]
        %v833 = vld [vmem:[%s463 + $0xa8] sm:$0xff]
        %v834 = vld [vmem:[%s463 + $0xb0] sm:$0xff]
        %v835 = vld [vmem:[%s463 + $0xb8] sm:$0xff]
        %v836 = vld [vmem:[%s463 + $0xc0] sm:$0xff]
        %v837 = vld [vmem:[%s463 + $0xc8] sm:$0xff]
        %v838 = vld [vmem:[%s463 + $0xd0] sm:$0xff]
        %v839 = vld [vmem:[%s463 + $0xd8] sm:$0xff]
        %v840 = vld [vmem:[%s463 + $0xe0] sm:$0xff]
        %v841 = vld [vmem:[%s463 + $0xe8] sm:$0xff]
        %v842 = vld [vmem:[%s463 + $0xf0] sm:$0xff]
        %v843 = vld [vmem:[%s463 + $0xf8] sm:$0xff]
        %844 = vset.pattern.permute.xlu0 0
        %845 = vperm.xlu0 %844, %v812
        %v846 = vpop.permute.xlu0 %845
        %847 = vset.pattern.permute.xlu0 0
        %848 = vperm.xlu0 %847, %v813
        %v849 = vpop.permute.xlu0 %848
        %850 = vset.pattern.permute.xlu0 0
        %851 = vperm.xlu0 %850, %v814
        %v852 = vpop.permute.xlu0 %851
        %853 = vset.pattern.permute.xlu0 0
        %854 = vperm.xlu0 %853, %v815
        %v855 = vpop.permute.xlu0 %854
        %856 = vset.pattern.permute.xlu0 0
        %857 = vperm.xlu0 %856, %v816
        %v858 = vpop.permute.xlu0 %857
        %859 = vset.pattern.permute.xlu0 0
        %860 = vperm.xlu0 %859, %v817
        %v861 = vpop.permute.xlu0 %860
        %862 = vset.pattern.permute.xlu0 0
        %863 = vperm.xlu0 %862, %v818
        %v864 = vpop.permute.xlu0 %863
        %865 = vset.pattern.permute.xlu0 0
        %866 = vperm.xlu0 %865, %v819
        %v867 = vpop.permute.xlu0 %866
        %868 = vset.pattern.permute.xlu0 0
        %869 = vperm.xlu0 %868, %v820
        %v870 = vpop.permute.xlu0 %869
        %871 = vset.pattern.permute.xlu0 0
        %872 = vperm.xlu0 %871, %v821
        %v873 = vpop.permute.xlu0 %872
        %874 = vset.pattern.permute.xlu0 0
        %875 = vperm.xlu0 %874, %v822
        %v876 = vpop.permute.xlu0 %875
        %877 = vset.pattern.permute.xlu0 0
        %878 = vperm.xlu0 %877, %v823
        %v879 = vpop.permute.xlu0 %878
        %880 = vset.pattern.permute.xlu0 0
        %881 = vperm.xlu0 %880, %v824
        %v882 = vpop.permute.xlu0 %881
        %883 = vset.pattern.permute.xlu0 0
        %884 = vperm.xlu0 %883, %v825
        %v885 = vpop.permute.xlu0 %884
        %886 = vset.pattern.permute.xlu0 0
        %887 = vperm.xlu0 %886, %v826
        %v888 = vpop.permute.xlu0 %887
        %889 = vset.pattern.permute.xlu0 0
        %890 = vperm.xlu0 %889, %v827
        %v891 = vpop.permute.xlu0 %890
        %892 = vset.pattern.permute.xlu0 0
        %893 = vperm.xlu0 %892, %v828
        %v894 = vpop.permute.xlu0 %893
        %895 = vset.pattern.permute.xlu0 0
        %896 = vperm.xlu0 %895, %v829
        %v897 = vpop.permute.xlu0 %896
        %898 = vset.pattern.permute.xlu0 0
        %899 = vperm.xlu0 %898, %v830
        %v900 = vpop.permute.xlu0 %899
        %901 = vset.pattern.permute.xlu0 0
        %902 = vperm.xlu0 %901, %v831
        %v903 = vpop.permute.xlu0 %902
        %904 = vset.pattern.permute.xlu0 0
        %905 = vperm.xlu0 %904, %v832
        %v906 = vpop.permute.xlu0 %905
        %907 = vset.pattern.permute.xlu0 0
        %908 = vperm.xlu0 %907, %v833
        %v909 = vpop.permute.xlu0 %908
        %910 = vset.pattern.permute.xlu0 0
        %911 = vperm.xlu0 %910, %v834
        %v912 = vpop.permute.xlu0 %911
        %913 = vset.pattern.permute.xlu0 0
        %914 = vperm.xlu0 %913, %v835
        %v915 = vpop.permute.xlu0 %914
        %916 = vset.pattern.permute.xlu0 0
        %917 = vperm.xlu0 %916, %v836
        %v918 = vpop.permute.xlu0 %917
        %919 = vset.pattern.permute.xlu0 0
        %920 = vperm.xlu0 %919, %v837
        %v921 = vpop.permute.xlu0 %920
        %922 = vset.pattern.permute.xlu0 0
        %923 = vperm.xlu0 %922, %v838
        %v924 = vpop.permute.xlu0 %923
        %925 = vset.pattern.permute.xlu0 0
        %926 = vperm.xlu0 %925, %v839
        %v927 = vpop.permute.xlu0 %926
        %928 = vset.pattern.permute.xlu0 0
        %929 = vperm.xlu0 %928, %v840
        %v930 = vpop.permute.xlu0 %929
        %931 = vset.pattern.permute.xlu0 0
        %932 = vperm.xlu0 %931, %v841
        %v933 = vpop.permute.xlu0 %932
        %934 = vset.pattern.permute.xlu0 0
        %935 = vperm.xlu0 %934, %v842
        %v936 = vpop.permute.xlu0 %935
        %937 = vset.pattern.permute.xlu0 0
        %938 = vperm.xlu0 %937, %v843
        %v939 = vpop.permute.xlu0 %938
        %vm940 = vcmp.eq.s32.totalorder %v587, %v846
        %vm941 = vcmp.eq.s32.totalorder %v587, %v849
        %vm942 = vcmp.eq.s32.totalorder %v587, %v852
        %vm943 = vcmp.eq.s32.totalorder %v587, %v855
        %vm944 = vcmp.eq.s32.totalorder %v587, %v858
        %vm945 = vcmp.eq.s32.totalorder %v587, %v861
        %vm946 = vcmp.eq.s32.totalorder %v587, %v864
        %vm947 = vcmp.eq.s32.totalorder %v587, %v867
        %vm948 = vcmp.eq.s32.totalorder %v587, %v870
        %vm949 = vcmp.eq.s32.totalorder %v587, %v873
        %vm950 = vcmp.eq.s32.totalorder %v587, %v876
        %vm951 = vcmp.eq.s32.totalorder %v587, %v879
        %vm952 = vcmp.eq.s32.totalorder %v587, %v882
        %vm953 = vcmp.eq.s32.totalorder %v587, %v885
        %vm954 = vcmp.eq.s32.totalorder %v587, %v888
        %vm955 = vcmp.eq.s32.totalorder %v587, %v891
        %vm956 = vcmp.eq.s32.totalorder %v587, %v894
        %vm957 = vcmp.eq.s32.totalorder %v587, %v897
        %vm958 = vcmp.eq.s32.totalorder %v587, %v900
        %vm959 = vcmp.eq.s32.totalorder %v587, %v903
        %vm960 = vcmp.eq.s32.totalorder %v587, %v906
        %vm961 = vcmp.eq.s32.totalorder %v587, %v909
        %vm962 = vcmp.eq.s32.totalorder %v587, %v912
        %vm963 = vcmp.eq.s32.totalorder %v587, %v915
        %vm964 = vcmp.eq.s32.totalorder %v587, %v918
        %vm965 = vcmp.eq.s32.totalorder %v587, %v921
        %vm966 = vcmp.eq.s32.totalorder %v587, %v924
        %vm967 = vcmp.eq.s32.totalorder %v587, %v927
        %vm968 = vcmp.eq.s32.totalorder %v587, %v930
        %vm969 = vcmp.eq.s32.totalorder %v587, %v933
        %vm970 = vcmp.eq.s32.totalorder %v587, %v936
        %vm971 = vcmp.eq.s32.totalorder %v587, %v939
        %v972 = vsel %vm940, 1, 0
        %v973 = vsel %vm941, 1, 0
        %v974 = vsel %vm942, 1, 0
        %v975 = vsel %vm943, 1, 0
        %v976 = vsel %vm944, 1, 0
        %v977 = vsel %vm945, 1, 0
        %v978 = vsel %vm946, 1, 0
        %v979 = vsel %vm947, 1, 0
        %v980 = vsel %vm948, 1, 0
        %v981 = vsel %vm949, 1, 0
        %v982 = vsel %vm950, 1, 0
        %v983 = vsel %vm951, 1, 0
        %v984 = vsel %vm952, 1, 0
        %v985 = vsel %vm953, 1, 0
        %v986 = vsel %vm954, 1, 0
        %v987 = vsel %vm955, 1, 0
        %v988 = vsel %vm956, 1, 0
        %v989 = vsel %vm957, 1, 0
        %v990 = vsel %vm958, 1, 0
        %v991 = vsel %vm959, 1, 0
        %v992 = vsel %vm960, 1, 0
        %v993 = vsel %vm961, 1, 0
        %v994 = vsel %vm962, 1, 0
        %v995 = vsel %vm963, 1, 0
        %v996 = vsel %vm964, 1, 0
        %v997 = vsel %vm965, 1, 0
        %v998 = vsel %vm966, 1, 0
        %v999 = vsel %vm967, 1, 0
        %v1000 = vsel %vm968, 1, 0
        %v1001 = vsel %vm969, 1, 0
        %v1002 = vsel %vm970, 1, 0
        %v1003 = vsel %vm971, 1, 0
        %v1004 = vcvt.s32.f32 %v972
        %v1005 = vcvt.s32.f32 %v973
        %v1006 = vcvt.s32.f32 %v974
        %v1007 = vcvt.s32.f32 %v975
        %v1008 = vcvt.s32.f32 %v976
        %v1009 = vcvt.s32.f32 %v977
        %v1010 = vcvt.s32.f32 %v978
        %v1011 = vcvt.s32.f32 %v979
        %v1012 = vcvt.s32.f32 %v980
        %v1013 = vcvt.s32.f32 %v981
        %v1014 = vcvt.s32.f32 %v982
        %v1015 = vcvt.s32.f32 %v983
        %v1016 = vcvt.s32.f32 %v984
        %v1017 = vcvt.s32.f32 %v985
        %v1018 = vcvt.s32.f32 %v986
        %v1019 = vcvt.s32.f32 %v987
        %v1020 = vcvt.s32.f32 %v988
        %v1021 = vcvt.s32.f32 %v989
        %v1022 = vcvt.s32.f32 %v990
        %v1023 = vcvt.s32.f32 %v991
        %v1024 = vcvt.s32.f32 %v992
        %v1025 = vcvt.s32.f32 %v993
        %v1026 = vcvt.s32.f32 %v994
        %v1027 = vcvt.s32.f32 %v995
        %v1028 = vcvt.s32.f32 %v996
        %v1029 = vcvt.s32.f32 %v997
        %v1030 = vcvt.s32.f32 %v998
        %v1031 = vcvt.s32.f32 %v999
        %v1032 = vcvt.s32.f32 %v1000
        %v1033 = vcvt.s32.f32 %v1001
        %v1034 = vcvt.s32.f32 %v1002
        %v1035 = vcvt.s32.f32 %v1003
        %1036 = vmatprep.subr.mxu0 0.0
        %1037 = vmatpush1.msra.mxu0 %v570
        %1038 = vmatprep.subr.mxu0 0.0
        %1039 = vmatpush1.msra.mxu0 %v571
        %1040 = vmatprep.subr.mxu0 0.0
        %1041 = vmatpush1.msra.mxu0 %v572
        %1042 = vmatprep.subr.mxu0 0.0
        %1043 = vmatpush1.msra.mxu0 %v573
        %1044 = vmatprep.subr.mxu0 0.0
        %1045 = vmatpush1.msra.mxu0 %v574
        %1046 = vmatprep.subr.mxu0 0.0
        %1047 = vmatpush1.msra.mxu0 %v575
        %1048 = vmatprep.subr.mxu0 0.0
        %1049 = vmatpush1.msra.mxu0 %v576
        %1050 = vmatprep.subr.mxu0 0.0
        %1051 = vmatpush1.msra.mxu0 %v577
        %1052 = vmatprep.subr.mxu0 0.0
        %1053 = vmatpush1.msra.mxu0 %v578
        %1054 = vmatprep.subr.mxu0 0.0
        %1055 = vmatpush1.msra.mxu0 %v579
        %1056 = vmatprep.subr.mxu0 0.0
        %1057 = vmatpush1.msra.mxu0 %v580
        %1058 = vmatprep.subr.mxu0 0.0
        %1059 = vmatpush1.msra.mxu0 %v581
        %1060 = vmatprep.subr.mxu0 0.0
        %1061 = vmatpush1.msra.mxu0 %v582
        %1062 = vmatprep.subr.mxu0 0.0
        %1063 = vmatpush1.msra.mxu0 %v583
        %1064 = vmatprep.subr.mxu0 0.0
        %1065 = vmatpush1.msra.mxu0 %v584
        %1066 = vmatprep.subr.mxu0 0.0
        %1067 = vmatpush1.msra.mxu0 %v585
        %1068 = vmatprep.subr.mxu0 0.0
        %1069 = vmatpush1.msra.mxu0 0.0
        %1070 = vmatprep.subr.mxu0 0.0
        %1071 = vmatpush1.msra.mxu0 0.0
        %1072 = vmatprep.subr.mxu0 0.0
        %1073 = vmatpush1.msra.mxu0 0.0
        %1074 = vmatprep.subr.mxu0 0.0
        %1075 = vmatpush1.msra.mxu0 0.0
        %1076 = vmatprep.subr.mxu0 0.0
        %1077 = vmatpush1.msra.mxu0 0.0
        %1078 = vmatprep.subr.mxu0 0.0
        %1079 = vmatpush1.msra.mxu0 0.0
        %1080 = vmatprep.subr.mxu0 0.0
        %1081 = vmatpush1.msra.mxu0 0.0
        %1082 = vmatprep.subr.mxu0 0.0
        %1083 = vmatpush1.msra.mxu0 0.0
        %1084 = vmatprep.subr.mxu0 0.0
        %1085 = vmatpush1.msra.mxu0 0.0
        %1086 = vmatprep.subr.mxu0 0.0
        %1087 = vmatpush1.msra.mxu0 0.0
        %1088 = vmatprep.subr.mxu0 0.0
        %1089 = vmatpush1.msra.mxu0 0.0
        %1090 = vmatprep.subr.mxu0 0.0
        %1091 = vmatpush1.msra.mxu0 0.0
        %1092 = vmatprep.subr.mxu0 0.0
        %1093 = vmatpush1.msra.mxu0 0.0
        %1094 = vmatprep.subr.mxu0 0.0
        %1095 = vmatpush1.msra.mxu0 0.0
        %1096 = vmatprep.subr.mxu0 0.0
        %1097 = vmatpush1.msra.mxu0 0.0
        %1098 = vmatprep.subr.mxu0 0.0
        %1099 = vmatpush1.msra.mxu0 0.0
        %1100 = vmatprep.mubr.f32.mxu0 0.0
        %1101 = vmatmul.mubr.f32.gmra.mrb[0].mxu0 %v780
        %v1102 = vpop.f32.mrb[0].mxu0
        %v1103 = vadd.f32 0.0, %v1102
        %v1104 = vpop.f32.mrb[0].mxu0
        %1105 = vmatprep.mubr.f32.mxu0 0.0
        %1106 = vmatmul.mubr.f32.gmra.mrb[0].mxu0 %v781
        %v1107 = vpop.f32.mrb[0].mxu0
        %v1108 = vadd.f32 0.0, %v1107
        %v1109 = vpop.f32.mrb[0].mxu0
        %1110 = vmatprep.mubr.f32.mxu0 0.0
        %1111 = vmatmul.mubr.f32.gmra.mrb[0].mxu0 %v782
        %v1112 = vpop.f32.mrb[0].mxu0
        %v1113 = vadd.f32 0.0, %v1112
        %v1114 = vpop.f32.mrb[0].mxu0
        %1115 = vmatprep.mubr.f32.mxu0 0.0
        %1116 = vmatmul.mubr.f32.gmra.mrb[0].mxu0 %v783
        %v1117 = vpop.f32.mrb[0].mxu0
        %v1118 = vadd.f32 0.0, %v1117
        %v1119 = vpop.f32.mrb[0].mxu0
        %1120 = vmatprep.mubr.f32.mxu0 0.0
        %1121 = vmatmul.mubr.f32.gmra.mrb[0].mxu0 %v784
        %v1122 = vpop.f32.mrb[0].mxu0
        %v1123 = vadd.f32 0.0, %v1122
        %v1124 = vpop.f32.mrb[0].mxu0
        %1125 = vmatprep.mubr.f32.mxu0 0.0
        %1126 = vmatmul.mubr.f32.gmra.mrb[0].mxu0 %v785
        %v1127 = vpop.f32.mrb[0].mxu0
        %v1128 = vadd.f32 0.0, %v1127
        %v1129 = vpop.f32.mrb[0].mxu0
        %1130 = vmatprep.mubr.f32.mxu0 0.0
        %1131 = vmatmul.mubr.f32.gmra.mrb[0].mxu0 %v786
        %v1132 = vpop.f32.mrb[0].mxu0
        %v1133 = vadd.f32 0.0, %v1132
        %v1134 = vpop.f32.mrb[0].mxu0
        %1135 = vmatprep.mubr.f32.mxu0 0.0
        %1136 = vmatmul.mubr.f32.gmra.mrb[0].mxu0 %v787
        %v1137 = vpop.f32.mrb[0].mxu0
        %v1138 = vadd.f32 0.0, %v1137
        %v1139 = vpop.f32.mrb[0].mxu0
        %1140 = vmatprep.mubr.f32.mxu0 0.0
        %1141 = vmatmul.mubr.f32.gmra.mrb[0].mxu0 %v788
        %v1142 = vpop.f32.mrb[0].mxu0
        %v1143 = vadd.f32 0.0, %v1142
        %v1144 = vpop.f32.mrb[0].mxu0
        %1145 = vmatprep.mubr.f32.mxu0 0.0
        %1146 = vmatmul.mubr.f32.gmra.mrb[0].mxu0 %v789
        %v1147 = vpop.f32.mrb[0].mxu0
        %v1148 = vadd.f32 0.0, %v1147
        %v1149 = vpop.f32.mrb[0].mxu0
        %1150 = vmatprep.mubr.f32.mxu0 0.0
        %1151 = vmatmul.mubr.f32.gmra.mrb[0].mxu0 %v790
        %v1152 = vpop.f32.mrb[0].mxu0
        %v1153 = vadd.f32 0.0, %v1152
        %v1154 = vpop.f32.mrb[0].mxu0
        %1155 = vmatprep.mubr.f32.mxu0 0.0
        %1156 = vmatmul.mubr.f32.gmra.mrb[0].mxu0 %v791
        %v1157 = vpop.f32.mrb[0].mxu0
        %v1158 = vadd.f32 0.0, %v1157
        %v1159 = vpop.f32.mrb[0].mxu0
        %1160 = vmatprep.mubr.f32.mxu0 0.0
        %1161 = vmatmul.mubr.f32.gmra.mrb[0].mxu0 %v792
        %v1162 = vpop.f32.mrb[0].mxu0
        %v1163 = vadd.f32 0.0, %v1162
        %v1164 = vpop.f32.mrb[0].mxu0
        %1165 = vmatprep.mubr.f32.mxu0 0.0
        %1166 = vmatmul.mubr.f32.gmra.mrb[0].mxu0 %v793
        %v1167 = vpop.f32.mrb[0].mxu0
        %v1168 = vadd.f32 0.0, %v1167
        %v1169 = vpop.f32.mrb[0].mxu0
        %1170 = vmatprep.mubr.f32.mxu0 0.0
        %1171 = vmatmul.mubr.f32.gmra.mrb[0].mxu0 %v794
        %v1172 = vpop.f32.mrb[0].mxu0
        %v1173 = vadd.f32 0.0, %v1172
        %v1174 = vpop.f32.mrb[0].mxu0
        %1175 = vmatprep.mubr.f32.mxu0 0.0
        %1176 = vmatmul.mubr.f32.gmra.mrb[0].mxu0 %v795
        %v1177 = vpop.f32.mrb[0].mxu0
        %v1178 = vadd.f32 0.0, %v1177
        %v1179 = vpop.f32.mrb[0].mxu0
        %1180 = vmatprep.mubr.f32.mxu0 0.0
        %1181 = vmatmul.mubr.f32.gmra.mrb[0].mxu0 %v796
        %v1182 = vpop.f32.mrb[0].mxu0
        %v1183 = vadd.f32 0.0, %v1182
        %v1184 = vpop.f32.mrb[0].mxu0
        %1185 = vmatprep.mubr.f32.mxu0 0.0
        %1186 = vmatmul.mubr.f32.gmra.mrb[0].mxu0 %v797
        %v1187 = vpop.f32.mrb[0].mxu0
        %v1188 = vadd.f32 0.0, %v1187
        %v1189 = vpop.f32.mrb[0].mxu0
        %1190 = vmatprep.mubr.f32.mxu0 0.0
        %1191 = vmatmul.mubr.f32.gmra.mrb[0].mxu0 %v798
        %v1192 = vpop.f32.mrb[0].mxu0
        %v1193 = vadd.f32 0.0, %v1192
        %v1194 = vpop.f32.mrb[0].mxu0
        %1195 = vmatprep.mubr.f32.mxu0 0.0
        %1196 = vmatmul.mubr.f32.gmra.mrb[0].mxu0 %v799
        %v1197 = vpop.f32.mrb[0].mxu0
        %v1198 = vadd.f32 0.0, %v1197
        %v1199 = vpop.f32.mrb[0].mxu0
        %1200 = vmatprep.mubr.f32.mxu0 0.0
        %1201 = vmatmul.mubr.f32.gmra.mrb[0].mxu0 %v800
        %v1202 = vpop.f32.mrb[0].mxu0
        %v1203 = vadd.f32 0.0, %v1202
        %v1204 = vpop.f32.mrb[0].mxu0
        %1205 = vmatprep.mubr.f32.mxu0 0.0
        %1206 = vmatmul.mubr.f32.gmra.mrb[0].mxu0 %v801
        %v1207 = vpop.f32.mrb[0].mxu0
        %v1208 = vadd.f32 0.0, %v1207
        %v1209 = vpop.f32.mrb[0].mxu0
        %1210 = vmatprep.mubr.f32.mxu0 0.0
        %1211 = vmatmul.mubr.f32.gmra.mrb[0].mxu0 %v802
        %v1212 = vpop.f32.mrb[0].mxu0
        %v1213 = vadd.f32 0.0, %v1212
        %v1214 = vpop.f32.mrb[0].mxu0
        %1215 = vmatprep.mubr.f32.mxu0 0.0
        %1216 = vmatmul.mubr.f32.gmra.mrb[0].mxu0 %v803
        %v1217 = vpop.f32.mrb[0].mxu0
        %v1218 = vadd.f32 0.0, %v1217
        %v1219 = vpop.f32.mrb[0].mxu0
        %1220 = vmatprep.mubr.f32.mxu0 0.0
        %1221 = vmatmul.mubr.f32.gmra.mrb[0].mxu0 %v804
        %v1222 = vpop.f32.mrb[0].mxu0
        %v1223 = vadd.f32 0.0, %v1222
        %v1224 = vpop.f32.mrb[0].mxu0
        %1225 = vmatprep.mubr.f32.mxu0 0.0
        %1226 = vmatmul.mubr.f32.gmra.mrb[0].mxu0 %v805
        %v1227 = vpop.f32.mrb[0].mxu0
        %v1228 = vadd.f32 0.0, %v1227
        %v1229 = vpop.f32.mrb[0].mxu0
        %1230 = vmatprep.mubr.f32.mxu0 0.0
        %1231 = vmatmul.mubr.f32.gmra.mrb[0].mxu0 %v806
        %v1232 = vpop.f32.mrb[0].mxu0
        %v1233 = vadd.f32 0.0, %v1232
        %v1234 = vpop.f32.mrb[0].mxu0
        %1235 = vmatprep.mubr.f32.mxu0 0.0
        %1236 = vmatmul.mubr.f32.gmra.mrb[0].mxu0 %v807
        %v1237 = vpop.f32.mrb[0].mxu0
        %v1238 = vadd.f32 0.0, %v1237
        %v1239 = vpop.f32.mrb[0].mxu0
        %1240 = vmatprep.mubr.f32.mxu0 0.0
        %1241 = vmatmul.mubr.f32.gmra.mrb[0].mxu0 %v808
        %v1242 = vpop.f32.mrb[0].mxu0
        %v1243 = vadd.f32 0.0, %v1242
        %v1244 = vpop.f32.mrb[0].mxu0
        %1245 = vmatprep.mubr.f32.mxu0 0.0
        %1246 = vmatmul.mubr.f32.gmra.mrb[0].mxu0 %v809
        %v1247 = vpop.f32.mrb[0].mxu0
        %v1248 = vadd.f32 0.0, %v1247
        %v1249 = vpop.f32.mrb[0].mxu0
        %1250 = vmatprep.mubr.f32.mxu0 0.0
        %1251 = vmatmul.mubr.f32.gmra.mrb[0].mxu0 %v810
        %v1252 = vpop.f32.mrb[0].mxu0
        %v1253 = vadd.f32 0.0, %v1252
        %v1254 = vpop.f32.mrb[0].mxu0
        %1255 = vmatprep.mubr.f32.mxu0 0.0
        %1256 = vmatmul.mubr.f32.gmra.mrb[0].mxu0 %v811
        %v1257 = vpop.f32.mrb[0].mxu0
        %v1258 = vadd.f32 0.0, %v1257
        %v1259 = vpop.f32.mrb[0].mxu0
        %1260 = vdwg.mxu0
        %1261 = vmatprep.subr.mxu0 0.0
        %1262 = vmatpush1.msra.mxu0 %v570
        %1263 = vmatprep.subr.mxu0 0.0
        %1264 = vmatpush1.msra.mxu0 %v571
        %1265 = vmatprep.subr.mxu0 0.0
        %1266 = vmatpush1.msra.mxu0 %v572
        %1267 = vmatprep.subr.mxu0 0.0
        %1268 = vmatpush1.msra.mxu0 %v573
        %1269 = vmatprep.subr.mxu0 0.0
        %1270 = vmatpush1.msra.mxu0 %v574
        %1271 = vmatprep.subr.mxu0 0.0
        %1272 = vmatpush1.msra.mxu0 %v575
        %1273 = vmatprep.subr.mxu0 0.0
        %1274 = vmatpush1.msra.mxu0 %v576
        %1275 = vmatprep.subr.mxu0 0.0
        %1276 = vmatpush1.msra.mxu0 %v577
        %1277 = vmatprep.subr.mxu0 0.0
        %1278 = vmatpush1.msra.mxu0 %v578
        %1279 = vmatprep.subr.mxu0 0.0
        %1280 = vmatpush1.msra.mxu0 %v579
        %1281 = vmatprep.subr.mxu0 0.0
        %1282 = vmatpush1.msra.mxu0 %v580
        %1283 = vmatprep.subr.mxu0 0.0
        %1284 = vmatpush1.msra.mxu0 %v581
        %1285 = vmatprep.subr.mxu0 0.0
        %1286 = vmatpush1.msra.mxu0 %v582
        %1287 = vmatprep.subr.mxu0 0.0
        %1288 = vmatpush1.msra.mxu0 %v583
        %1289 = vmatprep.subr.mxu0 0.0
        %1290 = vmatpush1.msra.mxu0 %v584
        %1291 = vmatprep.subr.mxu0 0.0
        %1292 = vmatpush1.msra.mxu0 %v585
        %1293 = vmatprep.subr.mxu0 0.0
        %1294 = vmatpush1.msra.mxu0 0.0
        %1295 = vmatprep.subr.mxu0 0.0
        %1296 = vmatpush1.msra.mxu0 0.0
        %1297 = vmatprep.subr.mxu0 0.0
        %1298 = vmatpush1.msra.mxu0 0.0
        %1299 = vmatprep.subr.mxu0 0.0
        %1300 = vmatpush1.msra.mxu0 0.0
        %1301 = vmatprep.subr.mxu0 0.0
        %1302 = vmatpush1.msra.mxu0 0.0
        %1303 = vmatprep.subr.mxu0 0.0
        %1304 = vmatpush1.msra.mxu0 0.0
        %1305 = vmatprep.subr.mxu0 0.0
        %1306 = vmatpush1.msra.mxu0 0.0
        %1307 = vmatprep.subr.mxu0 0.0
        %1308 = vmatpush1.msra.mxu0 0.0
        %1309 = vmatprep.subr.mxu0 0.0
        %1310 = vmatpush1.msra.mxu0 0.0
        %1311 = vmatprep.subr.mxu0 0.0
        %1312 = vmatpush1.msra.mxu0 0.0
        %1313 = vmatprep.subr.mxu0 0.0
        %1314 = vmatpush1.msra.mxu0 0.0
        %1315 = vmatprep.subr.mxu0 0.0
        %1316 = vmatpush1.msra.mxu0 0.0
        %1317 = vmatprep.subr.mxu0 0.0
        %1318 = vmatpush1.msra.mxu0 0.0
        %1319 = vmatprep.subr.mxu0 0.0
        %1320 = vmatpush1.msra.mxu0 0.0
        %1321 = vmatprep.subr.mxu0 0.0
        %1322 = vmatpush1.msra.mxu0 0.0
        %1323 = vmatprep.subr.mxu0 0.0
        %1324 = vmatpush1.msra.mxu0 0.0
        %1325 = vmatprep.mubr.f32.mxu0 0.0
        %1326 = vmatmul.mubr.f32.gmra.mrb[0].mxu0 %v1004
        %v1327 = vpop.f32.mrb[0].mxu0
        %v1328 = vadd.f32 0.0, %v1327
        %v1329 = vpop.f32.mrb[0].mxu0
        %1330 = vmatprep.mubr.f32.mxu0 0.0
        %1331 = vmatmul.mubr.f32.gmra.mrb[0].mxu0 %v1005
        %v1332 = vpop.f32.mrb[0].mxu0
        %v1333 = vadd.f32 0.0, %v1332
        %v1334 = vpop.f32.mrb[0].mxu0
        %1335 = vmatprep.mubr.f32.mxu0 0.0
        %1336 = vmatmul.mubr.f32.gmra.mrb[0].mxu0 %v1006
        %v1337 = vpop.f32.mrb[0].mxu0
        %v1338 = vadd.f32 0.0, %v1337
        %v1339 = vpop.f32.mrb[0].mxu0
        %1340 = vmatprep.mubr.f32.mxu0 0.0
        %1341 = vmatmul.mubr.f32.gmra.mrb[0].mxu0 %v1007
        %v1342 = vpop.f32.mrb[0].mxu0
        %v1343 = vadd.f32 0.0, %v1342
        %v1344 = vpop.f32.mrb[0].mxu0
        %1345 = vmatprep.mubr.f32.mxu0 0.0
        %1346 = vmatmul.mubr.f32.gmra.mrb[0].mxu0 %v1008
        %v1347 = vpop.f32.mrb[0].mxu0
        %v1348 = vadd.f32 0.0, %v1347
        %v1349 = vpop.f32.mrb[0].mxu0
        %1350 = vmatprep.mubr.f32.mxu0 0.0
        %1351 = vmatmul.mubr.f32.gmra.mrb[0].mxu0 %v1009
        %v1352 = vpop.f32.mrb[0].mxu0
        %v1353 = vadd.f32 0.0, %v1352
        %v1354 = vpop.f32.mrb[0].mxu0
        %1355 = vmatprep.mubr.f32.mxu0 0.0
        %1356 = vmatmul.mubr.f32.gmra.mrb[0].mxu0 %v1010
        %v1357 = vpop.f32.mrb[0].mxu0
        %v1358 = vadd.f32 0.0, %v1357
        %v1359 = vpop.f32.mrb[0].mxu0
        %1360 = vmatprep.mubr.f32.mxu0 0.0
        %1361 = vmatmul.mubr.f32.gmra.mrb[0].mxu0 %v1011
        %v1362 = vpop.f32.mrb[0].mxu0
        %v1363 = vadd.f32 0.0, %v1362
        %v1364 = vpop.f32.mrb[0].mxu0
        %1365 = vmatprep.mubr.f32.mxu0 0.0
        %1366 = vmatmul.mubr.f32.gmra.mrb[0].mxu0 %v1012
        %v1367 = vpop.f32.mrb[0].mxu0
        %v1368 = vadd.f32 0.0, %v1367
        %v1369 = vpop.f32.mrb[0].mxu0
        %1370 = vmatprep.mubr.f32.mxu0 0.0
        %1371 = vmatmul.mubr.f32.gmra.mrb[0].mxu0 %v1013
        %v1372 = vpop.f32.mrb[0].mxu0
        %v1373 = vadd.f32 0.0, %v1372
        %v1374 = vpop.f32.mrb[0].mxu0
        %1375 = vmatprep.mubr.f32.mxu0 0.0
        %1376 = vmatmul.mubr.f32.gmra.mrb[0].mxu0 %v1014
        %v1377 = vpop.f32.mrb[0].mxu0
        %v1378 = vadd.f32 0.0, %v1377
        %v1379 = vpop.f32.mrb[0].mxu0
        %1380 = vmatprep.mubr.f32.mxu0 0.0
        %1381 = vmatmul.mubr.f32.gmra.mrb[0].mxu0 %v1015
        %v1382 = vpop.f32.mrb[0].mxu0
        %v1383 = vadd.f32 0.0, %v1382
        %v1384 = vpop.f32.mrb[0].mxu0
        %1385 = vmatprep.mubr.f32.mxu0 0.0
        %1386 = vmatmul.mubr.f32.gmra.mrb[0].mxu0 %v1016
        %v1387 = vpop.f32.mrb[0].mxu0
        %v1388 = vadd.f32 0.0, %v1387
        %v1389 = vpop.f32.mrb[0].mxu0
        %1390 = vmatprep.mubr.f32.mxu0 0.0
        %1391 = vmatmul.mubr.f32.gmra.mrb[0].mxu0 %v1017
        %v1392 = vpop.f32.mrb[0].mxu0
        %v1393 = vadd.f32 0.0, %v1392
        %v1394 = vpop.f32.mrb[0].mxu0
        %1395 = vmatprep.mubr.f32.mxu0 0.0
        %1396 = vmatmul.mubr.f32.gmra.mrb[0].mxu0 %v1018
        %v1397 = vpop.f32.mrb[0].mxu0
        %v1398 = vadd.f32 0.0, %v1397
        %v1399 = vpop.f32.mrb[0].mxu0
        %1400 = vmatprep.mubr.f32.mxu0 0.0
        %1401 = vmatmul.mubr.f32.gmra.mrb[0].mxu0 %v1019
        %v1402 = vpop.f32.mrb[0].mxu0
        %v1403 = vadd.f32 0.0, %v1402
        %v1404 = vpop.f32.mrb[0].mxu0
        %1405 = vmatprep.mubr.f32.mxu0 0.0
        %1406 = vmatmul.mubr.f32.gmra.mrb[0].mxu0 %v1020
        %v1407 = vpop.f32.mrb[0].mxu0
        %v1408 = vadd.f32 0.0, %v1407
        %v1409 = vpop.f32.mrb[0].mxu0
        %1410 = vmatprep.mubr.f32.mxu0 0.0
        %1411 = vmatmul.mubr.f32.gmra.mrb[0].mxu0 %v1021
        %v1412 = vpop.f32.mrb[0].mxu0
        %v1413 = vadd.f32 0.0, %v1412
        %v1414 = vpop.f32.mrb[0].mxu0
        %1415 = vmatprep.mubr.f32.mxu0 0.0
        %1416 = vmatmul.mubr.f32.gmra.mrb[0].mxu0 %v1022
        %v1417 = vpop.f32.mrb[0].mxu0
        %v1418 = vadd.f32 0.0, %v1417
        %v1419 = vpop.f32.mrb[0].mxu0
        %1420 = vmatprep.mubr.f32.mxu0 0.0
        %1421 = vmatmul.mubr.f32.gmra.mrb[0].mxu0 %v1023
        %v1422 = vpop.f32.mrb[0].mxu0
        %v1423 = vadd.f32 0.0, %v1422
        %v1424 = vpop.f32.mrb[0].mxu0
        %1425 = vmatprep.mubr.f32.mxu0 0.0
        %1426 = vmatmul.mubr.f32.gmra.mrb[0].mxu0 %v1024
        %v1427 = vpop.f32.mrb[0].mxu0
        %v1428 = vadd.f32 0.0, %v1427
        %v1429 = vpop.f32.mrb[0].mxu0
        %1430 = vmatprep.mubr.f32.mxu0 0.0
        %1431 = vmatmul.mubr.f32.gmra.mrb[0].mxu0 %v1025
        %v1432 = vpop.f32.mrb[0].mxu0
        %v1433 = vadd.f32 0.0, %v1432
        %v1434 = vpop.f32.mrb[0].mxu0
        %1435 = vmatprep.mubr.f32.mxu0 0.0
        %1436 = vmatmul.mubr.f32.gmra.mrb[0].mxu0 %v1026
        %v1437 = vpop.f32.mrb[0].mxu0
        %v1438 = vadd.f32 0.0, %v1437
        %v1439 = vpop.f32.mrb[0].mxu0
        %1440 = vmatprep.mubr.f32.mxu0 0.0
        %1441 = vmatmul.mubr.f32.gmra.mrb[0].mxu0 %v1027
        %v1442 = vpop.f32.mrb[0].mxu0
        %v1443 = vadd.f32 0.0, %v1442
        %v1444 = vpop.f32.mrb[0].mxu0
        %1445 = vmatprep.mubr.f32.mxu0 0.0
        %1446 = vmatmul.mubr.f32.gmra.mrb[0].mxu0 %v1028
        %v1447 = vpop.f32.mrb[0].mxu0
        %v1448 = vadd.f32 0.0, %v1447
        %v1449 = vpop.f32.mrb[0].mxu0
        %1450 = vmatprep.mubr.f32.mxu0 0.0
        %1451 = vmatmul.mubr.f32.gmra.mrb[0].mxu0 %v1029
        %v1452 = vpop.f32.mrb[0].mxu0
        %v1453 = vadd.f32 0.0, %v1452
        %v1454 = vpop.f32.mrb[0].mxu0
        %1455 = vmatprep.mubr.f32.mxu0 0.0
        %1456 = vmatmul.mubr.f32.gmra.mrb[0].mxu0 %v1030
        %v1457 = vpop.f32.mrb[0].mxu0
        %v1458 = vadd.f32 0.0, %v1457
        %v1459 = vpop.f32.mrb[0].mxu0
        %1460 = vmatprep.mubr.f32.mxu0 0.0
        %1461 = vmatmul.mubr.f32.gmra.mrb[0].mxu0 %v1031
        %v1462 = vpop.f32.mrb[0].mxu0
        %v1463 = vadd.f32 0.0, %v1462
        %v1464 = vpop.f32.mrb[0].mxu0
        %1465 = vmatprep.mubr.f32.mxu0 0.0
        %1466 = vmatmul.mubr.f32.gmra.mrb[0].mxu0 %v1032
        %v1467 = vpop.f32.mrb[0].mxu0
        %v1468 = vadd.f32 0.0, %v1467
        %v1469 = vpop.f32.mrb[0].mxu0
        %1470 = vmatprep.mubr.f32.mxu0 0.0
        %1471 = vmatmul.mubr.f32.gmra.mrb[0].mxu0 %v1033
        %v1472 = vpop.f32.mrb[0].mxu0
        %v1473 = vadd.f32 0.0, %v1472
        %v1474 = vpop.f32.mrb[0].mxu0
        %1475 = vmatprep.mubr.f32.mxu0 0.0
        %1476 = vmatmul.mubr.f32.gmra.mrb[0].mxu0 %v1034
        %v1477 = vpop.f32.mrb[0].mxu0
        %v1478 = vadd.f32 0.0, %v1477
        %v1479 = vpop.f32.mrb[0].mxu0
        %1480 = vmatprep.mubr.f32.mxu0 0.0
        %1481 = vmatmul.mubr.f32.gmra.mrb[0].mxu0 %v1035
        %v1482 = vpop.f32.mrb[0].mxu0
        %v1483 = vadd.f32 0.0, %v1482
        %v1484 = vpop.f32.mrb[0].mxu0
        %1485 = vdwg.mxu0
        %v1486 = vld [vmem:[%s445] sm:$0xff]
        %v1487 = vld [vmem:[%s445 + $0x8] sm:$0xff]
        %v1488 = vld [vmem:[%s445 + $0x10] sm:$0xff]
        %v1489 = vld [vmem:[%s445 + $0x18] sm:$0xff]
        %v1490 = vld [vmem:[%s445 + $0x20] sm:$0xff]
        %v1491 = vld [vmem:[%s445 + $0x28] sm:$0xff]
        %v1492 = vld [vmem:[%s445 + $0x30] sm:$0xff]
        %v1493 = vld [vmem:[%s445 + $0x38] sm:$0xff]
        %v1494 = vld [vmem:[%s445 + $0x40] sm:$0xff]
        %v1495 = vld [vmem:[%s445 + $0x48] sm:$0xff]
        %v1496 = vld [vmem:[%s445 + $0x50] sm:$0xff]
        %v1497 = vld [vmem:[%s445 + $0x58] sm:$0xff]
        %v1498 = vld [vmem:[%s445 + $0x60] sm:$0xff]
        %v1499 = vld [vmem:[%s445 + $0x68] sm:$0xff]
        %v1500 = vld [vmem:[%s445 + $0x70] sm:$0xff]
        %v1501 = vld [vmem:[%s445 + $0x78] sm:$0xff]
        %v1502 = vld [vmem:[%s445 + $0x80] sm:$0xff]
        %v1503 = vld [vmem:[%s445 + $0x88] sm:$0xff]
        %v1504 = vld [vmem:[%s445 + $0x90] sm:$0xff]
        %v1505 = vld [vmem:[%s445 + $0x98] sm:$0xff]
        %v1506 = vld [vmem:[%s445 + $0xa0] sm:$0xff]
        %v1507 = vld [vmem:[%s445 + $0xa8] sm:$0xff]
        %v1508 = vld [vmem:[%s445 + $0xb0] sm:$0xff]
        %v1509 = vld [vmem:[%s445 + $0xb8] sm:$0xff]
        %v1510 = vld [vmem:[%s445 + $0xc0] sm:$0xff]
        %v1511 = vld [vmem:[%s445 + $0xc8] sm:$0xff]
        %v1512 = vld [vmem:[%s445 + $0xd0] sm:$0xff]
        %v1513 = vld [vmem:[%s445 + $0xd8] sm:$0xff]
        %v1514 = vld [vmem:[%s445 + $0xe0] sm:$0xff]
        %v1515 = vld [vmem:[%s445 + $0xe8] sm:$0xff]
        %v1516 = vld [vmem:[%s445 + $0xf0] sm:$0xff]
        %v1517 = vld [vmem:[%s445 + $0xf8] sm:$0xff]
        %v1518 = vld [vmem:[#allocation13] sm:$0xff]
        %v1519 = vld [vmem:[#allocation13 + $0x8] sm:$0xff]
        %v1520 = vld [vmem:[#allocation13 + $0x10] sm:$0xff]
        %v1521 = vld [vmem:[#allocation13 + $0x18] sm:$0xff]
        %v1522 = vld [vmem:[#allocation13 + $0x20] sm:$0xff]
        %v1523 = vld [vmem:[#allocation13 + $0x28] sm:$0xff]
        %v1524 = vld [vmem:[#allocation13 + $0x30] sm:$0xff]
        %v1525 = vld [vmem:[#allocation13 + $0x38] sm:$0xff]
        %v1526 = vld [vmem:[#allocation13 + $0x40] sm:$0xff]
        %v1527 = vld [vmem:[#allocation13 + $0x48] sm:$0xff]
        %v1528 = vld [vmem:[#allocation13 + $0x50] sm:$0xff]
        %v1529 = vld [vmem:[#allocation13 + $0x58] sm:$0xff]
        %v1530 = vld [vmem:[#allocation13 + $0x60] sm:$0xff]
        %v1531 = vld [vmem:[#allocation13 + $0x68] sm:$0xff]
        %v1532 = vld [vmem:[#allocation13 + $0x70] sm:$0xff]
        %v1533 = vld [vmem:[#allocation13 + $0x78] sm:$0xff]
        %v1534 = vld [vmem:[#allocation13 + $0x80] sm:$0xff]
        %v1535 = vld [vmem:[#allocation13 + $0x88] sm:$0xff]
        %v1536 = vld [vmem:[#allocation13 + $0x90] sm:$0xff]
        %v1537 = vld [vmem:[#allocation13 + $0x98] sm:$0xff]
        %v1538 = vld [vmem:[#allocation13 + $0xa0] sm:$0xff]
        %v1539 = vld [vmem:[#allocation13 + $0xa8] sm:$0xff]
        %v1540 = vld [vmem:[#allocation13 + $0xb0] sm:$0xff]
        %v1541 = vld [vmem:[#allocation13 + $0xb8] sm:$0xff]
        %v1542 = vld [vmem:[#allocation13 + $0xc0] sm:$0xff]
        %v1543 = vld [vmem:[#allocation13 + $0xc8] sm:$0xff]
        %v1544 = vld [vmem:[#allocation13 + $0xd0] sm:$0xff]
        %v1545 = vld [vmem:[#allocation13 + $0xd8] sm:$0xff]
        %v1546 = vld [vmem:[#allocation13 + $0xe0] sm:$0xff]
        %v1547 = vld [vmem:[#allocation13 + $0xe8] sm:$0xff]
        %v1548 = vld [vmem:[#allocation13 + $0xf0] sm:$0xff]
        %v1549 = vld [vmem:[#allocation13 + $0xf8] sm:$0xff]
        %v1550 = vld [vmem:[#allocation13 + $0x100] sm:$0xff]
        %v1551 = vld [vmem:[#allocation13 + $0x108] sm:$0xff]
        %v1552 = vld [vmem:[#allocation13 + $0x110] sm:$0xff]
        %v1553 = vld [vmem:[#allocation13 + $0x118] sm:$0xff]
        %v1554 = vld [vmem:[#allocation13 + $0x120] sm:$0xff]
        %v1555 = vld [vmem:[#allocation13 + $0x128] sm:$0xff]
        %v1556 = vld [vmem:[#allocation13 + $0x130] sm:$0xff]
        %v1557 = vld [vmem:[#allocation13 + $0x138] sm:$0xff]
        %v1558 = vld [vmem:[#allocation13 + $0x140] sm:$0xff]
        %v1559 = vld [vmem:[#allocation13 + $0x148] sm:$0xff]
        %v1560 = vld [vmem:[#allocation13 + $0x150] sm:$0xff]
        %v1561 = vld [vmem:[#allocation13 + $0x158] sm:$0xff]
        %v1562 = vld [vmem:[#allocation13 + $0x160] sm:$0xff]
        %v1563 = vld [vmem:[#allocation13 + $0x168] sm:$0xff]
        %v1564 = vld [vmem:[#allocation13 + $0x170] sm:$0xff]
        %v1565 = vld [vmem:[#allocation13 + $0x178] sm:$0xff]
        %v1566 = vld [vmem:[#allocation13 + $0x180] sm:$0xff]
        %v1567 = vld [vmem:[#allocation13 + $0x188] sm:$0xff]
        %v1568 = vld [vmem:[#allocation13 + $0x190] sm:$0xff]
        %v1569 = vld [vmem:[#allocation13 + $0x198] sm:$0xff]
        %v1570 = vld [vmem:[#allocation13 + $0x1a0] sm:$0xff]
        %v1571 = vld [vmem:[#allocation13 + $0x1a8] sm:$0xff]
        %v1572 = vld [vmem:[#allocation13 + $0x1b0] sm:$0xff]
        %v1573 = vld [vmem:[#allocation13 + $0x1b8] sm:$0xff]
        %v1574 = vld [vmem:[#allocation13 + $0x1c0] sm:$0xff]
        %v1575 = vld [vmem:[#allocation13 + $0x1c8] sm:$0xff]
        %v1576 = vld [vmem:[#allocation13 + $0x1d0] sm:$0xff]
        %v1577 = vld [vmem:[#allocation13 + $0x1d8] sm:$0xff]
        %v1578 = vld [vmem:[#allocation13 + $0x1e0] sm:$0xff]
        %v1579 = vld [vmem:[#allocation13 + $0x1e8] sm:$0xff]
        %v1580 = vld [vmem:[#allocation13 + $0x1f0] sm:$0xff]
        %v1581 = vld [vmem:[#allocation13 + $0x1f8] sm:$0xff]
        %v1582 = vld [vmem:[#allocation13 + $0x200] sm:$0xff]
        %v1583 = vld [vmem:[#allocation13 + $0x208] sm:$0xff]
        %v1584 = vld [vmem:[#allocation13 + $0x210] sm:$0xff]
        %v1585 = vld [vmem:[#allocation13 + $0x218] sm:$0xff]
        %v1586 = vld [vmem:[#allocation13 + $0x220] sm:$0xff]
        %v1587 = vld [vmem:[#allocation13 + $0x228] sm:$0xff]
        %v1588 = vld [vmem:[#allocation13 + $0x230] sm:$0xff]
        %v1589 = vld [vmem:[#allocation13 + $0x238] sm:$0xff]
        %v1590 = vld [vmem:[#allocation13 + $0x240] sm:$0xff]
        %v1591 = vld [vmem:[#allocation13 + $0x248] sm:$0xff]
        %v1592 = vld [vmem:[#allocation13 + $0x250] sm:$0xff]
        %v1593 = vld [vmem:[#allocation13 + $0x258] sm:$0xff]
        %v1594 = vld [vmem:[#allocation13 + $0x260] sm:$0xff]
        %v1595 = vld [vmem:[#allocation13 + $0x268] sm:$0xff]
        %v1596 = vld [vmem:[#allocation13 + $0x270] sm:$0xff]
        %v1597 = vld [vmem:[#allocation13 + $0x278] sm:$0xff]
        %v1598 = vld [vmem:[#allocation13 + $0x280] sm:$0xff]
        %v1599 = vld [vmem:[#allocation13 + $0x288] sm:$0xff]
        %v1600 = vld [vmem:[#allocation13 + $0x290] sm:$0xff]
        %v1601 = vld [vmem:[#allocation13 + $0x298] sm:$0xff]
        %v1602 = vld [vmem:[#allocation13 + $0x2a0] sm:$0xff]
        %v1603 = vld [vmem:[#allocation13 + $0x2a8] sm:$0xff]
        %v1604 = vld [vmem:[#allocation13 + $0x2b0] sm:$0xff]
        %v1605 = vld [vmem:[#allocation13 + $0x2b8] sm:$0xff]
        %v1606 = vld [vmem:[#allocation13 + $0x2c0] sm:$0xff]
        %v1607 = vld [vmem:[#allocation13 + $0x2c8] sm:$0xff]
        %v1608 = vld [vmem:[#allocation13 + $0x2d0] sm:$0xff]
        %v1609 = vld [vmem:[#allocation13 + $0x2d8] sm:$0xff]
        %v1610 = vld [vmem:[#allocation13 + $0x2e0] sm:$0xff]
        %v1611 = vld [vmem:[#allocation13 + $0x2e8] sm:$0xff]
        %v1612 = vld [vmem:[#allocation13 + $0x2f0] sm:$0xff]
        %v1613 = vld [vmem:[#allocation13 + $0x2f8] sm:$0xff]
        %v1614 = vld [vmem:[#allocation13 + $0x300] sm:$0xff]
        %v1615 = vld [vmem:[#allocation13 + $0x308] sm:$0xff]
        %v1616 = vld [vmem:[#allocation13 + $0x310] sm:$0xff]
        %v1617 = vld [vmem:[#allocation13 + $0x318] sm:$0xff]
        %v1618 = vld [vmem:[#allocation13 + $0x320] sm:$0xff]
        %v1619 = vld [vmem:[#allocation13 + $0x328] sm:$0xff]
        %v1620 = vld [vmem:[#allocation13 + $0x330] sm:$0xff]
        %v1621 = vld [vmem:[#allocation13 + $0x338] sm:$0xff]
        %v1622 = vld [vmem:[#allocation13 + $0x340] sm:$0xff]
        %v1623 = vld [vmem:[#allocation13 + $0x348] sm:$0xff]
        %v1624 = vld [vmem:[#allocation13 + $0x350] sm:$0xff]
        %v1625 = vld [vmem:[#allocation13 + $0x358] sm:$0xff]
        %v1626 = vld [vmem:[#allocation13 + $0x360] sm:$0xff]
        %v1627 = vld [vmem:[#allocation13 + $0x368] sm:$0xff]
        %v1628 = vld [vmem:[#allocation13 + $0x370] sm:$0xff]
        %v1629 = vld [vmem:[#allocation13 + $0x378] sm:$0xff]
        %v1630 = vld [vmem:[#allocation13 + $0x380] sm:$0xff]
        %v1631 = vld [vmem:[#allocation13 + $0x388] sm:$0xff]
        %v1632 = vld [vmem:[#allocation13 + $0x390] sm:$0xff]
        %v1633 = vld [vmem:[#allocation13 + $0x398] sm:$0xff]
        %v1634 = vld [vmem:[#allocation13 + $0x3a0] sm:$0xff]
        %v1635 = vld [vmem:[#allocation13 + $0x3a8] sm:$0xff]
        %v1636 = vld [vmem:[#allocation13 + $0x3b0] sm:$0xff]
        %v1637 = vld [vmem:[#allocation13 + $0x3b8] sm:$0xff]
        %v1638 = vld [vmem:[#allocation13 + $0x3c0] sm:$0xff]
        %v1639 = vld [vmem:[#allocation13 + $0x3c8] sm:$0xff]
        %v1640 = vld [vmem:[#allocation13 + $0x3d0] sm:$0xff]
        %v1641 = vld [vmem:[#allocation13 + $0x3d8] sm:$0xff]
        %v1642 = vld [vmem:[#allocation13 + $0x3e0] sm:$0xff]
        %v1643 = vld [vmem:[#allocation13 + $0x3e8] sm:$0xff]
        %v1644 = vld [vmem:[#allocation13 + $0x3f0] sm:$0xff]
        %v1645 = vld [vmem:[#allocation13 + $0x3f8] sm:$0xff]
        %v1646 = vld [vmem:[#allocation13 + $0x400] sm:$0xff]
        %v1647 = vld [vmem:[#allocation13 + $0x408] sm:$0xff]
        %v1648 = vld [vmem:[#allocation13 + $0x410] sm:$0xff]
        %v1649 = vld [vmem:[#allocation13 + $0x418] sm:$0xff]
        %v1650 = vld [vmem:[#allocation13 + $0x420] sm:$0xff]
        %v1651 = vld [vmem:[#allocation13 + $0x428] sm:$0xff]
        %v1652 = vld [vmem:[#allocation13 + $0x430] sm:$0xff]
        %v1653 = vld [vmem:[#allocation13 + $0x438] sm:$0xff]
        %v1654 = vld [vmem:[#allocation13 + $0x440] sm:$0xff]
        %v1655 = vld [vmem:[#allocation13 + $0x448] sm:$0xff]
        %v1656 = vld [vmem:[#allocation13 + $0x450] sm:$0xff]
        %v1657 = vld [vmem:[#allocation13 + $0x458] sm:$0xff]
        %v1658 = vld [vmem:[#allocation13 + $0x460] sm:$0xff]
        %v1659 = vld [vmem:[#allocation13 + $0x468] sm:$0xff]
        %v1660 = vld [vmem:[#allocation13 + $0x470] sm:$0xff]
        %v1661 = vld [vmem:[#allocation13 + $0x478] sm:$0xff]
        %v1662 = vld [vmem:[#allocation14] sm:$0x7]
        %v1664 = vlaneseq
        %v1665 = vshrl.u32 %v1664, 7
        %v1666 = vsub.s32 0, %v1665
        %v1667 = vrot.slane %v1662, %v1666
        %v1668 = vlaneseq
        %v1669 = vshrl.u32 %v1668, 7
        %v1670 = vsub.s32 1, %v1669
        %v1671 = vrot.slane %v1662, %v1670
        %v1672 = vlaneseq
        %v1673 = vshrl.u32 %v1672, 7
        %v1674 = vsub.s32 2, %v1673
        %v1675 = vrot.slane %v1662, %v1674
        %1679 = vmatprep.subr.mxu0 %v1519
        %1680 = vmatpush1.msra.mxu0 %v1518
        %1681 = vmatprep.subr.mxu0 %v1522
        %1682 = vmatpush1.msra.mxu0 %v1521
        %1683 = vmatprep.subr.mxu0 %v1525
        %1684 = vmatpush1.msra.mxu0 %v1524
        %1685 = vmatprep.subr.mxu0 %v1528
        %1686 = vmatpush1.msra.mxu0 %v1527
        %1687 = vmatprep.subr.mxu0 %v1531
        %1688 = vmatpush1.msra.mxu0 %v1530
        %1689 = vmatprep.subr.mxu0 %v1534
        %1690 = vmatpush1.msra.mxu0 %v1533
        %1691 = vmatprep.subr.mxu0 %v1537
        %1692 = vmatpush1.msra.mxu0 %v1536
        %1693 = vmatprep.subr.mxu0 %v1540
        %1694 = vmatpush1.msra.mxu0 %v1539
        %1695 = vmatprep.subr.mxu0 %v1543
        %1696 = vmatpush1.msra.mxu0 %v1542
        %1697 = vmatprep.subr.mxu0 %v1546
        %1698 = vmatpush1.msra.mxu0 %v1545
        %1699 = vmatprep.subr.mxu0 %v1549
        %1700 = vmatpush1.msra.mxu0 %v1548
        %1701 = vmatprep.subr.mxu0 %v1552
        %1702 = vmatpush1.msra.mxu0 %v1551
        %1703 = vmatprep.subr.mxu0 %v1555
        %1704 = vmatpush1.msra.mxu0 %v1554
        %1705 = vmatprep.subr.mxu0 %v1558
        %1706 = vmatpush1.msra.mxu0 %v1557
        %1707 = vmatprep.subr.mxu0 %v1561
        %1708 = vmatpush1.msra.mxu0 %v1560
        %1709 = vmatprep.subr.mxu0 %v1564
        %1710 = vmatpush1.msra.mxu0 %v1563
        %1711 = vmatprep.subr.mxu0 %v1567
        %1712 = vmatpush1.msra.mxu0 %v1566
        %1713 = vmatprep.subr.mxu0 %v1570
        %1714 = vmatpush1.msra.mxu0 %v1569
        %1715 = vmatprep.subr.mxu0 %v1573
        %1716 = vmatpush1.msra.mxu0 %v1572
        %1717 = vmatprep.subr.mxu0 %v1576
        %1718 = vmatpush1.msra.mxu0 %v1575
        %1719 = vmatprep.subr.mxu0 %v1579
        %1720 = vmatpush1.msra.mxu0 %v1578
        %1721 = vmatprep.subr.mxu0 %v1582
        %1722 = vmatpush1.msra.mxu0 %v1581
        %1723 = vmatprep.subr.mxu0 %v1585
        %1724 = vmatpush1.msra.mxu0 %v1584
        %1725 = vmatprep.subr.mxu0 %v1588
        %1726 = vmatpush1.msra.mxu0 %v1587
        %1727 = vmatprep.subr.mxu0 %v1591
        %1728 = vmatpush1.msra.mxu0 %v1590
        %1729 = vmatprep.subr.mxu0 %v1594
        %1730 = vmatpush1.msra.mxu0 %v1593
        %1731 = vmatprep.subr.mxu0 %v1597
        %1732 = vmatpush1.msra.mxu0 %v1596
        %1733 = vmatprep.subr.mxu0 %v1600
        %1734 = vmatpush1.msra.mxu0 %v1599
        %1735 = vmatprep.subr.mxu0 %v1603
        %1736 = vmatpush1.msra.mxu0 %v1602
        %1737 = vmatprep.subr.mxu0 %v1606
        %1738 = vmatpush1.msra.mxu0 %v1605
        %1739 = vmatprep.subr.mxu0 %v1609
        %1740 = vmatpush1.msra.mxu0 %v1608
        %1741 = vmatprep.subr.mxu0 %v1612
        %1742 = vmatpush1.msra.mxu0 %v1611
        %1743 = vmatprep.mubr.f32.mxu0 %v1103
        %1744 = vmatmul.mubr.f32.gmra.mrb[0].mxu0 %v1486
        %v1745 = vpop.f32.mrb[0].mxu0
        %v1746 = vadd.f32 %v1667, %v1745
        %v1747 = vpop.f32.mrb[0].mxu0
        %v1748 = vadd.f32 %v1671, %v1747
        %1749 = vmatprep.mubr.f32.mxu0 %v1108
        %1750 = vmatmul.mubr.f32.gmra.mrb[0].mxu0 %v1487
        %v1751 = vpop.f32.mrb[0].mxu0
        %v1752 = vadd.f32 %v1667, %v1751
        %v1753 = vpop.f32.mrb[0].mxu0
        %v1754 = vadd.f32 %v1671, %v1753
        %1755 = vmatprep.mubr.f32.mxu0 %v1113
        %1756 = vmatmul.mubr.f32.gmra.mrb[0].mxu0 %v1488
        %v1757 = vpop.f32.mrb[0].mxu0
        %v1758 = vadd.f32 %v1667, %v1757
        %v1759 = vpop.f32.mrb[0].mxu0
        %v1760 = vadd.f32 %v1671, %v1759
        %1761 = vmatprep.mubr.f32.mxu0 %v1118
        %1762 = vmatmul.mubr.f32.gmra.mrb[0].mxu0 %v1489
        %v1763 = vpop.f32.mrb[0].mxu0
        %v1764 = vadd.f32 %v1667, %v1763
        %v1765 = vpop.f32.mrb[0].mxu0
        %v1766 = vadd.f32 %v1671, %v1765
        %1767 = vmatprep.mubr.f32.mxu0 %v1123
        %1768 = vmatmul.mubr.f32.gmra.mrb[0].mxu0 %v1490
        %v1769 = vpop.f32.mrb[0].mxu0
        %v1770 = vadd.f32 %v1667, %v1769
        %v1771 = vpop.f32.mrb[0].mxu0
        %v1772 = vadd.f32 %v1671, %v1771
        %1773 = vmatprep.mubr.f32.mxu0 %v1128
        %1774 = vmatmul.mubr.f32.gmra.mrb[0].mxu0 %v1491
        %v1775 = vpop.f32.mrb[0].mxu0
        %v1776 = vadd.f32 %v1667, %v1775
        %v1777 = vpop.f32.mrb[0].mxu0
        %v1778 = vadd.f32 %v1671, %v1777
        %1779 = vmatprep.mubr.f32.mxu0 %v1133
        %1780 = vmatmul.mubr.f32.gmra.mrb[0].mxu0 %v1492
        %v1781 = vpop.f32.mrb[0].mxu0
        %v1782 = vadd.f32 %v1667, %v1781
        %v1783 = vpop.f32.mrb[0].mxu0
        %v1784 = vadd.f32 %v1671, %v1783
        %1785 = vmatprep.mubr.f32.mxu0 %v1138
        %1786 = vmatmul.mubr.f32.gmra.mrb[0].mxu0 %v1493
        %v1787 = vpop.f32.mrb[0].mxu0
        %v1788 = vadd.f32 %v1667, %v1787
        %v1789 = vpop.f32.mrb[0].mxu0
        %v1790 = vadd.f32 %v1671, %v1789
        %1791 = vmatprep.mubr.f32.mxu0 %v1143
        %1792 = vmatmul.mubr.f32.gmra.mrb[0].mxu0 %v1494
        %v1793 = vpop.f32.mrb[0].mxu0
        %v1794 = vadd.f32 %v1667, %v1793
        %v1795 = vpop.f32.mrb[0].mxu0
        %v1796 = vadd.f32 %v1671, %v1795
        %1797 = vmatprep.mubr.f32.mxu0 %v1148
        %1798 = vmatmul.mubr.f32.gmra.mrb[0].mxu0 %v1495
        %v1799 = vpop.f32.mrb[0].mxu0
        %v1800 = vadd.f32 %v1667, %v1799
        %v1801 = vpop.f32.mrb[0].mxu0
        %v1802 = vadd.f32 %v1671, %v1801
        %1803 = vmatprep.mubr.f32.mxu0 %v1153
        %1804 = vmatmul.mubr.f32.gmra.mrb[0].mxu0 %v1496
        %v1805 = vpop.f32.mrb[0].mxu0
        %v1806 = vadd.f32 %v1667, %v1805
        %v1807 = vpop.f32.mrb[0].mxu0
        %v1808 = vadd.f32 %v1671, %v1807
        %1809 = vmatprep.mubr.f32.mxu0 %v1158
        %1810 = vmatmul.mubr.f32.gmra.mrb[0].mxu0 %v1497
        %v1811 = vpop.f32.mrb[0].mxu0
        %v1812 = vadd.f32 %v1667, %v1811
        %v1813 = vpop.f32.mrb[0].mxu0
        %v1814 = vadd.f32 %v1671, %v1813
        %1815 = vmatprep.mubr.f32.mxu0 %v1163
        %1816 = vmatmul.mubr.f32.gmra.mrb[0].mxu0 %v1498
        %v1817 = vpop.f32.mrb[0].mxu0
        %v1818 = vadd.f32 %v1667, %v1817
        %v1819 = vpop.f32.mrb[0].mxu0
        %v1820 = vadd.f32 %v1671, %v1819
        %1821 = vmatprep.mubr.f32.mxu0 %v1168
        %1822 = vmatmul.mubr.f32.gmra.mrb[0].mxu0 %v1499
        %v1823 = vpop.f32.mrb[0].mxu0
        %v1824 = vadd.f32 %v1667, %v1823
        %v1825 = vpop.f32.mrb[0].mxu0
        %v1826 = vadd.f32 %v1671, %v1825
        %1827 = vmatprep.mubr.f32.mxu0 %v1173
        %1828 = vmatmul.mubr.f32.gmra.mrb[0].mxu0 %v1500
        %v1829 = vpop.f32.mrb[0].mxu0
        %v1830 = vadd.f32 %v1667, %v1829
        %v1831 = vpop.f32.mrb[0].mxu0
        %v1832 = vadd.f32 %v1671, %v1831
        %1833 = vmatprep.mubr.f32.mxu0 %v1178
        %1834 = vmatmul.mubr.f32.gmra.mrb[0].mxu0 %v1501
        %v1835 = vpop.f32.mrb[0].mxu0
        %v1836 = vadd.f32 %v1667, %v1835
        %v1837 = vpop.f32.mrb[0].mxu0
        %v1838 = vadd.f32 %v1671, %v1837
        %1839 = vmatprep.mubr.f32.mxu0 %v1183
        %1840 = vmatmul.mubr.f32.gmra.mrb[0].mxu0 %v1502
        %v1841 = vpop.f32.mrb[0].mxu0
        %v1842 = vadd.f32 %v1667, %v1841
        %v1843 = vpop.f32.mrb[0].mxu0
        %v1844 = vadd.f32 %v1671, %v1843
        %1845 = vmatprep.mubr.f32.mxu0 %v1188
        %1846 = vmatmul.mubr.f32.gmra.mrb[0].mxu0 %v1503
        %v1847 = vpop.f32.mrb[0].mxu0
        %v1848 = vadd.f32 %v1667, %v1847
        %v1849 = vpop.f32.mrb[0].mxu0
        %v1850 = vadd.f32 %v1671, %v1849
        %1851 = vmatprep.mubr.f32.mxu0 %v1193
        %1852 = vmatmul.mubr.f32.gmra.mrb[0].mxu0 %v1504
        %v1853 = vpop.f32.mrb[0].mxu0
        %v1854 = vadd.f32 %v1667, %v1853
        %v1855 = vpop.f32.mrb[0].mxu0
        %v1856 = vadd.f32 %v1671, %v1855
        %1857 = vmatprep.mubr.f32.mxu0 %v1198
        %1858 = vmatmul.mubr.f32.gmra.mrb[0].mxu0 %v1505
        %v1859 = vpop.f32.mrb[0].mxu0
        %v1860 = vadd.f32 %v1667, %v1859
        %v1861 = vpop.f32.mrb[0].mxu0
        %v1862 = vadd.f32 %v1671, %v1861
        %1863 = vmatprep.mubr.f32.mxu0 %v1203
        %1864 = vmatmul.mubr.f32.gmra.mrb[0].mxu0 %v1506
        %v1865 = vpop.f32.mrb[0].mxu0
        %v1866 = vadd.f32 %v1667, %v1865
        %v1867 = vpop.f32.mrb[0].mxu0
        %v1868 = vadd.f32 %v1671, %v1867
        %1869 = vmatprep.mubr.f32.mxu0 %v1208
        %1870 = vmatmul.mubr.f32.gmra.mrb[0].mxu0 %v1507
        %v1871 = vpop.f32.mrb[0].mxu0
        %v1872 = vadd.f32 %v1667, %v1871
        %v1873 = vpop.f32.mrb[0].mxu0
        %v1874 = vadd.f32 %v1671, %v1873
        %1875 = vmatprep.mubr.f32.mxu0 %v1213
        %1876 = vmatmul.mubr.f32.gmra.mrb[0].mxu0 %v1508
        %v1877 = vpop.f32.mrb[0].mxu0
        %v1878 = vadd.f32 %v1667, %v1877
        %v1879 = vpop.f32.mrb[0].mxu0
        %v1880 = vadd.f32 %v1671, %v1879
        %1881 = vmatprep.mubr.f32.mxu0 %v1218
        %1882 = vmatmul.mubr.f32.gmra.mrb[0].mxu0 %v1509
        %v1883 = vpop.f32.mrb[0].mxu0
        %v1884 = vadd.f32 %v1667, %v1883
        %v1885 = vpop.f32.mrb[0].mxu0
        %v1886 = vadd.f32 %v1671, %v1885
        %1887 = vmatprep.mubr.f32.mxu0 %v1223
        %1888 = vmatmul.mubr.f32.gmra.mrb[0].mxu0 %v1510
        %v1889 = vpop.f32.mrb[0].mxu0
        %v1890 = vadd.f32 %v1667, %v1889
        %v1891 = vpop.f32.mrb[0].mxu0
        %v1892 = vadd.f32 %v1671, %v1891
        %1893 = vmatprep.mubr.f32.mxu0 %v1228
        %1894 = vmatmul.mubr.f32.gmra.mrb[0].mxu0 %v1511
        %v1895 = vpop.f32.mrb[0].mxu0
        %v1896 = vadd.f32 %v1667, %v1895
        %v1897 = vpop.f32.mrb[0].mxu0
        %v1898 = vadd.f32 %v1671, %v1897
        %1899 = vmatprep.mubr.f32.mxu0 %v1233
        %1900 = vmatmul.mubr.f32.gmra.mrb[0].mxu0 %v1512
        %v1901 = vpop.f32.mrb[0].mxu0
        %v1902 = vadd.f32 %v1667, %v1901
        %v1903 = vpop.f32.mrb[0].mxu0
        %v1904 = vadd.f32 %v1671, %v1903
        %1905 = vmatprep.mubr.f32.mxu0 %v1238
        %1906 = vmatmul.mubr.f32.gmra.mrb[0].mxu0 %v1513
        %v1907 = vpop.f32.mrb[0].mxu0
        %v1908 = vadd.f32 %v1667, %v1907
        %v1909 = vpop.f32.mrb[0].mxu0
        %v1910 = vadd.f32 %v1671, %v1909
        %1911 = vmatprep.mubr.f32.mxu0 %v1243
        %1912 = vmatmul.mubr.f32.gmra.mrb[0].mxu0 %v1514
        %v1913 = vpop.f32.mrb[0].mxu0
        %v1914 = vadd.f32 %v1667, %v1913
        %v1915 = vpop.f32.mrb[0].mxu0
        %v1916 = vadd.f32 %v1671, %v1915
        %1917 = vmatprep.mubr.f32.mxu0 %v1248
        %1918 = vmatmul.mubr.f32.gmra.mrb[0].mxu0 %v1515
        %v1919 = vpop.f32.mrb[0].mxu0
        %v1920 = vadd.f32 %v1667, %v1919
        %v1921 = vpop.f32.mrb[0].mxu0
        %v1922 = vadd.f32 %v1671, %v1921
        %1923 = vmatprep.mubr.f32.mxu0 %v1253
        %1924 = vmatmul.mubr.f32.gmra.mrb[0].mxu0 %v1516
        %v1925 = vpop.f32.mrb[0].mxu0
        %v1926 = vadd.f32 %v1667, %v1925
        %v1927 = vpop.f32.mrb[0].mxu0
        %v1928 = vadd.f32 %v1671, %v1927
        %1929 = vmatprep.mubr.f32.mxu0 %v1258
        %1930 = vmatmul.mubr.f32.gmra.mrb[0].mxu0 %v1517
        %v1931 = vpop.f32.mrb[0].mxu0
        %v1932 = vadd.f32 %v1667, %v1931
        %v1933 = vpop.f32.mrb[0].mxu0
        %v1934 = vadd.f32 %v1671, %v1933
        %1935 = vdwg.mxu0
        %1936 = vmatprep.subr.mxu0 %v1615
        %1937 = vmatpush1.msra.mxu0 %v1614
        %1938 = vmatprep.subr.mxu0 %v1618
        %1939 = vmatpush1.msra.mxu0 %v1617
        %1940 = vmatprep.subr.mxu0 %v1621
        %1941 = vmatpush1.msra.mxu0 %v1620
        %1942 = vmatprep.subr.mxu0 %v1624
        %1943 = vmatpush1.msra.mxu0 %v1623
        %1944 = vmatprep.subr.mxu0 %v1627
        %1945 = vmatpush1.msra.mxu0 %v1626
        %1946 = vmatprep.subr.mxu0 %v1630
        %1947 = vmatpush1.msra.mxu0 %v1629
        %1948 = vmatprep.subr.mxu0 %v1633
        %1949 = vmatpush1.msra.mxu0 %v1632
        %1950 = vmatprep.subr.mxu0 %v1636
        %1951 = vmatpush1.msra.mxu0 %v1635
        %1952 = vmatprep.subr.mxu0 %v1639
        %1953 = vmatpush1.msra.mxu0 %v1638
        %1954 = vmatprep.subr.mxu0 %v1642
        %1955 = vmatpush1.msra.mxu0 %v1641
        %1956 = vmatprep.subr.mxu0 %v1645
        %1957 = vmatpush1.msra.mxu0 %v1644
        %1958 = vmatprep.subr.mxu0 %v1648
        %1959 = vmatpush1.msra.mxu0 %v1647
        %1960 = vmatprep.subr.mxu0 %v1651
        %1961 = vmatpush1.msra.mxu0 %v1650
        %1962 = vmatprep.subr.mxu0 %v1654
        %1963 = vmatpush1.msra.mxu0 %v1653
        %1964 = vmatprep.subr.mxu0 %v1657
        %1965 = vmatpush1.msra.mxu0 %v1656
        %1966 = vmatprep.subr.mxu0 %v1660
        %1967 = vmatpush1.msra.mxu0 %v1659
        %1968 = vmatprep.subr.mxu0 0.0
        %1969 = vmatpush1.msra.mxu0 0.0
        %1970 = vmatprep.subr.mxu0 0.0
        %1971 = vmatpush1.msra.mxu0 0.0
        %1972 = vmatprep.subr.mxu0 0.0
        %1973 = vmatpush1.msra.mxu0 0.0
        %1974 = vmatprep.subr.mxu0 0.0
        %1975 = vmatpush1.msra.mxu0 0.0
        %1976 = vmatprep.subr.mxu0 0.0
        %1977 = vmatpush1.msra.mxu0 0.0
        %1978 = vmatprep.subr.mxu0 0.0
        %1979 = vmatpush1.msra.mxu0 0.0
        %1980 = vmatprep.subr.mxu0 0.0
        %1981 = vmatpush1.msra.mxu0 0.0
        %1982 = vmatprep.subr.mxu0 0.0
        %1983 = vmatpush1.msra.mxu0 0.0
        %1984 = vmatprep.subr.mxu0 0.0
        %1985 = vmatpush1.msra.mxu0 0.0
        %1986 = vmatprep.subr.mxu0 0.0
        %1987 = vmatpush1.msra.mxu0 0.0
        %1988 = vmatprep.subr.mxu0 0.0
        %1989 = vmatpush1.msra.mxu0 0.0
        %1990 = vmatprep.subr.mxu0 0.0
        %1991 = vmatpush1.msra.mxu0 0.0
        %1992 = vmatprep.subr.mxu0 0.0
        %1993 = vmatpush1.msra.mxu0 0.0
        %1994 = vmatprep.subr.mxu0 0.0
        %1995 = vmatpush1.msra.mxu0 0.0
        %1996 = vmatprep.subr.mxu0 0.0
        %1997 = vmatpush1.msra.mxu0 0.0
        %1998 = vmatprep.subr.mxu0 0.0
        %1999 = vmatpush1.msra.mxu0 0.0
        %2000 = vmatprep.mubr.f32.mxu0 0.0
        %2001 = vmatmul.mubr.f32.gmra.mrb[0].mxu0 %v1328
        %v2002 = vpop.f32.mrb[0].mxu0
        %v2003 = vadd.f32 %v1746, %v2002
        %v2004 = vpop.f32.mrb[0].mxu0
        %v2005 = vadd.f32 %v1748, %v2004
        %2006 = vmatprep.mubr.f32.mxu0 0.0
        %2007 = vmatmul.mubr.f32.gmra.mrb[0].mxu0 %v1333
        %v2008 = vpop.f32.mrb[0].mxu0
        %v2009 = vadd.f32 %v1752, %v2008
        %v2010 = vpop.f32.mrb[0].mxu0
        %v2011 = vadd.f32 %v1754, %v2010
        %2012 = vmatprep.mubr.f32.mxu0 0.0
        %2013 = vmatmul.mubr.f32.gmra.mrb[0].mxu0 %v1338
        %v2014 = vpop.f32.mrb[0].mxu0
        %v2015 = vadd.f32 %v1758, %v2014
        %v2016 = vpop.f32.mrb[0].mxu0
        %v2017 = vadd.f32 %v1760, %v2016
        %2018 = vmatprep.mubr.f32.mxu0 0.0
        %2019 = vmatmul.mubr.f32.gmra.mrb[0].mxu0 %v1343
        %v2020 = vpop.f32.mrb[0].mxu0
        %v2021 = vadd.f32 %v1764, %v2020
        %v2022 = vpop.f32.mrb[0].mxu0
        %v2023 = vadd.f32 %v1766, %v2022
        %2024 = vmatprep.mubr.f32.mxu0 0.0
        %2025 = vmatmul.mubr.f32.gmra.mrb[0].mxu0 %v1348
        %v2026 = vpop.f32.mrb[0].mxu0
        %v2027 = vadd.f32 %v1770, %v2026
        %v2028 = vpop.f32.mrb[0].mxu0
        %v2029 = vadd.f32 %v1772, %v2028
        %2030 = vmatprep.mubr.f32.mxu0 0.0
        %2031 = vmatmul.mubr.f32.gmra.mrb[0].mxu0 %v1353
        %v2032 = vpop.f32.mrb[0].mxu0
        %v2033 = vadd.f32 %v1776, %v2032
        %v2034 = vpop.f32.mrb[0].mxu0
        %v2035 = vadd.f32 %v1778, %v2034
        %2036 = vmatprep.mubr.f32.mxu0 0.0
        %2037 = vmatmul.mubr.f32.gmra.mrb[0].mxu0 %v1358
        %v2038 = vpop.f32.mrb[0].mxu0
        %v2039 = vadd.f32 %v1782, %v2038
        %v2040 = vpop.f32.mrb[0].mxu0
        %v2041 = vadd.f32 %v1784, %v2040
        %2042 = vmatprep.mubr.f32.mxu0 0.0
        %2043 = vmatmul.mubr.f32.gmra.mrb[0].mxu0 %v1363
        %v2044 = vpop.f32.mrb[0].mxu0
        %v2045 = vadd.f32 %v1788, %v2044
        %v2046 = vpop.f32.mrb[0].mxu0
        %v2047 = vadd.f32 %v1790, %v2046
        %2048 = vmatprep.mubr.f32.mxu0 0.0
        %2049 = vmatmul.mubr.f32.gmra.mrb[0].mxu0 %v1368
        %v2050 = vpop.f32.mrb[0].mxu0
        %v2051 = vadd.f32 %v1794, %v2050
        %v2052 = vpop.f32.mrb[0].mxu0
        %v2053 = vadd.f32 %v1796, %v2052
        %2054 = vmatprep.mubr.f32.mxu0 0.0
        %2055 = vmatmul.mubr.f32.gmra.mrb[0].mxu0 %v1373
        %v2056 = vpop.f32.mrb[0].mxu0
        %v2057 = vadd.f32 %v1800, %v2056
        %v2058 = vpop.f32.mrb[0].mxu0
        %v2059 = vadd.f32 %v1802, %v2058
        %2060 = vmatprep.mubr.f32.mxu0 0.0
        %2061 = vmatmul.mubr.f32.gmra.mrb[0].mxu0 %v1378
        %v2062 = vpop.f32.mrb[0].mxu0
        %v2063 = vadd.f32 %v1806, %v2062
        %v2064 = vpop.f32.mrb[0].mxu0
        %v2065 = vadd.f32 %v1808, %v2064
        %2066 = vmatprep.mubr.f32.mxu0 0.0
        %2067 = vmatmul.mubr.f32.gmra.mrb[0].mxu0 %v1383
        %v2068 = vpop.f32.mrb[0].mxu0
        %v2069 = vadd.f32 %v1812, %v2068
        %v2070 = vpop.f32.mrb[0].mxu0
        %v2071 = vadd.f32 %v1814, %v2070
        %2072 = vmatprep.mubr.f32.mxu0 0.0
        %2073 = vmatmul.mubr.f32.gmra.mrb[0].mxu0 %v1388
        %v2074 = vpop.f32.mrb[0].mxu0
        %v2075 = vadd.f32 %v1818, %v2074
        %v2076 = vpop.f32.mrb[0].mxu0
        %v2077 = vadd.f32 %v1820, %v2076
        %2078 = vmatprep.mubr.f32.mxu0 0.0
        %2079 = vmatmul.mubr.f32.gmra.mrb[0].mxu0 %v1393
        %v2080 = vpop.f32.mrb[0].mxu0
        %v2081 = vadd.f32 %v1824, %v2080
        %v2082 = vpop.f32.mrb[0].mxu0
        %v2083 = vadd.f32 %v1826, %v2082
        %2084 = vmatprep.mubr.f32.mxu0 0.0
        %2085 = vmatmul.mubr.f32.gmra.mrb[0].mxu0 %v1398
        %v2086 = vpop.f32.mrb[0].mxu0
        %v2087 = vadd.f32 %v1830, %v2086
        %v2088 = vpop.f32.mrb[0].mxu0
        %v2089 = vadd.f32 %v1832, %v2088
        %2090 = vmatprep.mubr.f32.mxu0 0.0
        %2091 = vmatmul.mubr.f32.gmra.mrb[0].mxu0 %v1403
        %v2092 = vpop.f32.mrb[0].mxu0
        %v2093 = vadd.f32 %v1836, %v2092
        %v2094 = vpop.f32.mrb[0].mxu0
        %v2095 = vadd.f32 %v1838, %v2094
        %2096 = vmatprep.mubr.f32.mxu0 0.0
        %2097 = vmatmul.mubr.f32.gmra.mrb[0].mxu0 %v1408
        %v2098 = vpop.f32.mrb[0].mxu0
        %v2099 = vadd.f32 %v1842, %v2098
        %v2100 = vpop.f32.mrb[0].mxu0
        %v2101 = vadd.f32 %v1844, %v2100
        %2102 = vmatprep.mubr.f32.mxu0 0.0
        %2103 = vmatmul.mubr.f32.gmra.mrb[0].mxu0 %v1413
        %v2104 = vpop.f32.mrb[0].mxu0
        %v2105 = vadd.f32 %v1848, %v2104
        %v2106 = vpop.f32.mrb[0].mxu0
        %v2107 = vadd.f32 %v1850, %v2106
        %2108 = vmatprep.mubr.f32.mxu0 0.0
        %2109 = vmatmul.mubr.f32.gmra.mrb[0].mxu0 %v1418
        %v2110 = vpop.f32.mrb[0].mxu0
        %v2111 = vadd.f32 %v1854, %v2110
        %v2112 = vpop.f32.mrb[0].mxu0
        %v2113 = vadd.f32 %v1856, %v2112
        %2114 = vmatprep.mubr.f32.mxu0 0.0
        %2115 = vmatmul.mubr.f32.gmra.mrb[0].mxu0 %v1423
        %v2116 = vpop.f32.mrb[0].mxu0
        %v2117 = vadd.f32 %v1860, %v2116
        %v2118 = vpop.f32.mrb[0].mxu0
        %v2119 = vadd.f32 %v1862, %v2118
        %2120 = vmatprep.mubr.f32.mxu0 0.0
        %2121 = vmatmul.mubr.f32.gmra.mrb[0].mxu0 %v1428
        %v2122 = vpop.f32.mrb[0].mxu0
        %v2123 = vadd.f32 %v1866, %v2122
        %v2124 = vpop.f32.mrb[0].mxu0
        %v2125 = vadd.f32 %v1868, %v2124
        %2126 = vmatprep.mubr.f32.mxu0 0.0
        %2127 = vmatmul.mubr.f32.gmra.mrb[0].mxu0 %v1433
        %v2128 = vpop.f32.mrb[0].mxu0
        %v2129 = vadd.f32 %v1872, %v2128
        %v2130 = vpop.f32.mrb[0].mxu0
        %v2131 = vadd.f32 %v1874, %v2130
        %2132 = vmatprep.mubr.f32.mxu0 0.0
        %2133 = vmatmul.mubr.f32.gmra.mrb[0].mxu0 %v1438
        %v2134 = vpop.f32.mrb[0].mxu0
        %v2135 = vadd.f32 %v1878, %v2134
        %v2136 = vpop.f32.mrb[0].mxu0
        %v2137 = vadd.f32 %v1880, %v2136
        %2138 = vmatprep.mubr.f32.mxu0 0.0
        %2139 = vmatmul.mubr.f32.gmra.mrb[0].mxu0 %v1443
        %v2140 = vpop.f32.mrb[0].mxu0
        %v2141 = vadd.f32 %v1884, %v2140
        %v2142 = vpop.f32.mrb[0].mxu0
        %v2143 = vadd.f32 %v1886, %v2142
        %2144 = vmatprep.mubr.f32.mxu0 0.0
        %2145 = vmatmul.mubr.f32.gmra.mrb[0].mxu0 %v1448
        %v2146 = vpop.f32.mrb[0].mxu0
        %v2147 = vadd.f32 %v1890, %v2146
        %v2148 = vpop.f32.mrb[0].mxu0
        %v2149 = vadd.f32 %v1892, %v2148
        %2150 = vmatprep.mubr.f32.mxu0 0.0
        %2151 = vmatmul.mubr.f32.gmra.mrb[0].mxu0 %v1453
        %v2152 = vpop.f32.mrb[0].mxu0
        %v2153 = vadd.f32 %v1896, %v2152
        %v2154 = vpop.f32.mrb[0].mxu0
        %v2155 = vadd.f32 %v1898, %v2154
        %2156 = vmatprep.mubr.f32.mxu0 0.0
        %2157 = vmatmul.mubr.f32.gmra.mrb[0].mxu0 %v1458
        %v2158 = vpop.f32.mrb[0].mxu0
        %v2159 = vadd.f32 %v1902, %v2158
        %v2160 = vpop.f32.mrb[0].mxu0
        %v2161 = vadd.f32 %v1904, %v2160
        %2162 = vmatprep.mubr.f32.mxu0 0.0
        %2163 = vmatmul.mubr.f32.gmra.mrb[0].mxu0 %v1463
        %v2164 = vpop.f32.mrb[0].mxu0
        %v2165 = vadd.f32 %v1908, %v2164
        %v2166 = vpop.f32.mrb[0].mxu0
        %v2167 = vadd.f32 %v1910, %v2166
        %2168 = vmatprep.mubr.f32.mxu0 0.0
        %2169 = vmatmul.mubr.f32.gmra.mrb[0].mxu0 %v1468
        %v2170 = vpop.f32.mrb[0].mxu0
        %v2171 = vadd.f32 %v1914, %v2170
        %v2172 = vpop.f32.mrb[0].mxu0
        %v2173 = vadd.f32 %v1916, %v2172
        %2174 = vmatprep.mubr.f32.mxu0 0.0
        %2175 = vmatmul.mubr.f32.gmra.mrb[0].mxu0 %v1473
        %v2176 = vpop.f32.mrb[0].mxu0
        %v2177 = vadd.f32 %v1920, %v2176
        %v2178 = vpop.f32.mrb[0].mxu0
        %v2179 = vadd.f32 %v1922, %v2178
        %2180 = vmatprep.mubr.f32.mxu0 0.0
        %2181 = vmatmul.mubr.f32.gmra.mrb[0].mxu0 %v1478
        %v2182 = vpop.f32.mrb[0].mxu0
        %v2183 = vadd.f32 %v1926, %v2182
        %v2184 = vpop.f32.mrb[0].mxu0
        %v2185 = vadd.f32 %v1928, %v2184
        %2186 = vmatprep.mubr.f32.mxu0 0.0
        %2187 = vmatmul.mubr.f32.gmra.mrb[0].mxu0 %v1483
        %v2188 = vpop.f32.mrb[0].mxu0
        %v2189 = vadd.f32 %v1932, %v2188
        %v2190 = vpop.f32.mrb[0].mxu0
        %v2191 = vadd.f32 %v1934, %v2190
        %2192 = vdwg.mxu0
        %2193 = vmatprep.subr.mxu0 0.0
        %2194 = vmatpush1.msra.mxu0 %v1520
        %2195 = vmatprep.subr.mxu0 0.0
        %2196 = vmatpush1.msra.mxu0 %v1523
        %2197 = vmatprep.subr.mxu0 0.0
        %2198 = vmatpush1.msra.mxu0 %v1526
        %2199 = vmatprep.subr.mxu0 0.0
        %2200 = vmatpush1.msra.mxu0 %v1529
        %2201 = vmatprep.subr.mxu0 0.0
        %2202 = vmatpush1.msra.mxu0 %v1532
        %2203 = vmatprep.subr.mxu0 0.0
        %2204 = vmatpush1.msra.mxu0 %v1535
        %2205 = vmatprep.subr.mxu0 0.0
        %2206 = vmatpush1.msra.mxu0 %v1538
        %2207 = vmatprep.subr.mxu0 0.0
        %2208 = vmatpush1.msra.mxu0 %v1541
        %2209 = vmatprep.subr.mxu0 0.0
        %2210 = vmatpush1.msra.mxu0 %v1544
        %2211 = vmatprep.subr.mxu0 0.0
        %2212 = vmatpush1.msra.mxu0 %v1547
        %2213 = vmatprep.subr.mxu0 0.0
        %2214 = vmatpush1.msra.mxu0 %v1550
        %2215 = vmatprep.subr.mxu0 0.0
        %2216 = vmatpush1.msra.mxu0 %v1553
        %2217 = vmatprep.subr.mxu0 0.0
        %2218 = vmatpush1.msra.mxu0 %v1556
        %2219 = vmatprep.subr.mxu0 0.0
        %2220 = vmatpush1.msra.mxu0 %v1559
        %2221 = vmatprep.subr.mxu0 0.0
        %2222 = vmatpush1.msra.mxu0 %v1562
        %2223 = vmatprep.subr.mxu0 0.0
        %2224 = vmatpush1.msra.mxu0 %v1565
        %2225 = vmatprep.subr.mxu0 0.0
        %2226 = vmatpush1.msra.mxu0 %v1568
        %2227 = vmatprep.subr.mxu0 0.0
        %2228 = vmatpush1.msra.mxu0 %v1571
        %2229 = vmatprep.subr.mxu0 0.0
        %2230 = vmatpush1.msra.mxu0 %v1574
        %2231 = vmatprep.subr.mxu0 0.0
        %2232 = vmatpush1.msra.mxu0 %v1577
        %2233 = vmatprep.subr.mxu0 0.0
        %2234 = vmatpush1.msra.mxu0 %v1580
        %2235 = vmatprep.subr.mxu0 0.0
        %2236 = vmatpush1.msra.mxu0 %v1583
        %2237 = vmatprep.subr.mxu0 0.0
        %2238 = vmatpush1.msra.mxu0 %v1586
        %2239 = vmatprep.subr.mxu0 0.0
        %2240 = vmatpush1.msra.mxu0 %v1589
        %2241 = vmatprep.subr.mxu0 0.0
        %2242 = vmatpush1.msra.mxu0 %v1592
        %2243 = vmatprep.subr.mxu0 0.0
        %2244 = vmatpush1.msra.mxu0 %v1595
        %2245 = vmatprep.subr.mxu0 0.0
        %2246 = vmatpush1.msra.mxu0 %v1598
        %2247 = vmatprep.subr.mxu0 0.0
        %2248 = vmatpush1.msra.mxu0 %v1601
        %2249 = vmatprep.subr.mxu0 0.0
        %2250 = vmatpush1.msra.mxu0 %v1604
        %2251 = vmatprep.subr.mxu0 0.0
        %2252 = vmatpush1.msra.mxu0 %v1607
        %2253 = vmatprep.subr.mxu0 0.0
        %2254 = vmatpush1.msra.mxu0 %v1610
        %2255 = vmatprep.subr.mxu0 0.0
        %2256 = vmatpush1.msra.mxu0 %v1613
        %2257 = vmatprep.mubr.f32.mxu0 %v1103
        %2258 = vmatmul.mubr.f32.gmra.mrb[0].mxu0 %v1486
        %v2259 = vpop.f32.mrb[0].mxu0
        %v2260 = vadd.f32 %v1675, %v2259
        %v2261 = vpop.f32.mrb[0].mxu0
        %2262 = vmatprep.mubr.f32.mxu0 %v1108
        %2263 = vmatmul.mubr.f32.gmra.mrb[0].mxu0 %v1487
        %v2264 = vpop.f32.mrb[0].mxu0
        %v2265 = vadd.f32 %v1675, %v2264
        %v2266 = vpop.f32.mrb[0].mxu0
        %2267 = vmatprep.mubr.f32.mxu0 %v1113
        %2268 = vmatmul.mubr.f32.gmra.mrb[0].mxu0 %v1488
        %v2269 = vpop.f32.mrb[0].mxu0
        %v2270 = vadd.f32 %v1675, %v2269
        %v2271 = vpop.f32.mrb[0].mxu0
        %2272 = vmatprep.mubr.f32.mxu0 %v1118
        %2273 = vmatmul.mubr.f32.gmra.mrb[0].mxu0 %v1489
        %v2274 = vpop.f32.mrb[0].mxu0
        %v2275 = vadd.f32 %v1675, %v2274
        %v2276 = vpop.f32.mrb[0].mxu0
        %2277 = vmatprep.mubr.f32.mxu0 %v1123
        %2278 = vmatmul.mubr.f32.gmra.mrb[0].mxu0 %v1490
        %v2279 = vpop.f32.mrb[0].mxu0
        %v2280 = vadd.f32 %v1675, %v2279
        %v2281 = vpop.f32.mrb[0].mxu0
        %2282 = vmatprep.mubr.f32.mxu0 %v1128
        %2283 = vmatmul.mubr.f32.gmra.mrb[0].mxu0 %v1491
        %v2284 = vpop.f32.mrb[0].mxu0
        %v2285 = vadd.f32 %v1675, %v2284
        %v2286 = vpop.f32.mrb[0].mxu0
        %2287 = vmatprep.mubr.f32.mxu0 %v1133
        %2288 = vmatmul.mubr.f32.gmra.mrb[0].mxu0 %v1492
        %v2289 = vpop.f32.mrb[0].mxu0
        %v2290 = vadd.f32 %v1675, %v2289
        %v2291 = vpop.f32.mrb[0].mxu0
        %2292 = vmatprep.mubr.f32.mxu0 %v1138
        %2293 = vmatmul.mubr.f32.gmra.mrb[0].mxu0 %v1493
        %v2294 = vpop.f32.mrb[0].mxu0
        %v2295 = vadd.f32 %v1675, %v2294
        %v2296 = vpop.f32.mrb[0].mxu0
        %2297 = vmatprep.mubr.f32.mxu0 %v1143
        %2298 = vmatmul.mubr.f32.gmra.mrb[0].mxu0 %v1494
        %v2299 = vpop.f32.mrb[0].mxu0
        %v2300 = vadd.f32 %v1675, %v2299
        %v2301 = vpop.f32.mrb[0].mxu0
        %2302 = vmatprep.mubr.f32.mxu0 %v1148
        %2303 = vmatmul.mubr.f32.gmra.mrb[0].mxu0 %v1495
        %v2304 = vpop.f32.mrb[0].mxu0
        %v2305 = vadd.f32 %v1675, %v2304
        %v2306 = vpop.f32.mrb[0].mxu0
        %2307 = vmatprep.mubr.f32.mxu0 %v1153
        %2308 = vmatmul.mubr.f32.gmra.mrb[0].mxu0 %v1496
        %v2309 = vpop.f32.mrb[0].mxu0
        %v2310 = vadd.f32 %v1675, %v2309
        %v2311 = vpop.f32.mrb[0].mxu0
        %2312 = vmatprep.mubr.f32.mxu0 %v1158
        %2313 = vmatmul.mubr.f32.gmra.mrb[0].mxu0 %v1497
        %v2314 = vpop.f32.mrb[0].mxu0
        %v2315 = vadd.f32 %v1675, %v2314
        %v2316 = vpop.f32.mrb[0].mxu0
        %2317 = vmatprep.mubr.f32.mxu0 %v1163
        %2318 = vmatmul.mubr.f32.gmra.mrb[0].mxu0 %v1498
        %v2319 = vpop.f32.mrb[0].mxu0
        %v2320 = vadd.f32 %v1675, %v2319
        %v2321 = vpop.f32.mrb[0].mxu0
        %2322 = vmatprep.mubr.f32.mxu0 %v1168
        %2323 = vmatmul.mubr.f32.gmra.mrb[0].mxu0 %v1499
        %v2324 = vpop.f32.mrb[0].mxu0
        %v2325 = vadd.f32 %v1675, %v2324
        %v2326 = vpop.f32.mrb[0].mxu0
        %2327 = vmatprep.mubr.f32.mxu0 %v1173
        %2328 = vmatmul.mubr.f32.gmra.mrb[0].mxu0 %v1500
        %v2329 = vpop.f32.mrb[0].mxu0
        %v2330 = vadd.f32 %v1675, %v2329
        %v2331 = vpop.f32.mrb[0].mxu0
        %2332 = vmatprep.mubr.f32.mxu0 %v1178
        %2333 = vmatmul.mubr.f32.gmra.mrb[0].mxu0 %v1501
        %v2334 = vpop.f32.mrb[0].mxu0
        %v2335 = vadd.f32 %v1675, %v2334
        %v2336 = vpop.f32.mrb[0].mxu0
        %2337 = vmatprep.mubr.f32.mxu0 %v1183
        %2338 = vmatmul.mubr.f32.gmra.mrb[0].mxu0 %v1502
        %v2339 = vpop.f32.mrb[0].mxu0
        %v2340 = vadd.f32 %v1675, %v2339
        %v2341 = vpop.f32.mrb[0].mxu0
        %2342 = vmatprep.mubr.f32.mxu0 %v1188
        %2343 = vmatmul.mubr.f32.gmra.mrb[0].mxu0 %v1503
        %v2344 = vpop.f32.mrb[0].mxu0
        %v2345 = vadd.f32 %v1675, %v2344
        %v2346 = vpop.f32.mrb[0].mxu0
        %2347 = vmatprep.mubr.f32.mxu0 %v1193
        %2348 = vmatmul.mubr.f32.gmra.mrb[0].mxu0 %v1504
        %v2349 = vpop.f32.mrb[0].mxu0
        %v2350 = vadd.f32 %v1675, %v2349
        %v2351 = vpop.f32.mrb[0].mxu0
        %2352 = vmatprep.mubr.f32.mxu0 %v1198
        %2353 = vmatmul.mubr.f32.gmra.mrb[0].mxu0 %v1505
        %v2354 = vpop.f32.mrb[0].mxu0
        %v2355 = vadd.f32 %v1675, %v2354
        %v2356 = vpop.f32.mrb[0].mxu0
        %2357 = vmatprep.mubr.f32.mxu0 %v1203
        %2358 = vmatmul.mubr.f32.gmra.mrb[0].mxu0 %v1506
        %v2359 = vpop.f32.mrb[0].mxu0
        %v2360 = vadd.f32 %v1675, %v2359
        %v2361 = vpop.f32.mrb[0].mxu0
        %2362 = vmatprep.mubr.f32.mxu0 %v1208
        %2363 = vmatmul.mubr.f32.gmra.mrb[0].mxu0 %v1507
        %v2364 = vpop.f32.mrb[0].mxu0
        %v2365 = vadd.f32 %v1675, %v2364
        %v2366 = vpop.f32.mrb[0].mxu0
        %2367 = vmatprep.mubr.f32.mxu0 %v1213
        %2368 = vmatmul.mubr.f32.gmra.mrb[0].mxu0 %v1508
        %v2369 = vpop.f32.mrb[0].mxu0
        %v2370 = vadd.f32 %v1675, %v2369
        %v2371 = vpop.f32.mrb[0].mxu0
        %2372 = vmatprep.mubr.f32.mxu0 %v1218
        %2373 = vmatmul.mubr.f32.gmra.mrb[0].mxu0 %v1509
        %v2374 = vpop.f32.mrb[0].mxu0
        %v2375 = vadd.f32 %v1675, %v2374
        %v2376 = vpop.f32.mrb[0].mxu0
        %2377 = vmatprep.mubr.f32.mxu0 %v1223
        %2378 = vmatmul.mubr.f32.gmra.mrb[0].mxu0 %v1510
        %v2379 = vpop.f32.mrb[0].mxu0
        %v2380 = vadd.f32 %v1675, %v2379
        %v2381 = vpop.f32.mrb[0].mxu0
        %2382 = vmatprep.mubr.f32.mxu0 %v1228
        %2383 = vmatmul.mubr.f32.gmra.mrb[0].mxu0 %v1511
        %v2384 = vpop.f32.mrb[0].mxu0
        %v2385 = vadd.f32 %v1675, %v2384
        %v2386 = vpop.f32.mrb[0].mxu0
        %2387 = vmatprep.mubr.f32.mxu0 %v1233
        %2388 = vmatmul.mubr.f32.gmra.mrb[0].mxu0 %v1512
        %v2389 = vpop.f32.mrb[0].mxu0
        %v2390 = vadd.f32 %v1675, %v2389
        %v2391 = vpop.f32.mrb[0].mxu0
        %2392 = vmatprep.mubr.f32.mxu0 %v1238
        %2393 = vmatmul.mubr.f32.gmra.mrb[0].mxu0 %v1513
        %v2394 = vpop.f32.mrb[0].mxu0
        %v2395 = vadd.f32 %v1675, %v2394
        %v2396 = vpop.f32.mrb[0].mxu0
        %2397 = vmatprep.mubr.f32.mxu0 %v1243
        %2398 = vmatmul.mubr.f32.gmra.mrb[0].mxu0 %v1514
        %v2399 = vpop.f32.mrb[0].mxu0
        %v2400 = vadd.f32 %v1675, %v2399
        %v2401 = vpop.f32.mrb[0].mxu0
        %2402 = vmatprep.mubr.f32.mxu0 %v1248
        %2403 = vmatmul.mubr.f32.gmra.mrb[0].mxu0 %v1515
        %v2404 = vpop.f32.mrb[0].mxu0
        %v2405 = vadd.f32 %v1675, %v2404
        %v2406 = vpop.f32.mrb[0].mxu0
        %2407 = vmatprep.mubr.f32.mxu0 %v1253
        %2408 = vmatmul.mubr.f32.gmra.mrb[0].mxu0 %v1516
        %v2409 = vpop.f32.mrb[0].mxu0
        %v2410 = vadd.f32 %v1675, %v2409
        %v2411 = vpop.f32.mrb[0].mxu0
        %2412 = vmatprep.mubr.f32.mxu0 %v1258
        %2413 = vmatmul.mubr.f32.gmra.mrb[0].mxu0 %v1517
        %v2414 = vpop.f32.mrb[0].mxu0
        %v2415 = vadd.f32 %v1675, %v2414
        %v2416 = vpop.f32.mrb[0].mxu0
        %2417 = vdwg.mxu0
        %2418 = vmatprep.subr.mxu0 0.0
        %2419 = vmatpush1.msra.mxu0 %v1616
        %2420 = vmatprep.subr.mxu0 0.0
        %2421 = vmatpush1.msra.mxu0 %v1619
        %2422 = vmatprep.subr.mxu0 0.0
        %2423 = vmatpush1.msra.mxu0 %v1622
        %2424 = vmatprep.subr.mxu0 0.0
        %2425 = vmatpush1.msra.mxu0 %v1625
        %2426 = vmatprep.subr.mxu0 0.0
        %2427 = vmatpush1.msra.mxu0 %v1628
        %2428 = vmatprep.subr.mxu0 0.0
        %2429 = vmatpush1.msra.mxu0 %v1631
        %2430 = vmatprep.subr.mxu0 0.0
        %2431 = vmatpush1.msra.mxu0 %v1634
        %2432 = vmatprep.subr.mxu0 0.0
        %2433 = vmatpush1.msra.mxu0 %v1637
        %2434 = vmatprep.subr.mxu0 0.0
        %2435 = vmatpush1.msra.mxu0 %v1640
        %2436 = vmatprep.subr.mxu0 0.0
        %2437 = vmatpush1.msra.mxu0 %v1643
        %2438 = vmatprep.subr.mxu0 0.0
        %2439 = vmatpush1.msra.mxu0 %v1646
        %2440 = vmatprep.subr.mxu0 0.0
        %2441 = vmatpush1.msra.mxu0 %v1649
        %2442 = vmatprep.subr.mxu0 0.0
        %2443 = vmatpush1.msra.mxu0 %v1652
        %2444 = vmatprep.subr.mxu0 0.0
        %2445 = vmatpush1.msra.mxu0 %v1655
        %2446 = vmatprep.subr.mxu0 0.0
        %2447 = vmatpush1.msra.mxu0 %v1658
        %2448 = vmatprep.subr.mxu0 0.0
        %2449 = vmatpush1.msra.mxu0 %v1661
        %2450 = vmatprep.subr.mxu0 0.0
        %2451 = vmatpush1.msra.mxu0 0.0
        %2452 = vmatprep.subr.mxu0 0.0
        %2453 = vmatpush1.msra.mxu0 0.0
        %2454 = vmatprep.subr.mxu0 0.0
        %2455 = vmatpush1.msra.mxu0 0.0
        %2456 = vmatprep.subr.mxu0 0.0
        %2457 = vmatpush1.msra.mxu0 0.0
        %2458 = vmatprep.subr.mxu0 0.0
        %2459 = vmatpush1.msra.mxu0 0.0
        %2460 = vmatprep.subr.mxu0 0.0
        %2461 = vmatpush1.msra.mxu0 0.0
        %2462 = vmatprep.subr.mxu0 0.0
        %2463 = vmatpush1.msra.mxu0 0.0
        %2464 = vmatprep.subr.mxu0 0.0
        %2465 = vmatpush1.msra.mxu0 0.0
        %2466 = vmatprep.subr.mxu0 0.0
        %2467 = vmatpush1.msra.mxu0 0.0
        %2468 = vmatprep.subr.mxu0 0.0
        %2469 = vmatpush1.msra.mxu0 0.0
        %2470 = vmatprep.subr.mxu0 0.0
        %2471 = vmatpush1.msra.mxu0 0.0
        %2472 = vmatprep.subr.mxu0 0.0
        %2473 = vmatpush1.msra.mxu0 0.0
        %2474 = vmatprep.subr.mxu0 0.0
        %2475 = vmatpush1.msra.mxu0 0.0
        %2476 = vmatprep.subr.mxu0 0.0
        %2477 = vmatpush1.msra.mxu0 0.0
        %2478 = vmatprep.subr.mxu0 0.0
        %2479 = vmatpush1.msra.mxu0 0.0
        %2480 = vmatprep.subr.mxu0 0.0
        %2481 = vmatpush1.msra.mxu0 0.0
        %2482 = vmatprep.mubr.f32.mxu0 0.0
        %2483 = vmatmul.mubr.f32.gmra.mrb[0].mxu0 %v1328
        %v2484 = vpop.f32.mrb[0].mxu0
        %v2485 = vadd.f32 %v2260, %v2484
        %v2486 = vpop.f32.mrb[0].mxu0
        %2487 = vmatprep.mubr.f32.mxu0 0.0
        %2488 = vmatmul.mubr.f32.gmra.mrb[0].mxu0 %v1333
        %v2489 = vpop.f32.mrb[0].mxu0
        %v2490 = vadd.f32 %v2265, %v2489
        %v2491 = vpop.f32.mrb[0].mxu0
        %2492 = vmatprep.mubr.f32.mxu0 0.0
        %2493 = vmatmul.mubr.f32.gmra.mrb[0].mxu0 %v1338
        %v2494 = vpop.f32.mrb[0].mxu0
        %v2495 = vadd.f32 %v2270, %v2494
        %v2496 = vpop.f32.mrb[0].mxu0
        %2497 = vmatprep.mubr.f32.mxu0 0.0
        %2498 = vmatmul.mubr.f32.gmra.mrb[0].mxu0 %v1343
        %v2499 = vpop.f32.mrb[0].mxu0
        %v2500 = vadd.f32 %v2275, %v2499
        %v2501 = vpop.f32.mrb[0].mxu0
        %2502 = vmatprep.mubr.f32.mxu0 0.0
        %2503 = vmatmul.mubr.f32.gmra.mrb[0].mxu0 %v1348
        %v2504 = vpop.f32.mrb[0].mxu0
        %v2505 = vadd.f32 %v2280, %v2504
        %v2506 = vpop.f32.mrb[0].mxu0
        %2507 = vmatprep.mubr.f32.mxu0 0.0
        %2508 = vmatmul.mubr.f32.gmra.mrb[0].mxu0 %v1353
        %v2509 = vpop.f32.mrb[0].mxu0
        %v2510 = vadd.f32 %v2285, %v2509
        %v2511 = vpop.f32.mrb[0].mxu0
        %2512 = vmatprep.mubr.f32.mxu0 0.0
        %2513 = vmatmul.mubr.f32.gmra.mrb[0].mxu0 %v1358
        %v2514 = vpop.f32.mrb[0].mxu0
        %v2515 = vadd.f32 %v2290, %v2514
        %v2516 = vpop.f32.mrb[0].mxu0
        %2517 = vmatprep.mubr.f32.mxu0 0.0
        %2518 = vmatmul.mubr.f32.gmra.mrb[0].mxu0 %v1363
        %v2519 = vpop.f32.mrb[0].mxu0
        %v2520 = vadd.f32 %v2295, %v2519
        %v2521 = vpop.f32.mrb[0].mxu0
        %2522 = vmatprep.mubr.f32.mxu0 0.0
        %2523 = vmatmul.mubr.f32.gmra.mrb[0].mxu0 %v1368
        %v2524 = vpop.f32.mrb[0].mxu0
        %v2525 = vadd.f32 %v2300, %v2524
        %v2526 = vpop.f32.mrb[0].mxu0
        %2527 = vmatprep.mubr.f32.mxu0 0.0
        %2528 = vmatmul.mubr.f32.gmra.mrb[0].mxu0 %v1373
        %v2529 = vpop.f32.mrb[0].mxu0
        %v2530 = vadd.f32 %v2305, %v2529
        %v2531 = vpop.f32.mrb[0].mxu0
        %2532 = vmatprep.mubr.f32.mxu0 0.0
        %2533 = vmatmul.mubr.f32.gmra.mrb[0].mxu0 %v1378
        %v2534 = vpop.f32.mrb[0].mxu0
        %v2535 = vadd.f32 %v2310, %v2534
        %v2536 = vpop.f32.mrb[0].mxu0
        %2537 = vmatprep.mubr.f32.mxu0 0.0
        %2538 = vmatmul.mubr.f32.gmra.mrb[0].mxu0 %v1383
        %v2539 = vpop.f32.mrb[0].mxu0
        %v2540 = vadd.f32 %v2315, %v2539
        %v2541 = vpop.f32.mrb[0].mxu0
        %2542 = vmatprep.mubr.f32.mxu0 0.0
        %2543 = vmatmul.mubr.f32.gmra.mrb[0].mxu0 %v1388
        %v2544 = vpop.f32.mrb[0].mxu0
        %v2545 = vadd.f32 %v2320, %v2544
        %v2546 = vpop.f32.mrb[0].mxu0
        %2547 = vmatprep.mubr.f32.mxu0 0.0
        %2548 = vmatmul.mubr.f32.gmra.mrb[0].mxu0 %v1393
        %v2549 = vpop.f32.mrb[0].mxu0
        %v2550 = vadd.f32 %v2325, %v2549
        %v2551 = vpop.f32.mrb[0].mxu0
        %2552 = vmatprep.mubr.f32.mxu0 0.0
        %2553 = vmatmul.mubr.f32.gmra.mrb[0].mxu0 %v1398
        %v2554 = vpop.f32.mrb[0].mxu0
        %v2555 = vadd.f32 %v2330, %v2554
        %v2556 = vpop.f32.mrb[0].mxu0
        %2557 = vmatprep.mubr.f32.mxu0 0.0
        %2558 = vmatmul.mubr.f32.gmra.mrb[0].mxu0 %v1403
        %v2559 = vpop.f32.mrb[0].mxu0
        %v2560 = vadd.f32 %v2335, %v2559
        %v2561 = vpop.f32.mrb[0].mxu0
        %2562 = vmatprep.mubr.f32.mxu0 0.0
        %2563 = vmatmul.mubr.f32.gmra.mrb[0].mxu0 %v1408
        %v2564 = vpop.f32.mrb[0].mxu0
        %v2565 = vadd.f32 %v2340, %v2564
        %v2566 = vpop.f32.mrb[0].mxu0
        %2567 = vmatprep.mubr.f32.mxu0 0.0
        %2568 = vmatmul.mubr.f32.gmra.mrb[0].mxu0 %v1413
        %v2569 = vpop.f32.mrb[0].mxu0
        %v2570 = vadd.f32 %v2345, %v2569
        %v2571 = vpop.f32.mrb[0].mxu0
        %2572 = vmatprep.mubr.f32.mxu0 0.0
        %2573 = vmatmul.mubr.f32.gmra.mrb[0].mxu0 %v1418
        %v2574 = vpop.f32.mrb[0].mxu0
        %v2575 = vadd.f32 %v2350, %v2574
        %v2576 = vpop.f32.mrb[0].mxu0
        %2577 = vmatprep.mubr.f32.mxu0 0.0
        %2578 = vmatmul.mubr.f32.gmra.mrb[0].mxu0 %v1423
        %v2579 = vpop.f32.mrb[0].mxu0
        %v2580 = vadd.f32 %v2355, %v2579
        %v2581 = vpop.f32.mrb[0].mxu0
        %2582 = vmatprep.mubr.f32.mxu0 0.0
        %2583 = vmatmul.mubr.f32.gmra.mrb[0].mxu0 %v1428
        %v2584 = vpop.f32.mrb[0].mxu0
        %v2585 = vadd.f32 %v2360, %v2584
        %v2586 = vpop.f32.mrb[0].mxu0
        %2587 = vmatprep.mubr.f32.mxu0 0.0
        %2588 = vmatmul.mubr.f32.gmra.mrb[0].mxu0 %v1433
        %v2589 = vpop.f32.mrb[0].mxu0
        %v2590 = vadd.f32 %v2365, %v2589
        %v2591 = vpop.f32.mrb[0].mxu0
        %2592 = vmatprep.mubr.f32.mxu0 0.0
        %2593 = vmatmul.mubr.f32.gmra.mrb[0].mxu0 %v1438
        %v2594 = vpop.f32.mrb[0].mxu0
        %v2595 = vadd.f32 %v2370, %v2594
        %v2596 = vpop.f32.mrb[0].mxu0
        %2597 = vmatprep.mubr.f32.mxu0 0.0
        %2598 = vmatmul.mubr.f32.gmra.mrb[0].mxu0 %v1443
        %v2599 = vpop.f32.mrb[0].mxu0
        %v2600 = vadd.f32 %v2375, %v2599
        %v2601 = vpop.f32.mrb[0].mxu0
        %2602 = vmatprep.mubr.f32.mxu0 0.0
        %2603 = vmatmul.mubr.f32.gmra.mrb[0].mxu0 %v1448
        %v2604 = vpop.f32.mrb[0].mxu0
        %v2605 = vadd.f32 %v2380, %v2604
        %v2606 = vpop.f32.mrb[0].mxu0
        %2607 = vmatprep.mubr.f32.mxu0 0.0
        %2608 = vmatmul.mubr.f32.gmra.mrb[0].mxu0 %v1453
        %v2609 = vpop.f32.mrb[0].mxu0
        %v2610 = vadd.f32 %v2385, %v2609
        %v2611 = vpop.f32.mrb[0].mxu0
        %2612 = vmatprep.mubr.f32.mxu0 0.0
        %2613 = vmatmul.mubr.f32.gmra.mrb[0].mxu0 %v1458
        %v2614 = vpop.f32.mrb[0].mxu0
        %v2615 = vadd.f32 %v2390, %v2614
        %v2616 = vpop.f32.mrb[0].mxu0
        %2617 = vmatprep.mubr.f32.mxu0 0.0
        %2618 = vmatmul.mubr.f32.gmra.mrb[0].mxu0 %v1463
        %v2619 = vpop.f32.mrb[0].mxu0
        %v2620 = vadd.f32 %v2395, %v2619
        %v2621 = vpop.f32.mrb[0].mxu0
        %2622 = vmatprep.mubr.f32.mxu0 0.0
        %2623 = vmatmul.mubr.f32.gmra.mrb[0].mxu0 %v1468
        %v2624 = vpop.f32.mrb[0].mxu0
        %v2625 = vadd.f32 %v2400, %v2624
        %v2626 = vpop.f32.mrb[0].mxu0
        %2627 = vmatprep.mubr.f32.mxu0 0.0
        %2628 = vmatmul.mubr.f32.gmra.mrb[0].mxu0 %v1473
        %v2629 = vpop.f32.mrb[0].mxu0
        %v2630 = vadd.f32 %v2405, %v2629
        %v2631 = vpop.f32.mrb[0].mxu0
        %2632 = vmatprep.mubr.f32.mxu0 0.0
        %2633 = vmatmul.mubr.f32.gmra.mrb[0].mxu0 %v1478
        %v2634 = vpop.f32.mrb[0].mxu0
        %v2635 = vadd.f32 %v2410, %v2634
        %v2636 = vpop.f32.mrb[0].mxu0
        %2637 = vmatprep.mubr.f32.mxu0 0.0
        %2638 = vmatmul.mubr.f32.gmra.mrb[0].mxu0 %v1483
        %v2639 = vpop.f32.mrb[0].mxu0
        %v2640 = vadd.f32 %v2415, %v2639
        %v2641 = vpop.f32.mrb[0].mxu0
        %2642 = vdwg.mxu0
        %v2643 = vmax.f32 %v2003, 0.0
        %v2644 = vmax.f32 %v2005, 0.0
        %v2645 = vmax.f32 %v2485, 0.0
        %v2646 = vmax.f32 %v2009, 0.0
        %v2647 = vmax.f32 %v2011, 0.0
        %v2648 = vmax.f32 %v2490, 0.0
        %v2649 = vmax.f32 %v2015, 0.0
        %v2650 = vmax.f32 %v2017, 0.0
        %v2651 = vmax.f32 %v2495, 0.0
        %v2652 = vmax.f32 %v2021, 0.0
        %v2653 = vmax.f32 %v2023, 0.0
        %v2654 = vmax.f32 %v2500, 0.0
        %v2655 = vmax.f32 %v2027, 0.0
        %v2656 = vmax.f32 %v2029, 0.0
        %v2657 = vmax.f32 %v2505, 0.0
        %v2658 = vmax.f32 %v2033, 0.0
        %v2659 = vmax.f32 %v2035, 0.0
        %v2660 = vmax.f32 %v2510, 0.0
        %v2661 = vmax.f32 %v2039, 0.0
        %v2662 = vmax.f32 %v2041, 0.0
        %v2663 = vmax.f32 %v2515, 0.0
        %v2664 = vmax.f32 %v2045, 0.0
        %v2665 = vmax.f32 %v2047, 0.0
        %v2666 = vmax.f32 %v2520, 0.0
        %v2667 = vmax.f32 %v2051, 0.0
        %v2668 = vmax.f32 %v2053, 0.0
        %v2669 = vmax.f32 %v2525, 0.0
        %v2670 = vmax.f32 %v2057, 0.0
        %v2671 = vmax.f32 %v2059, 0.0
        %v2672 = vmax.f32 %v2530, 0.0
        %v2673 = vmax.f32 %v2063, 0.0
        %v2674 = vmax.f32 %v2065, 0.0
        %v2675 = vmax.f32 %v2535, 0.0
        %v2676 = vmax.f32 %v2069, 0.0
        %v2677 = vmax.f32 %v2071, 0.0
        %v2678 = vmax.f32 %v2540, 0.0
        %v2679 = vmax.f32 %v2075, 0.0
        %v2680 = vmax.f32 %v2077, 0.0
        %v2681 = vmax.f32 %v2545, 0.0
        %v2682 = vmax.f32 %v2081, 0.0
        %v2683 = vmax.f32 %v2083, 0.0
        %v2684 = vmax.f32 %v2550, 0.0
        %v2685 = vmax.f32 %v2087, 0.0
        %v2686 = vmax.f32 %v2089, 0.0
        %v2687 = vmax.f32 %v2555, 0.0
        %v2688 = vmax.f32 %v2093, 0.0
        %v2689 = vmax.f32 %v2095, 0.0
        %v2690 = vmax.f32 %v2560, 0.0
        %v2691 = vmax.f32 %v2099, 0.0
        %v2692 = vmax.f32 %v2101, 0.0
        %v2693 = vmax.f32 %v2565, 0.0
        %v2694 = vmax.f32 %v2105, 0.0
        %v2695 = vmax.f32 %v2107, 0.0
        %v2696 = vmax.f32 %v2570, 0.0
        %v2697 = vmax.f32 %v2111, 0.0
        %v2698 = vmax.f32 %v2113, 0.0
        %v2699 = vmax.f32 %v2575, 0.0
        %v2700 = vmax.f32 %v2117, 0.0
        %v2701 = vmax.f32 %v2119, 0.0
        %v2702 = vmax.f32 %v2580, 0.0
        %v2703 = vmax.f32 %v2123, 0.0
        %v2704 = vmax.f32 %v2125, 0.0
        %v2705 = vmax.f32 %v2585, 0.0
        %v2706 = vmax.f32 %v2129, 0.0
        %v2707 = vmax.f32 %v2131, 0.0
        %v2708 = vmax.f32 %v2590, 0.0
        %v2709 = vmax.f32 %v2135, 0.0
        %v2710 = vmax.f32 %v2137, 0.0
        %v2711 = vmax.f32 %v2595, 0.0
        %v2712 = vmax.f32 %v2141, 0.0
        %v2713 = vmax.f32 %v2143, 0.0
        %v2714 = vmax.f32 %v2600, 0.0
        %v2715 = vmax.f32 %v2147, 0.0
        %v2716 = vmax.f32 %v2149, 0.0
        %v2717 = vmax.f32 %v2605, 0.0
        %v2718 = vmax.f32 %v2153, 0.0
        %v2719 = vmax.f32 %v2155, 0.0
        %v2720 = vmax.f32 %v2610, 0.0
        %v2721 = vmax.f32 %v2159, 0.0
        %v2722 = vmax.f32 %v2161, 0.0
        %v2723 = vmax.f32 %v2615, 0.0
        %v2724 = vmax.f32 %v2165, 0.0
        %v2725 = vmax.f32 %v2167, 0.0
        %v2726 = vmax.f32 %v2620, 0.0
        %v2727 = vmax.f32 %v2171, 0.0
        %v2728 = vmax.f32 %v2173, 0.0
        %v2729 = vmax.f32 %v2625, 0.0
        %v2730 = vmax.f32 %v2177, 0.0
        %v2731 = vmax.f32 %v2179, 0.0
        %v2732 = vmax.f32 %v2630, 0.0
        %v2733 = vmax.f32 %v2183, 0.0
        %v2734 = vmax.f32 %v2185, 0.0
        %v2735 = vmax.f32 %v2635, 0.0
        %v2736 = vmax.f32 %v2189, 0.0
        %v2737 = vmax.f32 %v2191, 0.0
        %v2738 = vmax.f32 %v2640, 0.0
        %v2739 = vld [vmem:[%s481] sm:$0xff]
        %v2740 = vld [vmem:[%s481 + $0x8] sm:$0xff]
        %v2741 = vld [vmem:[%s481 + $0x10] sm:$0xff]
        %v2742 = vld [vmem:[%s481 + $0x18] sm:$0xff]
        %v2743 = vld [vmem:[%s481 + $0x20] sm:$0xff]
        %v2744 = vld [vmem:[%s481 + $0x28] sm:$0xff]
        %v2745 = vld [vmem:[%s481 + $0x30] sm:$0xff]
        %v2746 = vld [vmem:[%s481 + $0x38] sm:$0xff]
        %v2747 = vld [vmem:[%s481 + $0x40] sm:$0xff]
        %v2748 = vld [vmem:[%s481 + $0x48] sm:$0xff]
        %v2749 = vld [vmem:[%s481 + $0x50] sm:$0xff]
        %v2750 = vld [vmem:[%s481 + $0x58] sm:$0xff]
        %v2751 = vld [vmem:[%s481 + $0x60] sm:$0xff]
        %v2752 = vld [vmem:[%s481 + $0x68] sm:$0xff]
        %v2753 = vld [vmem:[%s481 + $0x70] sm:$0xff]
        %v2754 = vld [vmem:[%s481 + $0x78] sm:$0xff]
        %v2755 = vld [vmem:[%s481 + $0x80] sm:$0xff]
        %v2756 = vld [vmem:[%s481 + $0x88] sm:$0xff]
        %v2757 = vld [vmem:[%s481 + $0x90] sm:$0xff]
        %v2758 = vld [vmem:[%s481 + $0x98] sm:$0xff]
        %v2759 = vld [vmem:[%s481 + $0xa0] sm:$0xff]
        %v2760 = vld [vmem:[%s481 + $0xa8] sm:$0xff]
        %v2761 = vld [vmem:[%s481 + $0xb0] sm:$0xff]
        %v2762 = vld [vmem:[%s481 + $0xb8] sm:$0xff]
        %v2763 = vld [vmem:[%s481 + $0xc0] sm:$0xff]
        %v2764 = vld [vmem:[%s481 + $0xc8] sm:$0xff]
        %v2765 = vld [vmem:[%s481 + $0xd0] sm:$0xff]
        %v2766 = vld [vmem:[%s481 + $0xd8] sm:$0xff]
        %v2767 = vld [vmem:[%s481 + $0xe0] sm:$0xff]
        %v2768 = vld [vmem:[%s481 + $0xe8] sm:$0xff]
        %v2769 = vld [vmem:[%s481 + $0xf0] sm:$0xff]
        %v2770 = vld [vmem:[%s481 + $0xf8] sm:$0xff]
        %vm2771 = vcmp.eq.s32.totalorder %v2739, 1
        %vm2772 = vcmp.eq.s32.totalorder %v2740, 1
        %vm2773 = vcmp.eq.s32.totalorder %v2741, 1
        %vm2774 = vcmp.eq.s32.totalorder %v2742, 1
        %vm2775 = vcmp.eq.s32.totalorder %v2743, 1
        %vm2776 = vcmp.eq.s32.totalorder %v2744, 1
        %vm2777 = vcmp.eq.s32.totalorder %v2745, 1
        %vm2778 = vcmp.eq.s32.totalorder %v2746, 1
        %vm2779 = vcmp.eq.s32.totalorder %v2747, 1
        %vm2780 = vcmp.eq.s32.totalorder %v2748, 1
        %vm2781 = vcmp.eq.s32.totalorder %v2749, 1
        %vm2782 = vcmp.eq.s32.totalorder %v2750, 1
        %vm2783 = vcmp.eq.s32.totalorder %v2751, 1
        %vm2784 = vcmp.eq.s32.totalorder %v2752, 1
        %vm2785 = vcmp.eq.s32.totalorder %v2753, 1
        %vm2786 = vcmp.eq.s32.totalorder %v2754, 1
        %vm2787 = vcmp.eq.s32.totalorder %v2755, 1
        %vm2788 = vcmp.eq.s32.totalorder %v2756, 1
        %vm2789 = vcmp.eq.s32.totalorder %v2757, 1
        %vm2790 = vcmp.eq.s32.totalorder %v2758, 1
        %vm2791 = vcmp.eq.s32.totalorder %v2759, 1
        %vm2792 = vcmp.eq.s32.totalorder %v2760, 1
        %vm2793 = vcmp.eq.s32.totalorder %v2761, 1
        %vm2794 = vcmp.eq.s32.totalorder %v2762, 1
        %vm2795 = vcmp.eq.s32.totalorder %v2763, 1
        %vm2796 = vcmp.eq.s32.totalorder %v2764, 1
        %vm2797 = vcmp.eq.s32.totalorder %v2765, 1
        %vm2798 = vcmp.eq.s32.totalorder %v2766, 1
        %vm2799 = vcmp.eq.s32.totalorder %v2767, 1
        %vm2800 = vcmp.eq.s32.totalorder %v2768, 1
        %vm2801 = vcmp.eq.s32.totalorder %v2769, 1
        %vm2802 = vcmp.eq.s32.totalorder %v2770, 1
        %v2803 = vsel %vm2771, 1, 0
        %v2804 = vsel %vm2772, 1, 0
        %v2805 = vsel %vm2773, 1, 0
        %v2806 = vsel %vm2774, 1, 0
        %v2807 = vsel %vm2775, 1, 0
        %v2808 = vsel %vm2776, 1, 0
        %v2809 = vsel %vm2777, 1, 0
        %v2810 = vsel %vm2778, 1, 0
        %v2811 = vsel %vm2779, 1, 0
        %v2812 = vsel %vm2780, 1, 0
        %v2813 = vsel %vm2781, 1, 0
        %v2814 = vsel %vm2782, 1, 0
        %v2815 = vsel %vm2783, 1, 0
        %v2816 = vsel %vm2784, 1, 0
        %v2817 = vsel %vm2785, 1, 0
        %v2818 = vsel %vm2786, 1, 0
        %v2819 = vsel %vm2787, 1, 0
        %v2820 = vsel %vm2788, 1, 0
        %v2821 = vsel %vm2789, 1, 0
        %v2822 = vsel %vm2790, 1, 0
        %v2823 = vsel %vm2791, 1, 0
        %v2824 = vsel %vm2792, 1, 0
        %v2825 = vsel %vm2793, 1, 0
        %v2826 = vsel %vm2794, 1, 0
        %v2827 = vsel %vm2795, 1, 0
        %v2828 = vsel %vm2796, 1, 0
        %v2829 = vsel %vm2797, 1, 0
        %v2830 = vsel %vm2798, 1, 0
        %v2831 = vsel %vm2799, 1, 0
        %v2832 = vsel %vm2800, 1, 0
        %v2833 = vsel %vm2801, 1, 0
        %v2834 = vsel %vm2802, 1, 0
        %2835 = vset.pattern.permute.xlu0 0
        %2836 = vperm.xlu0 %2835, %v2803
        %v2837 = vpop.permute.xlu0 %2836
        %2838 = vset.pattern.permute.xlu0 0
        %2839 = vperm.xlu0 %2838, %v2804
        %v2840 = vpop.permute.xlu0 %2839
        %2841 = vset.pattern.permute.xlu0 0
        %2842 = vperm.xlu0 %2841, %v2805
        %v2843 = vpop.permute.xlu0 %2842
        %2844 = vset.pattern.permute.xlu0 0
        %2845 = vperm.xlu0 %2844, %v2806
        %v2846 = vpop.permute.xlu0 %2845
        %2847 = vset.pattern.permute.xlu0 0
        %2848 = vperm.xlu0 %2847, %v2807
        %v2849 = vpop.permute.xlu0 %2848
        %2850 = vset.pattern.permute.xlu0 0
        %2851 = vperm.xlu0 %2850, %v2808
        %v2852 = vpop.permute.xlu0 %2851
        %2853 = vset.pattern.permute.xlu0 0
        %2854 = vperm.xlu0 %2853, %v2809
        %v2855 = vpop.permute.xlu0 %2854
        %2856 = vset.pattern.permute.xlu0 0
        %2857 = vperm.xlu0 %2856, %v2810
        %v2858 = vpop.permute.xlu0 %2857
        %2859 = vset.pattern.permute.xlu0 0
        %2860 = vperm.xlu0 %2859, %v2811
        %v2861 = vpop.permute.xlu0 %2860
        %2862 = vset.pattern.permute.xlu0 0
        %2863 = vperm.xlu0 %2862, %v2812
        %v2864 = vpop.permute.xlu0 %2863
        %2865 = vset.pattern.permute.xlu0 0
        %2866 = vperm.xlu0 %2865, %v2813
        %v2867 = vpop.permute.xlu0 %2866
        %2868 = vset.pattern.permute.xlu0 0
        %2869 = vperm.xlu0 %2868, %v2814
        %v2870 = vpop.permute.xlu0 %2869
        %2871 = vset.pattern.permute.xlu0 0
        %2872 = vperm.xlu0 %2871, %v2815
        %v2873 = vpop.permute.xlu0 %2872
        %2874 = vset.pattern.permute.xlu0 0
        %2875 = vperm.xlu0 %2874, %v2816
        %v2876 = vpop.permute.xlu0 %2875
        %2877 = vset.pattern.permute.xlu0 0
        %2878 = vperm.xlu0 %2877, %v2817
        %v2879 = vpop.permute.xlu0 %2878
        %2880 = vset.pattern.permute.xlu0 0
        %2881 = vperm.xlu0 %2880, %v2818
        %v2882 = vpop.permute.xlu0 %2881
        %2883 = vset.pattern.permute.xlu0 0
        %2884 = vperm.xlu0 %2883, %v2819
        %v2885 = vpop.permute.xlu0 %2884
        %2886 = vset.pattern.permute.xlu0 0
        %2887 = vperm.xlu0 %2886, %v2820
        %v2888 = vpop.permute.xlu0 %2887
        %2889 = vset.pattern.permute.xlu0 0
        %2890 = vperm.xlu0 %2889, %v2821
        %v2891 = vpop.permute.xlu0 %2890
        %2892 = vset.pattern.permute.xlu0 0
        %2893 = vperm.xlu0 %2892, %v2822
        %v2894 = vpop.permute.xlu0 %2893
        %2895 = vset.pattern.permute.xlu0 0
        %2896 = vperm.xlu0 %2895, %v2823
        %v2897 = vpop.permute.xlu0 %2896
        %2898 = vset.pattern.permute.xlu0 0
        %2899 = vperm.xlu0 %2898, %v2824
        %v2900 = vpop.permute.xlu0 %2899
        %2901 = vset.pattern.permute.xlu0 0
        %2902 = vperm.xlu0 %2901, %v2825
        %v2903 = vpop.permute.xlu0 %2902
        %2904 = vset.pattern.permute.xlu0 0
        %2905 = vperm.xlu0 %2904, %v2826
        %v2906 = vpop.permute.xlu0 %2905
        %2907 = vset.pattern.permute.xlu0 0
        %2908 = vperm.xlu0 %2907, %v2827
        %v2909 = vpop.permute.xlu0 %2908
        %2910 = vset.pattern.permute.xlu0 0
        %2911 = vperm.xlu0 %2910, %v2828
        %v2912 = vpop.permute.xlu0 %2911
        %2913 = vset.pattern.permute.xlu0 0
        %2914 = vperm.xlu0 %2913, %v2829
        %v2915 = vpop.permute.xlu0 %2914
        %2916 = vset.pattern.permute.xlu0 0
        %2917 = vperm.xlu0 %2916, %v2830
        %v2918 = vpop.permute.xlu0 %2917
        %2919 = vset.pattern.permute.xlu0 0
        %2920 = vperm.xlu0 %2919, %v2831
        %v2921 = vpop.permute.xlu0 %2920
        %2922 = vset.pattern.permute.xlu0 0
        %2923 = vperm.xlu0 %2922, %v2832
        %v2924 = vpop.permute.xlu0 %2923
        %2925 = vset.pattern.permute.xlu0 0
        %2926 = vperm.xlu0 %2925, %v2833
        %v2927 = vpop.permute.xlu0 %2926
        %2928 = vset.pattern.permute.xlu0 0
        %2929 = vperm.xlu0 %2928, %v2834
        %v2930 = vpop.permute.xlu0 %2929
        %vm2931 = vcmp.eq.s32.totalorder %v2837, 1
        %vm2932 = vcmp.eq.s32.totalorder %v2840, 1
        %vm2933 = vcmp.eq.s32.totalorder %v2843, 1
        %vm2934 = vcmp.eq.s32.totalorder %v2846, 1
        %vm2935 = vcmp.eq.s32.totalorder %v2849, 1
        %vm2936 = vcmp.eq.s32.totalorder %v2852, 1
        %vm2937 = vcmp.eq.s32.totalorder %v2855, 1
        %vm2938 = vcmp.eq.s32.totalorder %v2858, 1
        %vm2939 = vcmp.eq.s32.totalorder %v2861, 1
        %vm2940 = vcmp.eq.s32.totalorder %v2864, 1
        %vm2941 = vcmp.eq.s32.totalorder %v2867, 1
        %vm2942 = vcmp.eq.s32.totalorder %v2870, 1
        %vm2943 = vcmp.eq.s32.totalorder %v2873, 1
        %vm2944 = vcmp.eq.s32.totalorder %v2876, 1
        %vm2945 = vcmp.eq.s32.totalorder %v2879, 1
        %vm2946 = vcmp.eq.s32.totalorder %v2882, 1
        %vm2947 = vcmp.eq.s32.totalorder %v2885, 1
        %vm2948 = vcmp.eq.s32.totalorder %v2888, 1
        %vm2949 = vcmp.eq.s32.totalorder %v2891, 1
        %vm2950 = vcmp.eq.s32.totalorder %v2894, 1
        %vm2951 = vcmp.eq.s32.totalorder %v2897, 1
        %vm2952 = vcmp.eq.s32.totalorder %v2900, 1
        %vm2953 = vcmp.eq.s32.totalorder %v2903, 1
        %vm2954 = vcmp.eq.s32.totalorder %v2906, 1
        %vm2955 = vcmp.eq.s32.totalorder %v2909, 1
        %vm2956 = vcmp.eq.s32.totalorder %v2912, 1
        %vm2957 = vcmp.eq.s32.totalorder %v2915, 1
        %vm2958 = vcmp.eq.s32.totalorder %v2918, 1
        %vm2959 = vcmp.eq.s32.totalorder %v2921, 1
        %vm2960 = vcmp.eq.s32.totalorder %v2924, 1
        %vm2961 = vcmp.eq.s32.totalorder %v2927, 1
        %vm2962 = vcmp.eq.s32.totalorder %v2930, 1
        %v2963 = vsel %vm2931, %v2644, %v2643
        %v2964 = vsel %vm2932, %v2647, %v2646
        %v2965 = vsel %vm2933, %v2650, %v2649
        %v2966 = vsel %vm2934, %v2653, %v2652
        %v2967 = vsel %vm2935, %v2656, %v2655
        %v2968 = vsel %vm2936, %v2659, %v2658
        %v2969 = vsel %vm2937, %v2662, %v2661
        %v2970 = vsel %vm2938, %v2665, %v2664
        %v2971 = vsel %vm2939, %v2668, %v2667
        %v2972 = vsel %vm2940, %v2671, %v2670
        %v2973 = vsel %vm2941, %v2674, %v2673
        %v2974 = vsel %vm2942, %v2677, %v2676
        %v2975 = vsel %vm2943, %v2680, %v2679
        %v2976 = vsel %vm2944, %v2683, %v2682
        %v2977 = vsel %vm2945, %v2686, %v2685
        %v2978 = vsel %vm2946, %v2689, %v2688
        %v2979 = vsel %vm2947, %v2692, %v2691
        %v2980 = vsel %vm2948, %v2695, %v2694
        %v2981 = vsel %vm2949, %v2698, %v2697
        %v2982 = vsel %vm2950, %v2701, %v2700
        %v2983 = vsel %vm2951, %v2704, %v2703
        %v2984 = vsel %vm2952, %v2707, %v2706
        %v2985 = vsel %vm2953, %v2710, %v2709
        %v2986 = vsel %vm2954, %v2713, %v2712
        %v2987 = vsel %vm2955, %v2716, %v2715
        %v2988 = vsel %vm2956, %v2719, %v2718
        %v2989 = vsel %vm2957, %v2722, %v2721
        %v2990 = vsel %vm2958, %v2725, %v2724
        %v2991 = vsel %vm2959, %v2728, %v2727
        %v2992 = vsel %vm2960, %v2731, %v2730
        %v2993 = vsel %vm2961, %v2734, %v2733
        %v2994 = vsel %vm2962, %v2737, %v2736
        %vm2995 = vcmp.eq.s32.totalorder %v2739, 2
        %vm2996 = vcmp.eq.s32.totalorder %v2740, 2
        %vm2997 = vcmp.eq.s32.totalorder %v2741, 2
        %vm2998 = vcmp.eq.s32.totalorder %v2742, 2
        %vm2999 = vcmp.eq.s32.totalorder %v2743, 2
        %vm3000 = vcmp.eq.s32.totalorder %v2744, 2
        %vm3001 = vcmp.eq.s32.totalorder %v2745, 2
        %vm3002 = vcmp.eq.s32.totalorder %v2746, 2
        %vm3003 = vcmp.eq.s32.totalorder %v2747, 2
        %vm3004 = vcmp.eq.s32.totalorder %v2748, 2
        %vm3005 = vcmp.eq.s32.totalorder %v2749, 2
        %vm3006 = vcmp.eq.s32.totalorder %v2750, 2
        %vm3007 = vcmp.eq.s32.totalorder %v2751, 2
        %vm3008 = vcmp.eq.s32.totalorder %v2752, 2
        %vm3009 = vcmp.eq.s32.totalorder %v2753, 2
        %vm3010 = vcmp.eq.s32.totalorder %v2754, 2
        %vm3011 = vcmp.eq.s32.totalorder %v2755, 2
        %vm3012 = vcmp.eq.s32.totalorder %v2756, 2
        %vm3013 = vcmp.eq.s32.totalorder %v2757, 2
        %vm3014 = vcmp.eq.s32.totalorder %v2758, 2
        %vm3015 = vcmp.eq.s32.totalorder %v2759, 2
        %vm3016 = vcmp.eq.s32.totalorder %v2760, 2
        %vm3017 = vcmp.eq.s32.totalorder %v2761, 2
        %vm3018 = vcmp.eq.s32.totalorder %v2762, 2
        %vm3019 = vcmp.eq.s32.totalorder %v2763, 2
        %vm3020 = vcmp.eq.s32.totalorder %v2764, 2
        %vm3021 = vcmp.eq.s32.totalorder %v2765, 2
        %vm3022 = vcmp.eq.s32.totalorder %v2766, 2
        %vm3023 = vcmp.eq.s32.totalorder %v2767, 2
        %vm3024 = vcmp.eq.s32.totalorder %v2768, 2
        %vm3025 = vcmp.eq.s32.totalorder %v2769, 2
        %vm3026 = vcmp.eq.s32.totalorder %v2770, 2
        %v3027 = vsel %vm2995, 1, 0
        %v3028 = vsel %vm2996, 1, 0
        %v3029 = vsel %vm2997, 1, 0
        %v3030 = vsel %vm2998, 1, 0
        %v3031 = vsel %vm2999, 1, 0
        %v3032 = vsel %vm3000, 1, 0
        %v3033 = vsel %vm3001, 1, 0
        %v3034 = vsel %vm3002, 1, 0
        %v3035 = vsel %vm3003, 1, 0
        %v3036 = vsel %vm3004, 1, 0
        %v3037 = vsel %vm3005, 1, 0
        %v3038 = vsel %vm3006, 1, 0
        %v3039 = vsel %vm3007, 1, 0
        %v3040 = vsel %vm3008, 1, 0
        %v3041 = vsel %vm3009, 1, 0
        %v3042 = vsel %vm3010, 1, 0
        %v3043 = vsel %vm3011, 1, 0
        %v3044 = vsel %vm3012, 1, 0
        %v3045 = vsel %vm3013, 1, 0
        %v3046 = vsel %vm3014, 1, 0
        %v3047 = vsel %vm3015, 1, 0
        %v3048 = vsel %vm3016, 1, 0
        %v3049 = vsel %vm3017, 1, 0
        %v3050 = vsel %vm3018, 1, 0
        %v3051 = vsel %vm3019, 1, 0
        %v3052 = vsel %vm3020, 1, 0
        %v3053 = vsel %vm3021, 1, 0
        %v3054 = vsel %vm3022, 1, 0
        %v3055 = vsel %vm3023, 1, 0
        %v3056 = vsel %vm3024, 1, 0
        %v3057 = vsel %vm3025, 1, 0
        %v3058 = vsel %vm3026, 1, 0
        %3059 = vset.pattern.permute.xlu0 0
        %3060 = vperm.xlu0 %3059, %v3027
        %v3061 = vpop.permute.xlu0 %3060
        %3062 = vset.pattern.permute.xlu0 0
        %3063 = vperm.xlu0 %3062, %v3028
        %v3064 = vpop.permute.xlu0 %3063
        %3065 = vset.pattern.permute.xlu0 0
        %3066 = vperm.xlu0 %3065, %v3029
        %v3067 = vpop.permute.xlu0 %3066
        %3068 = vset.pattern.permute.xlu0 0
        %3069 = vperm.xlu0 %3068, %v3030
        %v3070 = vpop.permute.xlu0 %3069
        %3071 = vset.pattern.permute.xlu0 0
        %3072 = vperm.xlu0 %3071, %v3031
        %v3073 = vpop.permute.xlu0 %3072
        %3074 = vset.pattern.permute.xlu0 0
        %3075 = vperm.xlu0 %3074, %v3032
        %v3076 = vpop.permute.xlu0 %3075
        %3077 = vset.pattern.permute.xlu0 0
        %3078 = vperm.xlu0 %3077, %v3033
        %v3079 = vpop.permute.xlu0 %3078
        %3080 = vset.pattern.permute.xlu0 0
        %3081 = vperm.xlu0 %3080, %v3034
        %v3082 = vpop.permute.xlu0 %3081
        %3083 = vset.pattern.permute.xlu0 0
        %3084 = vperm.xlu0 %3083, %v3035
        %v3085 = vpop.permute.xlu0 %3084
        %3086 = vset.pattern.permute.xlu0 0
        %3087 = vperm.xlu0 %3086, %v3036
        %v3088 = vpop.permute.xlu0 %3087
        %3089 = vset.pattern.permute.xlu0 0
        %3090 = vperm.xlu0 %3089, %v3037
        %v3091 = vpop.permute.xlu0 %3090
        %3092 = vset.pattern.permute.xlu0 0
        %3093 = vperm.xlu0 %3092, %v3038
        %v3094 = vpop.permute.xlu0 %3093
        %3095 = vset.pattern.permute.xlu0 0
        %3096 = vperm.xlu0 %3095, %v3039
        %v3097 = vpop.permute.xlu0 %3096
        %3098 = vset.pattern.permute.xlu0 0
        %3099 = vperm.xlu0 %3098, %v3040
        %v3100 = vpop.permute.xlu0 %3099
        %3101 = vset.pattern.permute.xlu0 0
        %3102 = vperm.xlu0 %3101, %v3041
        %v3103 = vpop.permute.xlu0 %3102
        %3104 = vset.pattern.permute.xlu0 0
        %3105 = vperm.xlu0 %3104, %v3042
        %v3106 = vpop.permute.xlu0 %3105
        %3107 = vset.pattern.permute.xlu0 0
        %3108 = vperm.xlu0 %3107, %v3043
        %v3109 = vpop.permute.xlu0 %3108
        %3110 = vset.pattern.permute.xlu0 0
        %3111 = vperm.xlu0 %3110, %v3044
        %v3112 = vpop.permute.xlu0 %3111
        %3113 = vset.pattern.permute.xlu0 0
        %3114 = vperm.xlu0 %3113, %v3045
        %v3115 = vpop.permute.xlu0 %3114
        %3116 = vset.pattern.permute.xlu0 0
        %3117 = vperm.xlu0 %3116, %v3046
        %v3118 = vpop.permute.xlu0 %3117
        %3119 = vset.pattern.permute.xlu0 0
        %3120 = vperm.xlu0 %3119, %v3047
        %v3121 = vpop.permute.xlu0 %3120
        %3122 = vset.pattern.permute.xlu0 0
        %3123 = vperm.xlu0 %3122, %v3048
        %v3124 = vpop.permute.xlu0 %3123
        %3125 = vset.pattern.permute.xlu0 0
        %3126 = vperm.xlu0 %3125, %v3049
        %v3127 = vpop.permute.xlu0 %3126
        %3128 = vset.pattern.permute.xlu0 0
        %3129 = vperm.xlu0 %3128, %v3050
        %v3130 = vpop.permute.xlu0 %3129
        %3131 = vset.pattern.permute.xlu0 0
        %3132 = vperm.xlu0 %3131, %v3051
        %v3133 = vpop.permute.xlu0 %3132
        %3134 = vset.pattern.permute.xlu0 0
        %3135 = vperm.xlu0 %3134, %v3052
        %v3136 = vpop.permute.xlu0 %3135
        %3137 = vset.pattern.permute.xlu0 0
        %3138 = vperm.xlu0 %3137, %v3053
        %v3139 = vpop.permute.xlu0 %3138
        %3140 = vset.pattern.permute.xlu0 0
        %3141 = vperm.xlu0 %3140, %v3054
        %v3142 = vpop.permute.xlu0 %3141
        %3143 = vset.pattern.permute.xlu0 0
        %3144 = vperm.xlu0 %3143, %v3055
        %v3145 = vpop.permute.xlu0 %3144
        %3146 = vset.pattern.permute.xlu0 0
        %3147 = vperm.xlu0 %3146, %v3056
        %v3148 = vpop.permute.xlu0 %3147
        %3149 = vset.pattern.permute.xlu0 0
        %3150 = vperm.xlu0 %3149, %v3057
        %v3151 = vpop.permute.xlu0 %3150
        %3152 = vset.pattern.permute.xlu0 0
        %3153 = vperm.xlu0 %3152, %v3058
        %v3154 = vpop.permute.xlu0 %3153
        %vm3155 = vcmp.eq.s32.totalorder %v3061, 1
        %vm3156 = vcmp.eq.s32.totalorder %v3064, 1
        %vm3157 = vcmp.eq.s32.totalorder %v3067, 1
        %vm3158 = vcmp.eq.s32.totalorder %v3070, 1
        %vm3159 = vcmp.eq.s32.totalorder %v3073, 1
        %vm3160 = vcmp.eq.s32.totalorder %v3076, 1
        %vm3161 = vcmp.eq.s32.totalorder %v3079, 1
        %vm3162 = vcmp.eq.s32.totalorder %v3082, 1
        %vm3163 = vcmp.eq.s32.totalorder %v3085, 1
        %vm3164 = vcmp.eq.s32.totalorder %v3088, 1
        %vm3165 = vcmp.eq.s32.totalorder %v3091, 1
        %vm3166 = vcmp.eq.s32.totalorder %v3094, 1
        %vm3167 = vcmp.eq.s32.totalorder %v3097, 1
        %vm3168 = vcmp.eq.s32.totalorder %v3100, 1
        %vm3169 = vcmp.eq.s32.totalorder %v3103, 1
        %vm3170 = vcmp.eq.s32.totalorder %v3106, 1
        %vm3171 = vcmp.eq.s32.totalorder %v3109, 1
        %vm3172 = vcmp.eq.s32.totalorder %v3112, 1
        %vm3173 = vcmp.eq.s32.totalorder %v3115, 1
        %vm3174 = vcmp.eq.s32.totalorder %v3118, 1
        %vm3175 = vcmp.eq.s32.totalorder %v3121, 1
        %vm3176 = vcmp.eq.s32.totalorder %v3124, 1
        %vm3177 = vcmp.eq.s32.totalorder %v3127, 1
        %vm3178 = vcmp.eq.s32.totalorder %v3130, 1
        %vm3179 = vcmp.eq.s32.totalorder %v3133, 1
        %vm3180 = vcmp.eq.s32.totalorder %v3136, 1
        %vm3181 = vcmp.eq.s32.totalorder %v3139, 1
        %vm3182 = vcmp.eq.s32.totalorder %v3142, 1
        %vm3183 = vcmp.eq.s32.totalorder %v3145, 1
        %vm3184 = vcmp.eq.s32.totalorder %v3148, 1
        %vm3185 = vcmp.eq.s32.totalorder %v3151, 1
        %vm3186 = vcmp.eq.s32.totalorder %v3154, 1
        %v3187 = vsel %vm3155, %v2645, %v2963
        %v3188 = vsel %vm3156, %v2648, %v2964
        %v3189 = vsel %vm3157, %v2651, %v2965
        %v3190 = vsel %vm3158, %v2654, %v2966
        %v3191 = vsel %vm3159, %v2657, %v2967
        %v3192 = vsel %vm3160, %v2660, %v2968
        %v3193 = vsel %vm3161, %v2663, %v2969
        %v3194 = vsel %vm3162, %v2666, %v2970
        %v3195 = vsel %vm3163, %v2669, %v2971
        %v3196 = vsel %vm3164, %v2672, %v2972
        %v3197 = vsel %vm3165, %v2675, %v2973
        %v3198 = vsel %vm3166, %v2678, %v2974
        %v3199 = vsel %vm3167, %v2681, %v2975
        %v3200 = vsel %vm3168, %v2684, %v2976
        %v3201 = vsel %vm3169, %v2687, %v2977
        %v3202 = vsel %vm3170, %v2690, %v2978
        %v3203 = vsel %vm3171, %v2693, %v2979
        %v3204 = vsel %vm3172, %v2696, %v2980
        %v3205 = vsel %vm3173, %v2699, %v2981
        %v3206 = vsel %vm3174, %v2702, %v2982
        %v3207 = vsel %vm3175, %v2705, %v2983
        %v3208 = vsel %vm3176, %v2708, %v2984
        %v3209 = vsel %vm3177, %v2711, %v2985
        %v3210 = vsel %vm3178, %v2714, %v2986
        %v3211 = vsel %vm3179, %v2717, %v2987
        %v3212 = vsel %vm3180, %v2720, %v2988
        %v3213 = vsel %vm3181, %v2723, %v2989
        %v3214 = vsel %vm3182, %v2726, %v2990
        %v3215 = vsel %vm3183, %v2729, %v2991
        %v3216 = vsel %vm3184, %v2732, %v2992
        %v3217 = vsel %vm3185, %v2735, %v2993
        %v3218 = vsel %vm3186, %v2738, %v2994
        %3219 = vst [vmem:[%s541] sm:$0xff] %v3187
        %3220 = vst [vmem:[%s541 + $0x8] sm:$0xff] %v3188
        %3221 = vst [vmem:[%s541 + $0x10] sm:$0xff] %v3189
        %3222 = vst [vmem:[%s541 + $0x18] sm:$0xff] %v3190
        %3223 = vst [vmem:[%s541 + $0x20] sm:$0xff] %v3191
        %3224 = vst [vmem:[%s541 + $0x28] sm:$0xff] %v3192
        %3225 = vst [vmem:[%s541 + $0x30] sm:$0xff] %v3193
        %3226 = vst [vmem:[%s541 + $0x38] sm:$0xff] %v3194
        %3227 = vst [vmem:[%s541 + $0x40] sm:$0xff] %v3195
        %3228 = vst [vmem:[%s541 + $0x48] sm:$0xff] %v3196
        %3229 = vst [vmem:[%s541 + $0x50] sm:$0xff] %v3197
        %3230 = vst [vmem:[%s541 + $0x58] sm:$0xff] %v3198
        %3231 = vst [vmem:[%s541 + $0x60] sm:$0xff] %v3199
        %3232 = vst [vmem:[%s541 + $0x68] sm:$0xff] %v3200
        %3233 = vst [vmem:[%s541 + $0x70] sm:$0xff] %v3201
        %3234 = vst [vmem:[%s541 + $0x78] sm:$0xff] %v3202
        %3235 = vst [vmem:[%s541 + $0x80] sm:$0xff] %v3203
        %3236 = vst [vmem:[%s541 + $0x88] sm:$0xff] %v3204
        %3237 = vst [vmem:[%s541 + $0x90] sm:$0xff] %v3205
        %3238 = vst [vmem:[%s541 + $0x98] sm:$0xff] %v3206
        %3239 = vst [vmem:[%s541 + $0xa0] sm:$0xff] %v3207
        %3240 = vst [vmem:[%s541 + $0xa8] sm:$0xff] %v3208
        %3241 = vst [vmem:[%s541 + $0xb0] sm:$0xff] %v3209
        %3242 = vst [vmem:[%s541 + $0xb8] sm:$0xff] %v3210
        %3243 = vst [vmem:[%s541 + $0xc0] sm:$0xff] %v3211
        %3244 = vst [vmem:[%s541 + $0xc8] sm:$0xff] %v3212
        %3245 = vst [vmem:[%s541 + $0xd0] sm:$0xff] %v3213
        %3246 = vst [vmem:[%s541 + $0xd8] sm:$0xff] %v3214
        %3247 = vst [vmem:[%s541 + $0xe0] sm:$0xff] %v3215
        %3248 = vst [vmem:[%s541 + $0xe8] sm:$0xff] %v3216
        %3249 = vst [vmem:[%s541 + $0xf0] sm:$0xff] %v3217
        %3250 = vst [vmem:[%s541 + $0xf8] sm:$0xff] %v3218
        %v3251 = vlaneseq
        %v3252 = vshrl.u32 %v3251, 7
        %v3253 = vadd.s32 %v3252, 8
        %v3254 = vadd.s32 %v3252, 16
        %v3255 = vadd.s32 %v3252, 24
        %v3256 = vadd.s32 %v3252, 32
        %v3257 = vadd.s32 %v3252, 40
        %v3258 = vadd.s32 %v3252, 48
        %v3259 = vadd.s32 %v3252, 56
        %v3260 = vadd.s32 %v3252, 64
        %v3261 = vadd.s32 %v3252, 72
        %v3262 = vadd.s32 %v3252, 80
        %v3263 = vadd.s32 %v3252, 88
        %v3264 = vadd.s32 %v3252, 96
        %v3265 = vadd.s32 %v3252, 104
        %v3266 = vadd.s32 %v3252, 112
        %v3267 = vadd.s32 %v3252, 120
        %v3268 = vld [vmem:[%s472] sm:$0x3]
        %v3269 = vlaneseq
        %v3270 = vshrl.u32 %v3269, 7
        %v3271 = vsub.s32 0, %v3270
        %v3272 = vrot.slane %v3268, %v3271
        %v3273 = vlaneseq
        %v3274 = vshrl.u32 %v3273, 7
        %v3275 = vsub.s32 1, %v3274
        %v3276 = vrot.slane %v3268, %v3275
        %vm3277 = vcmp.eq.s32.totalorder %v3252, %v3272
        %vm3278 = vcmp.eq.s32.totalorder %v3252, %v3276
        %vm3279 = vcmp.eq.s32.totalorder %v3253, %v3272
        %vm3280 = vcmp.eq.s32.totalorder %v3253, %v3276
        %vm3281 = vcmp.eq.s32.totalorder %v3254, %v3272
        %vm3282 = vcmp.eq.s32.totalorder %v3254, %v3276
        %vm3283 = vcmp.eq.s32.totalorder %v3255, %v3272
        %vm3284 = vcmp.eq.s32.totalorder %v3255, %v3276
        %vm3285 = vcmp.eq.s32.totalorder %v3256, %v3272
        %vm3286 = vcmp.eq.s32.totalorder %v3256, %v3276
        %vm3287 = vcmp.eq.s32.totalorder %v3257, %v3272
        %vm3288 = vcmp.eq.s32.totalorder %v3257, %v3276
        %vm3289 = vcmp.eq.s32.totalorder %v3258, %v3272
        %vm3290 = vcmp.eq.s32.totalorder %v3258, %v3276
        %vm3291 = vcmp.eq.s32.totalorder %v3259, %v3272
        %vm3292 = vcmp.eq.s32.totalorder %v3259, %v3276
        %vm3293 = vcmp.eq.s32.totalorder %v3260, %v3272
        %vm3294 = vcmp.eq.s32.totalorder %v3260, %v3276
        %vm3295 = vcmp.eq.s32.totalorder %v3261, %v3272
        %vm3296 = vcmp.eq.s32.totalorder %v3261, %v3276
        %vm3297 = vcmp.eq.s32.totalorder %v3262, %v3272
        %vm3298 = vcmp.eq.s32.totalorder %v3262, %v3276
        %vm3299 = vcmp.eq.s32.totalorder %v3263, %v3272
        %vm3300 = vcmp.eq.s32.totalorder %v3263, %v3276
        %vm3301 = vcmp.eq.s32.totalorder %v3264, %v3272
        %vm3302 = vcmp.eq.s32.totalorder %v3264, %v3276
        %vm3303 = vcmp.eq.s32.totalorder %v3265, %v3272
        %vm3304 = vcmp.eq.s32.totalorder %v3265, %v3276
        %vm3305 = vcmp.eq.s32.totalorder %v3266, %v3272
        %vm3306 = vcmp.eq.s32.totalorder %v3266, %v3276
        %vm3307 = vcmp.eq.s32.totalorder %v3267, %v3272
        %vm3308 = vcmp.eq.s32.totalorder %v3267, %v3276
        %v3309 = vsel %vm3277, 1, 0
        %v3310 = vsel %vm3278, 1, 0
        %v3311 = vsel %vm3279, 1, 0
        %v3312 = vsel %vm3280, 1, 0
        %v3313 = vsel %vm3281, 1, 0
        %v3314 = vsel %vm3282, 1, 0
        %v3315 = vsel %vm3283, 1, 0
        %v3316 = vsel %vm3284, 1, 0
        %v3317 = vsel %vm3285, 1, 0
        %v3318 = vsel %vm3286, 1, 0
        %v3319 = vsel %vm3287, 1, 0
        %v3320 = vsel %vm3288, 1, 0
        %v3321 = vsel %vm3289, 1, 0
        %v3322 = vsel %vm3290, 1, 0
        %v3323 = vsel %vm3291, 1, 0
        %v3324 = vsel %vm3292, 1, 0
        %v3325 = vsel %vm3293, 1, 0
        %v3326 = vsel %vm3294, 1, 0
        %v3327 = vsel %vm3295, 1, 0
        %v3328 = vsel %vm3296, 1, 0
        %v3329 = vsel %vm3297, 1, 0
        %v3330 = vsel %vm3298, 1, 0
        %v3331 = vsel %vm3299, 1, 0
        %v3332 = vsel %vm3300, 1, 0
        %v3333 = vsel %vm3301, 1, 0
        %v3334 = vsel %vm3302, 1, 0
        %v3335 = vsel %vm3303, 1, 0
        %v3336 = vsel %vm3304, 1, 0
        %v3337 = vsel %vm3305, 1, 0
        %v3338 = vsel %vm3306, 1, 0
        %v3339 = vsel %vm3307, 1, 0
        %v3340 = vsel %vm3308, 1, 0
        %v3341 = vcvt.s32.f32 %v3309
        %v3342 = vcvt.s32.f32 %v3310
        %v3343 = vcvt.s32.f32 %v3311
        %v3344 = vcvt.s32.f32 %v3312
        %v3345 = vcvt.s32.f32 %v3313
        %v3346 = vcvt.s32.f32 %v3314
        %v3347 = vcvt.s32.f32 %v3315
        %v3348 = vcvt.s32.f32 %v3316
        %v3349 = vcvt.s32.f32 %v3317
        %v3350 = vcvt.s32.f32 %v3318
        %v3351 = vcvt.s32.f32 %v3319
        %v3352 = vcvt.s32.f32 %v3320
        %v3353 = vcvt.s32.f32 %v3321
        %v3354 = vcvt.s32.f32 %v3322
        %v3355 = vcvt.s32.f32 %v3323
        %v3356 = vcvt.s32.f32 %v3324
        %v3357 = vcvt.s32.f32 %v3325
        %v3358 = vcvt.s32.f32 %v3326
        %v3359 = vcvt.s32.f32 %v3327
        %v3360 = vcvt.s32.f32 %v3328
        %v3361 = vcvt.s32.f32 %v3329
        %v3362 = vcvt.s32.f32 %v3330
        %v3363 = vcvt.s32.f32 %v3331
        %v3364 = vcvt.s32.f32 %v3332
        %v3365 = vcvt.s32.f32 %v3333
        %v3366 = vcvt.s32.f32 %v3334
        %v3367 = vcvt.s32.f32 %v3335
        %v3368 = vcvt.s32.f32 %v3336
        %v3369 = vcvt.s32.f32 %v3337
        %v3370 = vcvt.s32.f32 %v3338
        %v3371 = vcvt.s32.f32 %v3339
        %v3372 = vcvt.s32.f32 %v3340
        %v3373 = vld [vmem:[#allocation17] sm:$0xff]
        %v3374 = vld [vmem:[#allocation17 + $0x8] sm:$0xff]
        %v3375 = vld [vmem:[#allocation17 + $0x10] sm:$0xff]
        %v3376 = vld [vmem:[#allocation17 + $0x18] sm:$0xff]
        %v3377 = vld [vmem:[#allocation17 + $0x20] sm:$0xff]
        %v3378 = vld [vmem:[#allocation17 + $0x28] sm:$0xff]
        %v3379 = vld [vmem:[#allocation17 + $0x30] sm:$0xff]
        %v3380 = vld [vmem:[#allocation17 + $0x38] sm:$0xff]
        %v3381 = vld [vmem:[#allocation17 + $0x40] sm:$0xff]
        %v3382 = vld [vmem:[#allocation17 + $0x48] sm:$0xff]
        %v3383 = vld [vmem:[#allocation17 + $0x50] sm:$0xff]
        %v3384 = vld [vmem:[#allocation17 + $0x58] sm:$0xff]
        %v3385 = vld [vmem:[#allocation17 + $0x60] sm:$0xff]
        %v3386 = vld [vmem:[#allocation17 + $0x68] sm:$0xff]
        %v3387 = vld [vmem:[#allocation17 + $0x70] sm:$0xff]
        %v3388 = vld [vmem:[#allocation17 + $0x78] sm:$0xff]
        %3389 = vmatprep.subr.mxu0 0.0
        %3390 = vmatpush1.msra.mxu0 %v3187
        %3391 = vmatprep.subr.mxu0 0.0
        %3392 = vmatpush1.msra.mxu0 %v3188
        %3393 = vmatprep.subr.mxu0 0.0
        %3394 = vmatpush1.msra.mxu0 %v3189
        %3395 = vmatprep.subr.mxu0 0.0
        %3396 = vmatpush1.msra.mxu0 %v3190
        %3397 = vmatprep.subr.mxu0 0.0
        %3398 = vmatpush1.msra.mxu0 %v3191
        %3399 = vmatprep.subr.mxu0 0.0
        %3400 = vmatpush1.msra.mxu0 %v3192
        %3401 = vmatprep.subr.mxu0 0.0
        %3402 = vmatpush1.msra.mxu0 %v3193
        %3403 = vmatprep.subr.mxu0 0.0
        %3404 = vmatpush1.msra.mxu0 %v3194
        %3405 = vmatprep.subr.mxu0 0.0
        %3406 = vmatpush1.msra.mxu0 %v3195
        %3407 = vmatprep.subr.mxu0 0.0
        %3408 = vmatpush1.msra.mxu0 %v3196
        %3409 = vmatprep.subr.mxu0 0.0
        %3410 = vmatpush1.msra.mxu0 %v3197
        %3411 = vmatprep.subr.mxu0 0.0
        %3412 = vmatpush1.msra.mxu0 %v3198
        %3413 = vmatprep.subr.mxu0 0.0
        %3414 = vmatpush1.msra.mxu0 %v3199
        %3415 = vmatprep.subr.mxu0 0.0
        %3416 = vmatpush1.msra.mxu0 %v3200
        %3417 = vmatprep.subr.mxu0 0.0
        %3418 = vmatpush1.msra.mxu0 %v3201
        %3419 = vmatprep.subr.mxu0 0.0
        %3420 = vmatpush1.msra.mxu0 %v3202
        %3421 = vmatprep.subr.mxu0 0.0
        %3422 = vmatpush1.msra.mxu0 %v3203
        %3423 = vmatprep.subr.mxu0 0.0
        %3424 = vmatpush1.msra.mxu0 %v3204
        %3425 = vmatprep.subr.mxu0 0.0
        %3426 = vmatpush1.msra.mxu0 %v3205
        %3427 = vmatprep.subr.mxu0 0.0
        %3428 = vmatpush1.msra.mxu0 %v3206
        %3429 = vmatprep.subr.mxu0 0.0
        %3430 = vmatpush1.msra.mxu0 %v3207
        %3431 = vmatprep.subr.mxu0 0.0
        %3432 = vmatpush1.msra.mxu0 %v3208
        %3433 = vmatprep.subr.mxu0 0.0
        %3434 = vmatpush1.msra.mxu0 %v3209
        %3435 = vmatprep.subr.mxu0 0.0
        %3436 = vmatpush1.msra.mxu0 %v3210
        %3437 = vmatprep.subr.mxu0 0.0
        %3438 = vmatpush1.msra.mxu0 %v3211
        %3439 = vmatprep.subr.mxu0 0.0
        %3440 = vmatpush1.msra.mxu0 %v3212
        %3441 = vmatprep.subr.mxu0 0.0
        %3442 = vmatpush1.msra.mxu0 %v3213
        %3443 = vmatprep.subr.mxu0 0.0
        %3444 = vmatpush1.msra.mxu0 %v3214
        %3445 = vmatprep.subr.mxu0 0.0
        %3446 = vmatpush1.msra.mxu0 %v3215
        %3447 = vmatprep.subr.mxu0 0.0
        %3448 = vmatpush1.msra.mxu0 %v3216
        %3449 = vmatprep.subr.mxu0 0.0
        %3450 = vmatpush1.msra.mxu0 %v3217
        %3451 = vmatprep.subr.mxu0 0.0
        %3452 = vmatpush1.msra.mxu0 %v3218
        %3453 = vmatprep.mubr.f32.mxu0 %v3342
        %3454 = vmatmul.mubr.f32.gmra.mrb[0].mxu0 %v3341
        %v3455 = vpop.f32.mrb[0].mxu0
        %v3456 = vadd.f32 0.0, %v3455
        %v3457 = vpop.f32.mrb[0].mxu0
        %3458 = vmatprep.mubr.f32.mxu0 %v3344
        %3459 = vmatmul.mubr.f32.gmra.mrb[0].mxu0 %v3343
        %v3460 = vpop.f32.mrb[0].mxu0
        %v3461 = vadd.f32 0.0, %v3460
        %v3462 = vpop.f32.mrb[0].mxu0
        %3463 = vmatprep.mubr.f32.mxu0 %v3346
        %3464 = vmatmul.mubr.f32.gmra.mrb[0].mxu0 %v3345
        %v3465 = vpop.f32.mrb[0].mxu0
        %v3466 = vadd.f32 0.0, %v3465
        %v3467 = vpop.f32.mrb[0].mxu0
        %3468 = vmatprep.mubr.f32.mxu0 %v3348
        %3469 = vmatmul.mubr.f32.gmra.mrb[0].mxu0 %v3347
        %v3470 = vpop.f32.mrb[0].mxu0
        %v3471 = vadd.f32 0.0, %v3470
        %v3472 = vpop.f32.mrb[0].mxu0
        %3473 = vmatprep.mubr.f32.mxu0 %v3350
        %3474 = vmatmul.mubr.f32.gmra.mrb[0].mxu0 %v3349
        %v3475 = vpop.f32.mrb[0].mxu0
        %v3476 = vadd.f32 0.0, %v3475
        %v3477 = vpop.f32.mrb[0].mxu0
        %3478 = vmatprep.mubr.f32.mxu0 %v3352
        %3479 = vmatmul.mubr.f32.gmra.mrb[0].mxu0 %v3351
        %v3480 = vpop.f32.mrb[0].mxu0
        %v3481 = vadd.f32 0.0, %v3480
        %v3482 = vpop.f32.mrb[0].mxu0
        %3483 = vmatprep.mubr.f32.mxu0 %v3354
        %3484 = vmatmul.mubr.f32.gmra.mrb[0].mxu0 %v3353
        %v3485 = vpop.f32.mrb[0].mxu0
        %v3486 = vadd.f32 0.0, %v3485
        %v3487 = vpop.f32.mrb[0].mxu0
        %3488 = vmatprep.mubr.f32.mxu0 %v3356
        %3489 = vmatmul.mubr.f32.gmra.mrb[0].mxu0 %v3355
        %v3490 = vpop.f32.mrb[0].mxu0
        %v3491 = vadd.f32 0.0, %v3490
        %v3492 = vpop.f32.mrb[0].mxu0
        %3493 = vmatprep.mubr.f32.mxu0 %v3358
        %3494 = vmatmul.mubr.f32.gmra.mrb[0].mxu0 %v3357
        %v3495 = vpop.f32.mrb[0].mxu0
        %v3496 = vadd.f32 0.0, %v3495
        %v3497 = vpop.f32.mrb[0].mxu0
        %3498 = vmatprep.mubr.f32.mxu0 %v3360
        %3499 = vmatmul.mubr.f32.gmra.mrb[0].mxu0 %v3359
        %v3500 = vpop.f32.mrb[0].mxu0
        %v3501 = vadd.f32 0.0, %v3500
        %v3502 = vpop.f32.mrb[0].mxu0
        %3503 = vmatprep.mubr.f32.mxu0 %v3362
        %3504 = vmatmul.mubr.f32.gmra.mrb[0].mxu0 %v3361
        %v3505 = vpop.f32.mrb[0].mxu0
        %v3506 = vadd.f32 0.0, %v3505
        %v3507 = vpop.f32.mrb[0].mxu0
        %3508 = vmatprep.mubr.f32.mxu0 %v3364
        %3509 = vmatmul.mubr.f32.gmra.mrb[0].mxu0 %v3363
        %v3510 = vpop.f32.mrb[0].mxu0
        %v3511 = vadd.f32 0.0, %v3510
        %v3512 = vpop.f32.mrb[0].mxu0
        %3513 = vmatprep.mubr.f32.mxu0 %v3366
        %3514 = vmatmul.mubr.f32.gmra.mrb[0].mxu0 %v3365
        %v3515 = vpop.f32.mrb[0].mxu0
        %v3516 = vadd.f32 0.0, %v3515
        %v3517 = vpop.f32.mrb[0].mxu0
        %3518 = vmatprep.mubr.f32.mxu0 %v3368
        %3519 = vmatmul.mubr.f32.gmra.mrb[0].mxu0 %v3367
        %v3520 = vpop.f32.mrb[0].mxu0
        %v3521 = vadd.f32 0.0, %v3520
        %v3522 = vpop.f32.mrb[0].mxu0
        %3523 = vmatprep.mubr.f32.mxu0 %v3370
        %3524 = vmatmul.mubr.f32.gmra.mrb[0].mxu0 %v3369
        %v3525 = vpop.f32.mrb[0].mxu0
        %v3526 = vadd.f32 0.0, %v3525
        %v3527 = vpop.f32.mrb[0].mxu0
        %3528 = vmatprep.mubr.f32.mxu0 %v3372
        %3529 = vmatmul.mubr.f32.gmra.mrb[0].mxu0 %v3371
        %v3530 = vpop.f32.mrb[0].mxu0
        %v3531 = vadd.f32 0.0, %v3530
        %v3532 = vpop.f32.mrb[0].mxu0
        %3533 = vdwg.mxu0
        %v3534 = vadd.f32 %v3373, %v3456
        %v3535 = vadd.f32 %v3374, %v3461
        %v3536 = vadd.f32 %v3375, %v3466
        %v3537 = vadd.f32 %v3376, %v3471
        %v3538 = vadd.f32 %v3377, %v3476
        %v3539 = vadd.f32 %v3378, %v3481
        %v3540 = vadd.f32 %v3379, %v3486
        %v3541 = vadd.f32 %v3380, %v3491
        %v3542 = vadd.f32 %v3381, %v3496
        %v3543 = vadd.f32 %v3382, %v3501
        %v3544 = vadd.f32 %v3383, %v3506
        %v3545 = vadd.f32 %v3384, %v3511
        %v3546 = vadd.f32 %v3385, %v3516
        %v3547 = vadd.f32 %v3386, %v3521
        %v3548 = vadd.f32 %v3387, %v3526
        %v3549 = vadd.f32 %v3388, %v3531
        %3550 = vst [vmem:[#allocation17] sm:$0xff] %v3534
        %3551 = vst [vmem:[#allocation17 + $0x8] sm:$0xff] %v3535
        %3552 = vst [vmem:[#allocation17 + $0x10] sm:$0xff] %v3536
        %3553 = vst [vmem:[#allocation17 + $0x18] sm:$0xff] %v3537
        %3554 = vst [vmem:[#allocation17 + $0x20] sm:$0xff] %v3538
        %3555 = vst [vmem:[#allocation17 + $0x28] sm:$0xff] %v3539
        %3556 = vst [vmem:[#allocation17 + $0x30] sm:$0xff] %v3540
        %3557 = vst [vmem:[#allocation17 + $0x38] sm:$0xff] %v3541
        %3558 = vst [vmem:[#allocation17 + $0x40] sm:$0xff] %v3542
        %3559 = vst [vmem:[#allocation17 + $0x48] sm:$0xff] %v3543
        %3560 = vst [vmem:[#allocation17 + $0x50] sm:$0xff] %v3544
        %3561 = vst [vmem:[#allocation17 + $0x58] sm:$0xff] %v3545
        %3562 = vst [vmem:[#allocation17 + $0x60] sm:$0xff] %v3546
        %3563 = vst [vmem:[#allocation17 + $0x68] sm:$0xff] %v3547
        %3564 = vst [vmem:[#allocation17 + $0x70] sm:$0xff] %v3548
        %3565 = vst [vmem:[#allocation17 + $0x78] sm:$0xff] %v3549
        %s3566 = sand.u32 %s237, 1
        %s3567 = scalar_lea.sflag [#allocation4], %s3566
        %s3568 = sand.u32 %s237, 1
        %s3569 = smul.addr %s3568, 256
        %s3570 = scalar_lea.vmem [#allocation16], %s3569
        // Predicated region
        $region89: #{tpu_custom_call.1} parent=51 // pred_check
          %p3571 = pneg %p247
        $region90: #{tpu_custom_call.1} parent=51 // pred_check_branch
          %3573 = sbr.rel (%p3571) target = $region92
        $region91: #{tpu_custom_call.1} parent=51 // pred_region
          %s3574 = smul.u32 32, %s36
          %s3576 = ssub.s32 4096, 4096
          %3577 = vsyncadd %s3567, %s3576
          %s3578 = smul.addr %s3574, 128
          %s3579 = scalar_lea.hbm %s8, %s3578
          %s3580 = sshll.u32 %s3570, 4
          %s3581 = int_to_ptr.vmem [resolvable:$true] %s3580
          %3586 = dma.vmem_to_hbm [thread:$0]  %s3581, 4096, %s3579, %s3567, 128, 128, 8
        $region92: #{tpu_custom_call.1} parent=51 // pred_fallthru
          _
        // Predicated region
        $region93: #{tpu_custom_call.1} parent=51 // pred_check
          %p3587 = pneg %p268
        $region94: #{tpu_custom_call.1} parent=51 // pred_check_branch
          %3589 = sbr.rel (%p3587) target = $region96
        $region95: #{tpu_custom_call.1} parent=51 // pred_region
          %s3591 = ssub.s32 2048, 2048
          %3592 = vsyncadd [#allocation18], %s3591
          %s3593 = sshll.u32 [#allocation17], 4
          %s3594 = int_to_ptr.vmem [resolvable:$true] %s3593
          %3599 = dma.vmem_to_hbm [thread:$0]  %s3594, 2048, %s9, [#allocation18], 128, 128, 8
        $region96: #{tpu_custom_call.1} parent=51 // pred_fallthru
          _
        // Predicated region
        $region97: #{tpu_custom_call.1} parent=51 // pred_check
          %p3600 = pneg %p268
        $region98: #{tpu_custom_call.1} parent=51 // pred_check_branch
          %3602 = sbr.rel (%p3600) target = $region100
        $region99: #{tpu_custom_call.1} parent=51 // pred_region
          %3603 = dma.done [#allocation18], 2048
        $region100: #{tpu_custom_call.1} parent=51 // pred_fallthru
          _
      $region52: #{tpu_custom_call.1} parent=5 // pred_fallthru
        _
      %p3604 = scmp.le.s32.totalorder 2, %s31
      // Predicated region
      $region101: #{tpu_custom_call.1} parent=5 // pred_check
        %p3605 = pneg %p3604
      $region102: #{tpu_custom_call.1} parent=5 // pred_check_branch
        %3607 = sbr.rel (%p3605) target = $region104
      $region103: #{tpu_custom_call.1} parent=5 // pred_region
        %s3608 = ssub.s32 %s31, 2
        // Predicated region
        $region105: #{tpu_custom_call.1} parent=103 // pred_check
          %p3609 = pneg %p253
        $region106: #{tpu_custom_call.1} parent=103 // pred_check_branch
          %3611 = sbr.rel (%p3609) target = $region108
        $region107: #{tpu_custom_call.1} parent=103 // pred_region
          %s3612 = sand.u32 %s238, 1
          %s3613 = scalar_lea.sflag [#allocation4], %s3612
          %s3614 = sand.u32 %s238, 1
          %s3615 = smul.addr %s3614, 256
          %s3616 = scalar_lea.vmem [#allocation16], %s3615
          %3617 = dma.done %s3613, 4096
        $region108: #{tpu_custom_call.1} parent=103 // pred_fallthru
          _
      $region104: #{tpu_custom_call.1} parent=5 // pred_fallthru
        _
    $region6: #{tpu_custom_call.1} parent=1 // loop_footer
      %s35 = sadd.s32 1, %s31
    $region7: #{tpu_custom_call.1} parent=1 // loop_footer_branch
      %30 = sbr.rel target = $region3
    $region8: #{tpu_custom_call.1} parent=1 // loop_exit
      _
    %3618 = vsyncpa [#allocation3], 1
    %s3619 = scalar_lea.sflag [#allocation3], 1
    %3620 = vsyncpa %s3619, 1
    %3621 = vsyncpa [#allocation6], 1
    %s3622 = scalar_lea.sflag [#allocation6], 1
    %3623 = vsyncpa %s3622, 1
    %3624 = vsyncpa [#allocation9], 1
    %s3625 = scalar_lea.sflag [#allocation9], 1
    %3626 = vsyncpa %s3625, 1
    %3627 = vsyncpa [#allocation12], 1
    %s3628 = scalar_lea.sflag [#allocation12], 1
    %3629 = vsyncpa %s3628, 1
    %3630 = vsyncpa [#allocation15], 1
    %3631 = vsyncpa [#allocation4], 1
    %s3632 = scalar_lea.sflag [#allocation4], 1
    %3633 = vsyncpa %s3632, 1
    %3634 = vsyncpa [#allocation18], 1

</llo_original>
